<compile_context>
chip_gen: v5e
topology: v5e:2x2
jax: 0.10.0
libtpu: 0.0.40
codegen_flags: <defaults>
</compile_context>

<pallas_src>
import functools
import math

import jax
import jax.numpy as jnp
from jax import lax
from jax.experimental import pallas as pl
from jax.experimental.pallas import tpu as pltpu

MM_DTYPE = jnp.bfloat16          # MXU operand dtype; accumulation stays f32 everywhere


# ---------------------------------------------------------------------------
# Pallas kernels
# ---------------------------------------------------------------------------
def _matmul_bias_kernel(a_ref, b_ref, bias_ref, o_ref):
    a = a_ref[...].astype(MM_DTYPE)                      # cast after DMA (halves MXU operand width)
    o_ref[...] = (
        jnp.dot(a, b_ref[...], preferred_element_type=jnp.float32) + bias_ref[...]
    )


def _layernorm_kernel(x_ref, g_ref, b_ref, o_ref, *, eps):
    x = x_ref[...]
    mu = jnp.mean(x, axis=-1, keepdims=True)
    var = jnp.mean((x - mu) ** 2, axis=-1, keepdims=True)
    o_ref[...] = (x - mu) * lax.rsqrt(var + eps) * g_ref[...] + b_ref[...]


def _rel_attn_kernel(qkv_ref, p_ref, u_ref, vb_ref, m_ref, o_ref, *, d, H, scale):
    """One batch element per grid step, all heads processed inside."""
    dk = d // H
    qkv = qkv_ref[0]                     # (T, 3d) fused projection, f32
    q = qkv[:, :d]
    k = qkv[:, d:2 * d]
    v = qkv[:, 2 * d:]
    p = p_ref[...]                       # (T, d) projected positional embedding (shared)
    qu = q + u_ref[...]                  # (T, d) + (1, d) lane-wise pos_bias_u
    qv = q + vb_ref[...]                 # pos_bias_v
    mbias = m_ref[0]                     # (1, T) additive key mask: 0 valid / -1e9 padded
    ctx = []
    for h in range(H):                   # static unroll over heads
        lo, hi = h * dk, (h + 1) * dk
        a = jnp.concatenate([qu[:, lo:hi], qv[:, lo:hi]], axis=-1).astype(MM_DTYPE)
        kp = jnp.concatenate([k[:, lo:hi], p[:, lo:hi]], axis=-1).astype(MM_DTYPE)
        # fused (q+u)k^T + (q+v)p^T as a single matmul contracting the last dims (no .T)
        s = lax.dot_general(a, kp, (((1,), (1,)), ((), ())),
                            preferred_element_type=jnp.float32) * scale + mbias
        smax = jnp.max(s, axis=-1, keepdims=True)
        e = jnp.exp(s - smax)
        denom = jnp.sum(e, axis=-1, keepdims=True)
        attn = e * pl.reciprocal(denom, approx=True)     # EUP reciprocal, co-issues with MXU/VPU
        ctx.append(jnp.dot(attn.astype(MM_DTYPE), v[:, lo:hi].astype(MM_DTYPE),
                           preferred_element_type=jnp.float32))
    o_ref[0] = jnp.concatenate(ctx, axis=-1)             # one lane-dense (T, d) store


def _dwconv_kernel(x_ref, w_ref, b_ref, o_ref, *, ksize, T):
    # TODO(synk): the k>0 taps are unaligned sublane slices; pltpu.roll could push the shift to
    #             the XLU slot, but static slicing is kept here for lowering robustness.
    x = x_ref[0]                         # (T + ksize - 1, D)
    w = w_ref[...]                       # (ksize, D)
    acc = x[0:T, :] * w[0, :] + b_ref[...]               # bias folded into the accumulator init
    for k in range(1, ksize):            # small fixed trip count -> unrolled
        acc = acc + x[k:k + T, :] * w[k, :]
    o_ref[0] = acc


# ---------------------------------------------------------------------------
# Pallas wrappers
# ---------------------------------------------------------------------------
def _row_tile(M, cap=512):
    """Biggest legal row tile: whole array if small (block == full dims is always legal),
    otherwise a divisor of M, otherwise 128 with a masked last tile handled by Pallas."""
    if M <= cap:
        return M
    for tm in (512, 256, 128):
        if M % tm == 0:
            return tm
    return 128


def pallas_linear(x, w, b=None):
    """x: (..., K) @ w: (K, N) + b -> (..., N); bf16 MXU operands, f32 accumulate/bias."""
    orig = x.shape
    K = orig[-1]
    N = w.shape[1]
    x2 = x.reshape(-1, K)
    M = x2.shape[0]
    TM = _row_tile(M)
    if w.dtype != MM_DTYPE:
        w = w.astype(MM_DTYPE)
    bias = (b if b is not None else jnp.zeros((N,), jnp.float32))
    bias = bias.reshape(1, N).astype(jnp.float32)
    out = pl.pallas_call(
        _matmul_bias_kernel,
        out_shape=jax.ShapeDtypeStruct((M, N), jnp.float32),
        grid=(pl.cdiv(M, TM),),
        in_specs=[
            pl.BlockSpec((TM, K), lambda i: (i, 0)),
            pl.BlockSpec((K, N), lambda i: (0, 0)),
            pl.BlockSpec((1, N), lambda i: (0, 0)),
        ],
        out_specs=pl.BlockSpec((TM, N), lambda i: (i, 0)),
        compiler_params=pltpu.CompilerParams(dimension_semantics=("parallel",)),
    )(x2, w, bias)
    return out.reshape(orig[:-1] + (N,))


def pallas_layernorm(x, gamma, beta, eps=1e-5):
    orig = x.shape
    D = orig[-1]
    x2 = x.reshape(-1, D).astype(jnp.float32)
    M = x2.shape[0]
    TM = _row_tile(M)
    out = pl.pallas_call(
        functools.partial(_layernorm_kernel, eps=eps),
        out_shape=jax.ShapeDtypeStruct((M, D), jnp.float32),
        grid=(pl.cdiv(M, TM),),
        in_specs=[
            pl.BlockSpec((TM, D), lambda i: (i, 0)),
            pl.BlockSpec((1, D), lambda i: (0, 0)),
            pl.BlockSpec((1, D), lambda i: (0, 0)),
        ],
        out_specs=pl.BlockSpec((TM, D), lambda i: (i, 0)),
        compiler_params=pltpu.CompilerParams(dimension_semantics=("parallel",)),
    )(x2, gamma.reshape(1, D).astype(jnp.float32), beta.reshape(1, D).astype(jnp.float32))
    return out.reshape(orig)


def pallas_rel_attention(qkv, pemb, u_flat, v_flat, mbias, d, H, scale):
    """qkv: (B, T, 3d) fused projection; pemb: (T, d); u/v: (1, d); mbias: (B, 1, T) additive."""
    B, T, _ = qkv.shape
    return pl.pallas_call(
        functools.partial(_rel_attn_kernel, d=d, H=H, scale=scale),
        out_shape=jax.ShapeDtypeStruct((B, T, d), jnp.float32),
        grid=(B,),
        in_specs=[
            pl.BlockSpec((1, T, 3 * d), lambda b: (b, 0, 0)),
            pl.BlockSpec((T, d), lambda b: (0, 0)),
            pl.BlockSpec((1, d), lambda b: (0, 0)),
            pl.BlockSpec((1, d), lambda b: (0, 0)),
            pl.BlockSpec((1, 1, T), lambda b: (b, 0, 0)),
        ],
        out_specs=pl.BlockSpec((1, T, d), lambda b: (b, 0, 0)),
        compiler_params=pltpu.CompilerParams(dimension_semantics=("parallel",)),
    )(qkv, pemb, u_flat, v_flat, mbias)


def pallas_depthwise_conv1d(x, w, b):
    """Depthwise conv over time, 'same' padding. x: (B, T, D), w: (ksize, D), b: (D,)."""
    B, T, D = x.shape
    ksize = w.shape[0]
    pad = (ksize - 1) // 2
    xp = jnp.pad(x, ((0, 0), (pad, pad), (0, 0)))
    return pl.pallas_call(
        functools.partial(_dwconv_kernel, ksize=ksize, T=T),
        out_shape=jax.ShapeDtypeStruct((B, T, D), jnp.float32),
        grid=(B,),
        in_specs=[
            pl.BlockSpec((1, T + ksize - 1, D), lambda i: (i, 0, 0)),
            pl.BlockSpec((ksize, D), lambda i: (0, 0)),
            pl.BlockSpec((1, D), lambda i: (0, 0)),
        ],
        out_specs=pl.BlockSpec((1, T, D), lambda i: (i, 0, 0)),
        compiler_params=pltpu.CompilerParams(dimension_semantics=("parallel",)),
    )(xp, w.astype(jnp.float32), b.reshape(1, D).astype(jnp.float32))


# ---------------------------------------------------------------------------
# Plain-JAX glue
# ---------------------------------------------------------------------------
def swish(x):
    return x * jax.nn.sigmoid(x)


def bn_eval(x, gamma, beta, rm, rv, eps=1e-5):
    return (x - rm) * lax.rsqrt(rv + eps) * gamma + beta


def sinusoid_pe(max_len, d):
    position = jnp.arange(max_len, dtype=jnp.float32)[:, None]
    div_term = jnp.exp(jnp.arange(0, d, 2, dtype=jnp.float32) * -(math.log(10000.0) / d))
    pe = jnp.zeros((max_len, d), jnp.float32)
    pe = pe.at[:, 0::2].set(jnp.sin(position * div_term))
    pe = pe.at[:, 1::2].set(jnp.cos(position * div_term))
    return pe


# ---------------------------------------------------------------------------
# Parameter init (deterministic, synthetic); matmul weights stored bf16 once.
# ---------------------------------------------------------------------------
def init_params(key, cfg):
    d = cfg["d_model"]
    H = cfg["heads"]
    dk = d // H
    lu = cfg["linear_units"]
    nb = cfg["num_blocks"]
    F2 = (cfg["n_mels"] - 1) // 2
    C = d * nb
    ach = cfg["att_channels"]
    emb = cfg["embedding_dim"]
    keys = iter(jax.random.split(key, 1024))

    def nrm(shape, fan_in, dtype=jnp.float32):
        w = jax.random.normal(next(keys), shape, jnp.float32) / math.sqrt(fan_in)
        return w.astype(dtype)

    P = {}
    P["pe"] = sinusoid_pe(cfg["max_len"], d)
    # Conv2dSubsampling2: Conv2d(1, d, 3, stride=2) + ReLU (im2col layout) then Linear(d*F2, d)
    P["sub_conv_w"] = nrm((9, d), 9, MM_DTYPE)
    P["sub_conv_b"] = jnp.zeros((d,), jnp.float32)
    P["sub_lin_w"] = nrm((d * F2, d), d * F2, MM_DTYPE)
    P["sub_lin_b"] = jnp.zeros((d,), jnp.float32)

    blocks = []
    for _ in range(nb):
        p = {}
        p["ffm_ln_g"], p["ffm_ln_b"] = jnp.ones((d,)), jnp.zeros((d,))
        p["ffm_w1"], p["ffm_b1"] = nrm((d, lu), d, MM_DTYPE), jnp.zeros((lu,))
        p["ffm_w2"], p["ffm_b2"] = nrm((lu, d), lu, MM_DTYPE), jnp.zeros((d,))
        p["mha_ln_g"], p["mha_ln_b"] = jnp.ones((d,)), jnp.zeros((d,))
        p["wqkv"] = nrm((d, 3 * d), d, MM_DTYPE)                 # fused q|k|v projection
        p["bqkv"] = jnp.zeros((3 * d,), jnp.float32)
        p["wout"], p["bout"] = nrm((d, d), d, MM_DTYPE), jnp.zeros((d,))
        p["wpos"] = nrm((d, d), d, MM_DTYPE)                     # linear_pos (no bias)
        p["pos_bias_u"] = nrm((1, d), dk)                        # (H, dk) flattened lane-wise
        p["pos_bias_v"] = nrm((1, d), dk)
        p["conv_ln_g"], p["conv_ln_b"] = jnp.ones((d,)), jnp.zeros((d,))
        p["pw1_w"], p["pw1_b"] = nrm((d, 2 * d), d, MM_DTYPE), jnp.zeros((2 * d,))
        p["dw_w"], p["dw_b"] = nrm((cfg["cnn_kernel"], d), cfg["cnn_kernel"]), jnp.zeros((d,))
        p["bn_g"], p["bn_b"] = jnp.ones((d,)), jnp.zeros((d,))
        p["bn_rm"], p["bn_rv"] = jnp.zeros((d,)), jnp.ones((d,))
        p["pw2_w"], p["pw2_b"] = nrm((d, d), d, MM_DTYPE), jnp.zeros((d,))
        p["ff_ln_g"], p["ff_ln_b"] = jnp.ones((d,)), jnp.zeros((d,))
        p["ff_w1"], p["ff_b1"] = nrm((d, lu), d, MM_DTYPE), jnp.zeros((lu,))
        p["ff_w2"], p["ff_b2"] = nrm((lu, d), lu, MM_DTYPE), jnp.zeros((d,))
        p["fin_ln_g"], p["fin_ln_b"] = jnp.ones((d,)), jnp.zeros((d,))
        blocks.append(p)
    P["blocks"] = blocks

    # AttentiveStatisticsPooling (global_context=True)
    P["tdnn_w"], P["tdnn_b"] = nrm((3 * C, ach), 3 * C, MM_DTYPE), jnp.zeros((ach,))
    P["tdnn_bn_g"], P["tdnn_bn_b"] = jnp.ones((ach,)), jnp.zeros((ach,))
    P["tdnn_bn_rm"], P["tdnn_bn_rv"] = jnp.zeros((ach,)), jnp.ones((ach,))
    P["attn_w"], P["attn_b"] = nrm((ach, C), ach, MM_DTYPE), jnp.zeros((C,))
    # top-level BatchNorm1d(2C) + Linear(2C -> emb)
    P["top_bn_g"], P["top_bn_b"] = jnp.ones((2 * C,)), jnp.zeros((2 * C,))
    P["top_bn_rm"], P["top_bn_rv"] = jnp.zeros((2 * C,)), jnp.ones((2 * C,))
    P["fc_w"], P["fc_b"] = nrm((2 * C, emb), 2 * C, MM_DTYPE), jnp.zeros((emb,))
    return P


# ---------------------------------------------------------------------------
# Model forward
# ---------------------------------------------------------------------------
def conformer_block(p, x, pos_emb, mask, mbias, cfg):
    d = cfg["d_model"]
    H = cfg["heads"]
    dk = d // H

    # --- macaron feed-forward (scale 0.5) ---
    y = pallas_layernorm(x, p["ffm_ln_g"], p["ffm_ln_b"])
    y = pallas_linear(y, p["ffm_w1"], p["ffm_b1"])
    y = swish(y)
    y = pallas_linear(y, p["ffm_w2"], p["ffm_b2"])
    x = x + 0.5 * y

    # --- relative-position multi-head self attention (wenet style, no rel-shift) ---
    y = pallas_layernorm(x, p["mha_ln_g"], p["mha_ln_b"])
    qkv = pallas_linear(y, p["wqkv"], p["bqkv"])               # (B, T, 3d) fused projection
    pemb = pallas_linear(pos_emb, p["wpos"], None)             # (T, d), no bias
    att = pallas_rel_attention(qkv, pemb, p["pos_bias_u"], p["pos_bias_v"],
                               mbias, d, H, 1.0 / math.sqrt(dk))
    att = pallas_linear(att, p["wout"], p["bout"])
    x = x + att

    # --- convolution module ---
    y = pallas_layernorm(x, p["conv_ln_g"], p["conv_ln_b"])
    y = y * mask[:, :, None]
    y = pallas_linear(y, p["pw1_w"], p["pw1_b"])               # pointwise conv1 (1x1)
    y = y[..., :d] * jax.nn.sigmoid(y[..., d:])                # GLU over channels
    y = pallas_depthwise_conv1d(y, p["dw_w"], p["dw_b"])       # depthwise conv, kernel 15
    y = bn_eval(y, p["bn_g"], p["bn_b"], p["bn_rm"], p["bn_rv"])
    y = swish(y)
    y = pallas_linear(y, p["pw2_w"], p["pw2_b"])               # pointwise conv2 (1x1)
    y = y * mask[:, :, None]
    x = x + y

    # --- feed-forward (scale 0.5) ---
    y = pallas_layernorm(x, p["ff_ln_g"], p["ff_ln_b"])
    y = pallas_linear(y, p["ff_w1"], p["ff_b1"])
    y = swish(y)
    y = pallas_linear(y, p["ff_w2"], p["ff_b2"])
    x = x + 0.5 * y

    # --- final layer norm of the block ---
    return pallas_layernorm(x, p["fin_ln_g"], p["fin_ln_b"])


def attentive_stats_pooling(P, x, eps=1e-12):
    # x: (B, T, C); lengths=None in the reference -> uniform global-context weights.
    B, T, C = x.shape
    w = jnp.full((B, T, 1), 1.0 / T, jnp.float32)
    mean = jnp.sum(w * x, axis=1)
    std = jnp.sqrt(jnp.maximum(jnp.sum(w * (x - mean[:, None, :]) ** 2, axis=1), eps))
    attn = jnp.concatenate(
        [x,
         jnp.broadcast_to(mean[:, None, :], (B, T, C)),
         jnp.broadcast_to(std[:, None, :], (B, T, C))], axis=-1)        # (B, T, 3C)
    attn = pallas_linear(attn, P["tdnn_w"], P["tdnn_b"])                # TDNN 1x1 conv
    attn = jax.nn.relu(attn)
    attn = bn_eval(attn, P["tdnn_bn_g"], P["tdnn_bn_b"], P["tdnn_bn_rm"], P["tdnn_bn_rv"])
    attn = jnp.tanh(attn)
    attn = pallas_linear(attn, P["attn_w"], P["attn_b"])                # 1x1 conv -> (B, T, C)
    attn = jax.nn.softmax(attn, axis=1)                                 # softmax over time
    mean2 = jnp.sum(attn * x, axis=1)
    std2 = jnp.sqrt(jnp.maximum(jnp.sum(attn * (x - mean2[:, None, :]) ** 2, axis=1), eps))
    return jnp.concatenate([mean2, std2], axis=-1)                      # (B, 2C)


def conformer_forward(P, feat, lens, cfg):
    d = cfg["d_model"]
    B, T, F = feat.shape

    # --- Conv2dSubsampling2: Conv2d(1, d, 3, stride 2) + ReLU via im2col + Pallas matmul ---
    T2 = (T - 3) // 2 + 1
    F2 = (F - 3) // 2 + 1
    patches = []
    for kt in range(3):
        for kf in range(3):
            patches.append(feat[:, kt:kt + 2 * T2 - 1:2, kf:kf + 2 * F2 - 1:2])
    patches = jnp.stack(patches, axis=-1)                        # (B, T2, F2, 9)
    y = pallas_linear(patches.reshape(-1, 9), P["sub_conv_w"], P["sub_conv_b"])
    y = jax.nn.relu(y).reshape(B, T2, F2, d)
    # torch: (B, d, T2, F2).transpose(1, 2).view(B, T2, d * F2)
    y = jnp.transpose(y, (0, 1, 3, 2)).reshape(B, T2, d * F2)
    x = pallas_linear(y, P["sub_lin_w"], P["sub_lin_b"])         # (B, T2, d)

    # RelPositionalEncoding (dropout = identity in eval)
    x = x * math.sqrt(d)
    pos_emb = P["pe"][:T2]                                       # (T2, d)

    # padding masks (subsampled the same way as the time axis)
    mask = (jnp.arange(T)[None, :] < lens[:, None]).astype(jnp.float32)   # (B, T)
    mask = mask[:, :-2:2]                                        # (B, T2)
    mbias = ((mask - 1.0) * 1e9).reshape(B, 1, T2)               # additive key-mask bias

    # encoder blocks, outputs concatenated over features (MFA)
    outs = []
    for blk in P["blocks"]:
        x = conformer_block(blk, x, pos_emb, mask, mbias, cfg)
        outs.append(x)
    xs = jnp.concatenate(outs, axis=-1)                          # (B, T2, d*num_blocks)

    # pooling + BN + fc
    pooled = attentive_stats_pooling(P, xs)                      # (B, 2C)
    pooled = bn_eval(pooled, P["top_bn_g"], P["top_bn_b"], P["top_bn_rm"], P["top_bn_rv"])
    out = pallas_linear(pooled, P["fc_w"], P["fc_b"])            # (B, embedding_dim)
    return out


# ---------------------------------------------------------------------------
if __name__ == "__main__":
    cfg = dict(
        n_mels=16,          # scaled-down n_mels (module default 80)
        num_blocks=2,       # module default 6
        d_model=128,        # module default output_size=256; kept a multiple of 128 so every
                            # kernel output store stays lane-dense
        heads=4,
        linear_units=256,
        cnn_kernel=15,
        att_channels=128,   # ASP attention_channels (default 128)
        embedding_dim=128,  # module default 192
        max_len=64,
    )
    key = jax.random.PRNGKey(0)
    kp, kx = jax.random.split(key)
    params = init_params(kp, cfg)

    B, T = 2, 32
    feat = jax.random.normal(kx, (B, T, cfg["n_mels"]), jnp.float32)
    lens = jnp.array([32, 24], jnp.int32)

    fwd = jax.jit(functools.partial(conformer_forward, cfg=cfg))
    out = jax.block_until_ready(fwd(params, feat, lens))
    assert out.shape == (B, cfg["embedding_dim"]), out.shape
    assert bool(jnp.all(jnp.isfinite(out)))
    print("KERNEL_OK")
</pallas_src>

<mosaic_0001>
module attributes {stable_mosaic.version = 11 : i64} {
  func.func @_matmul_bias_kernel(%arg0: i32, %arg1: memref<210x9xf32, #tpu.memory_space<vmem>>, %arg2: memref<9x128xbf16, #tpu.memory_space<vmem>>, %arg3: memref<1x128xf32, #tpu.memory_space<vmem>>, %arg4: memref<210x128xf32, #tpu.memory_space<vmem>>) attributes {dimension_semantics = [#tpu.dimension_semantics<parallel>], iteration_bounds = array<i64: 1>, scalar_prefetch = 0 : i64, scratch_operands = 0 : i64, tpu.core_type = #tpu.core_type<tc>, window_params = [{transform_indices = @transform_0, window_bounds = array<i64: 210, 9>}, {pipeline_mode = #tpu.pipeline_mode<synchronous>, transform_indices = @transform_1, window_bounds = array<i64: 9, 128>}, {pipeline_mode = #tpu.pipeline_mode<synchronous>, transform_indices = @transform_2, window_bounds = array<i64: 1, 128>}, {transform_indices = @transform_3, window_bounds = array<i64: 210, 128>}]} {
    %c0 = arith.constant 0 : index
    %c0_0 = arith.constant 0 : index
    %0 = vector.load %arg1[%c0, %c0_0] : memref<210x9xf32, #tpu.memory_space<vmem>>, vector<210x9xf32>
    %1 = arith.truncf %0 : vector<210x9xf32> to vector<210x9xbf16>
    %c0_1 = arith.constant 0 : index
    %c0_2 = arith.constant 0 : index
    %2 = vector.load %arg2[%c0_1, %c0_2] : memref<9x128xbf16, #tpu.memory_space<vmem>>, vector<9x128xbf16>
    %cst = arith.constant dense<0.000000e+00> : vector<210x128xf32>
    %3 = tpu.matmul %1, %2, %cst {dimension_numbers = #tpu.dot_dimension_numbers<[1], [0], [0], [1], [0, 0, 1, 1], [], []>} : vector<210x9xbf16>, vector<9x128xbf16>, vector<210x128xf32> -> vector<210x128xf32>
    %c0_3 = arith.constant 0 : index
    %c0_4 = arith.constant 0 : index
    %4 = vector.load %arg3[%c0_3, %c0_4] : memref<1x128xf32, #tpu.memory_space<vmem>>, vector<1x128xf32>
    %5 = vector.broadcast %4 : vector<1x128xf32> to vector<210x128xf32>
    %6 = arith.addf %3, %5 : vector<210x128xf32>
    %c0_5 = arith.constant 0 : index
    %c0_6 = arith.constant 0 : index
    %7 = vector.load %arg4[%c0_5, %c0_6] : memref<210x128xf32, #tpu.memory_space<vmem>>, vector<210x128xf32>
    tpu.vector_store %arg4[%c0_5, %c0_6], %6 {strides = array<i32>} : memref<210x128xf32, #tpu.memory_space<vmem>>, vector<210x128xf32>,
    return
  }
  func.func @transform_0(%arg0: i32) -> (i32, i32) {
    %c0_i32 = arith.constant 0 : i32
    %c0_i32_0 = arith.constant 0 : i32
    return %arg0, %c0_i32 : i32, i32
  }
  func.func @transform_1(%arg0: i32) -> (i32, i32) {
    %c0_i32 = arith.constant 0 : i32
    %c0_i32_0 = arith.constant 0 : i32
    %c0_i32_1 = arith.constant 0 : i32
    return %c0_i32, %c0_i32_0 : i32, i32
  }
  func.func @transform_2(%arg0: i32) -> (i32, i32) {
    %c0_i32 = arith.constant 0 : i32
    %c0_i32_0 = arith.constant 0 : i32
    %c0_i32_1 = arith.constant 0 : i32
    return %c0_i32, %c0_i32_0 : i32, i32
  }
  func.func @transform_3(%arg0: i32) -> (i32, i32) {
    %c0_i32 = arith.constant 0 : i32
    %c0_i32_0 = arith.constant 0 : i32
    return %arg0, %c0_i32 : i32, i32
  }
}

module attributes {stable_mosaic.version = 11 : i64} {
  func.func @_matmul_bias_kernel(%arg0: i32, %arg1: memref<30x896xf32, #tpu.memory_space<vmem>>, %arg2: memref<896x128xbf16, #tpu.memory_space<vmem>>, %arg3: memref<1x128xf32, #tpu.memory_space<vmem>>, %arg4: memref<30x128xf32, #tpu.memory_space<vmem>>) attributes {dimension_semantics = [#tpu.dimension_semantics<parallel>], iteration_bounds = array<i64: 1>, scalar_prefetch = 0 : i64, scratch_operands = 0 : i64, tpu.core_type = #tpu.core_type<tc>, window_params = [{transform_indices = @transform_0, window_bounds = array<i64: 30, 896>}, {pipeline_mode = #tpu.pipeline_mode<synchronous>, transform_indices = @transform_1, window_bounds = array<i64: 896, 128>}, {pipeline_mode = #tpu.pipeline_mode<synchronous>, transform_indices = @transform_2, window_bounds = array<i64: 1, 128>}, {transform_indices = @transform_3, window_bounds = array<i64: 30, 128>}]} {
    %c0 = arith.constant 0 : index
    %c0_0 = arith.constant 0 : index
    %0 = vector.load %arg1[%c0, %c0_0] : memref<30x896xf32, #tpu.memory_space<vmem>>, vector<30x896xf32>
    %1 = arith.truncf %0 : vector<30x896xf32> to vector<30x896xbf16>
    %c0_1 = arith.constant 0 : index
    %c0_2 = arith.constant 0 : index
    %2 = vector.load %arg2[%c0_1, %c0_2] : memref<896x128xbf16, #tpu.memory_space<vmem>>, vector<896x128xbf16>
    %cst = arith.constant dense<0.000000e+00> : vector<30x128xf32>
    %3 = tpu.matmul %1, %2, %cst {dimension_numbers = #tpu.dot_dimension_numbers<[1], [0], [0], [1], [0, 0, 1, 1], [], []>} : vector<30x896xbf16>, vector<896x128xbf16>, vector<30x128xf32> -> vector<30x128xf32>
    %c0_3 = arith.constant 0 : index
    %c0_4 = arith.constant 0 : index
    %4 = vector.load %arg3[%c0_3, %c0_4] : memref<1x128xf32, #tpu.memory_space<vmem>>, vector<1x128xf32>
    %5 = vector.broadcast %4 : vector<1x128xf32> to vector<30x128xf32>
    %6 = arith.addf %3, %5 : vector<30x128xf32>
    %c0_5 = arith.constant 0 : index
    %c0_6 = arith.constant 0 : index
    %7 = vector.load %arg4[%c0_5, %c0_6] : memref<30x128xf32, #tpu.memory_space<vmem>>, vector<30x128xf32>
    tpu.vector_store %arg4[%c0_5, %c0_6], %6 {strides = array<i32>} : memref<30x128xf32, #tpu.memory_space<vmem>>, vector<30x128xf32>,
    return
  }
  func.func @transform_0(%arg0: i32) -> (i32, i32) {
    %c0_i32 = arith.constant 0 : i32
    %c0_i32_0 = arith.constant 0 : i32
    return %arg0, %c0_i32 : i32, i32
  }
  func.func @transform_1(%arg0: i32) -> (i32, i32) {
    %c0_i32 = arith.constant 0 : i32
    %c0_i32_0 = arith.constant 0 : i32
    %c0_i32_1 = arith.constant 0 : i32
    return %c0_i32, %c0_i32_0 : i32, i32
  }
  func.func @transform_2(%arg0: i32) -> (i32, i32) {
    %c0_i32 = arith.constant 0 : i32
    %c0_i32_0 = arith.constant 0 : i32
    %c0_i32_1 = arith.constant 0 : i32
    return %c0_i32, %c0_i32_0 : i32, i32
  }
  func.func @transform_3(%arg0: i32) -> (i32, i32) {
    %c0_i32 = arith.constant 0 : i32
    %c0_i32_0 = arith.constant 0 : i32
    return %arg0, %c0_i32 : i32, i32
  }
}

module attributes {stable_mosaic.version = 11 : i64} {
  func.func @_layernorm_kernel(%arg0: i32, %arg1: memref<30x128xf32, #tpu.memory_space<vmem>>, %arg2: memref<1x128xf32, #tpu.memory_space<vmem>>, %arg3: memref<1x128xf32, #tpu.memory_space<vmem>>, %arg4: memref<30x128xf32, #tpu.memory_space<vmem>>) attributes {dimension_semantics = [#tpu.dimension_semantics<parallel>], iteration_bounds = array<i64: 1>, scalar_prefetch = 0 : i64, scratch_operands = 0 : i64, tpu.core_type = #tpu.core_type<tc>, window_params = [{transform_indices = @transform_0, window_bounds = array<i64: 30, 128>}, {pipeline_mode = #tpu.pipeline_mode<synchronous>, transform_indices = @transform_1, window_bounds = array<i64: 1, 128>}, {pipeline_mode = #tpu.pipeline_mode<synchronous>, transform_indices = @transform_2, window_bounds = array<i64: 1, 128>}, {transform_indices = @transform_3, window_bounds = array<i64: 30, 128>}]} {
    %c0 = arith.constant 0 : index
    %c0_0 = arith.constant 0 : index
    %0 = vector.load %arg1[%c0, %c0_0] : memref<30x128xf32, #tpu.memory_space<vmem>>, vector<30x128xf32>
    %cst = arith.constant dense<0.000000e+00> : vector<30xf32>
    %1 = vector.multi_reduction <add>, %0, %cst [1] : vector<30x128xf32> to vector<30xf32>
    %2 = vector.shape_cast %1 : vector<30xf32> to vector<30x1xf32>
    %cst_1 = arith.constant 1.280000e+02 : f32
    %3 = vector.broadcast %cst_1 : f32 to vector<30x1xf32>
    %4 = arith.divf %2, %3 : vector<30x1xf32>
    %5 = vector.broadcast %4 : vector<30x1xf32> to vector<30x128xf32>
    %6 = arith.subf %0, %5 : vector<30x128xf32>
    %7 = arith.mulf %6, %6 : vector<30x128xf32>
    %cst_2 = arith.constant dense<0.000000e+00> : vector<30xf32>
    %8 = vector.multi_reduction <add>, %7, %cst_2 [1] : vector<30x128xf32> to vector<30xf32>
    %9 = vector.shape_cast %8 : vector<30xf32> to vector<30x1xf32>
    %cst_3 = arith.constant 1.280000e+02 : f32
    %10 = vector.broadcast %cst_3 : f32 to vector<30x1xf32>
    %11 = arith.divf %9, %10 : vector<30x1xf32>
    %12 = vector.broadcast %4 : vector<30x1xf32> to vector<30x128xf32>
    %13 = arith.subf %0, %12 : vector<30x128xf32>
    %cst_4 = arith.constant 9.99999974E-6 : f32
    %14 = vector.broadcast %cst_4 : f32 to vector<30x1xf32>
    %15 = arith.addf %11, %14 : vector<30x1xf32>
    %16 = math.rsqrt %15 : vector<30x1xf32>
    %17 = vector.broadcast %16 : vector<30x1xf32> to vector<30x128xf32>
    %18 = arith.mulf %13, %17 : vector<30x128xf32>
    %c0_5 = arith.constant 0 : index
    %c0_6 = arith.constant 0 : index
    %19 = vector.load %arg2[%c0_5, %c0_6] : memref<1x128xf32, #tpu.memory_space<vmem>>, vector<1x128xf32>
    %20 = vector.broadcast %19 : vector<1x128xf32> to vector<30x128xf32>
    %21 = arith.mulf %18, %20 : vector<30x128xf32>
    %c0_7 = arith.constant 0 : index
    %c0_8 = arith.constant 0 : index
    %22 = vector.load %arg3[%c0_7, %c0_8] : memref<1x128xf32, #tpu.memory_space<vmem>>, vector<1x128xf32>
    %23 = vector.broadcast %22 : vector<1x128xf32> to vector<30x128xf32>
    %24 = arith.addf %21, %23 : vector<30x128xf32>
    %c0_9 = arith.constant 0 : index
    %c0_10 = arith.constant 0 : index
    %25 = vector.load %arg4[%c0_9, %c0_10] : memref<30x128xf32, #tpu.memory_space<vmem>>, vector<30x128xf32>
    tpu.vector_store %arg4[%c0_9, %c0_10], %24 {strides = array<i32>} : memref<30x128xf32, #tpu.memory_space<vmem>>, vector<30x128xf32>,
    return
  }
  func.func @transform_0(%arg0: i32) -> (i32, i32) {
    %c0_i32 = arith.constant 0 : i32
    %c0_i32_0 = arith.constant 0 : i32
    return %arg0, %c0_i32 : i32, i32
  }
  func.func @transform_1(%arg0: i32) -> (i32, i32) {
    %c0_i32 = arith.constant 0 : i32
    %c0_i32_0 = arith.constant 0 : i32
    %c0_i32_1 = arith.constant 0 : i32
    return %c0_i32, %c0_i32_0 : i32, i32
  }
  func.func @transform_2(%arg0: i32) -> (i32, i32) {
    %c0_i32 = arith.constant 0 : i32
    %c0_i32_0 = arith.constant 0 : i32
    %c0_i32_1 = arith.constant 0 : i32
    return %c0_i32, %c0_i32_0 : i32, i32
  }
  func.func @transform_3(%arg0: i32) -> (i32, i32) {
    %c0_i32 = arith.constant 0 : i32
    %c0_i32_0 = arith.constant 0 : i32
    return %arg0, %c0_i32 : i32, i32
  }
}

module attributes {stable_mosaic.version = 11 : i64} {
  func.func @_matmul_bias_kernel(%arg0: i32, %arg1: memref<30x128xf32, #tpu.memory_space<vmem>>, %arg2: memref<128x256xbf16, #tpu.memory_space<vmem>>, %arg3: memref<1x256xf32, #tpu.memory_space<vmem>>, %arg4: memref<30x256xf32, #tpu.memory_space<vmem>>) attributes {dimension_semantics = [#tpu.dimension_semantics<parallel>], iteration_bounds = array<i64: 1>, scalar_prefetch = 0 : i64, scratch_operands = 0 : i64, tpu.core_type = #tpu.core_type<tc>, window_params = [{transform_indices = @transform_0, window_bounds = array<i64: 30, 128>}, {pipeline_mode = #tpu.pipeline_mode<synchronous>, transform_indices = @transform_1, window_bounds = array<i64: 128, 256>}, {pipeline_mode = #tpu.pipeline_mode<synchronous>, transform_indices = @transform_2, window_bounds = array<i64: 1, 256>}, {transform_indices = @transform_3, window_bounds = array<i64: 30, 256>}]} {
    %c0 = arith.constant 0 : index
    %c0_0 = arith.constant 0 : index
    %0 = vector.load %arg1[%c0, %c0_0] : memref<30x128xf32, #tpu.memory_space<vmem>>, vector<30x128xf32>
    %1 = arith.truncf %0 : vector<30x128xf32> to vector<30x128xbf16>
    %c0_1 = arith.constant 0 : index
    %c0_2 = arith.constant 0 : index
    %2 = vector.load %arg2[%c0_1, %c0_2] : memref<128x256xbf16, #tpu.memory_space<vmem>>, vector<128x256xbf16>
    %cst = arith.constant dense<0.000000e+00> : vector<30x256xf32>
    %3 = tpu.matmul %1, %2, %cst {dimension_numbers = #tpu.dot_dimension_numbers<[1], [0], [0], [1], [0, 0, 1, 1], [], []>} : vector<30x128xbf16>, vector<128x256xbf16>, vector<30x256xf32> -> vector<30x256xf32>
    %c0_3 = arith.constant 0 : index
    %c0_4 = arith.constant 0 : index
    %4 = vector.load %arg3[%c0_3, %c0_4] : memref<1x256xf32, #tpu.memory_space<vmem>>, vector<1x256xf32>
    %5 = vector.broadcast %4 : vector<1x256xf32> to vector<30x256xf32>
    %6 = arith.addf %3, %5 : vector<30x256xf32>
    %c0_5 = arith.constant 0 : index
    %c0_6 = arith.constant 0 : index
    %7 = vector.load %arg4[%c0_5, %c0_6] : memref<30x256xf32, #tpu.memory_space<vmem>>, vector<30x256xf32>
    tpu.vector_store %arg4[%c0_5, %c0_6], %6 {strides = array<i32>} : memref<30x256xf32, #tpu.memory_space<vmem>>, vector<30x256xf32>,
    return
  }
  func.func @transform_0(%arg0: i32) -> (i32, i32) {
    %c0_i32 = arith.constant 0 : i32
    %c0_i32_0 = arith.constant 0 : i32
    return %arg0, %c0_i32 : i32, i32
  }
  func.func @transform_1(%arg0: i32) -> (i32, i32) {
    %c0_i32 = arith.constant 0 : i32
    %c0_i32_0 = arith.constant 0 : i32
    %c0_i32_1 = arith.constant 0 : i32
    return %c0_i32, %c0_i32_0 : i32, i32
  }
  func.func @transform_2(%arg0: i32) -> (i32, i32) {
    %c0_i32 = arith.constant 0 : i32
    %c0_i32_0 = arith.constant 0 : i32
    %c0_i32_1 = arith.constant 0 : i32
    return %c0_i32, %c0_i32_0 : i32, i32
  }
  func.func @transform_3(%arg0: i32) -> (i32, i32) {
    %c0_i32 = arith.constant 0 : i32
    %c0_i32_0 = arith.constant 0 : i32
    return %arg0, %c0_i32 : i32, i32
  }
}

module attributes {stable_mosaic.version = 11 : i64} {
  func.func @_matmul_bias_kernel(%arg0: i32, %arg1: memref<30x256xf32, #tpu.memory_space<vmem>>, %arg2: memref<256x128xbf16, #tpu.memory_space<vmem>>, %arg3: memref<1x128xf32, #tpu.memory_space<vmem>>, %arg4: memref<30x128xf32, #tpu.memory_space<vmem>>) attributes {dimension_semantics = [#tpu.dimension_semantics<parallel>], iteration_bounds = array<i64: 1>, scalar_prefetch = 0 : i64, scratch_operands = 0 : i64, tpu.core_type = #tpu.core_type<tc>, window_params = [{transform_indices = @transform_0, window_bounds = array<i64: 30, 256>}, {pipeline_mode = #tpu.pipeline_mode<synchronous>, transform_indices = @transform_1, window_bounds = array<i64: 256, 128>}, {pipeline_mode = #tpu.pipeline_mode<synchronous>, transform_indices = @transform_2, window_bounds = array<i64: 1, 128>}, {transform_indices = @transform_3, window_bounds = array<i64: 30, 128>}]} {
    %c0 = arith.constant 0 : index
    %c0_0 = arith.constant 0 : index
    %0 = vector.load %arg1[%c0, %c0_0] : memref<30x256xf32, #tpu.memory_space<vmem>>, vector<30x256xf32>
    %1 = arith.truncf %0 : vector<30x256xf32> to vector<30x256xbf16>
    %c0_1 = arith.constant 0 : index
    %c0_2 = arith.constant 0 : index
    %2 = vector.load %arg2[%c0_1, %c0_2] : memref<256x128xbf16, #tpu.memory_space<vmem>>, vector<256x128xbf16>
    %cst = arith.constant dense<0.000000e+00> : vector<30x128xf32>
    %3 = tpu.matmul %1, %2, %cst {dimension_numbers = #tpu.dot_dimension_numbers<[1], [0], [0], [1], [0, 0, 1, 1], [], []>} : vector<30x256xbf16>, vector<256x128xbf16>, vector<30x128xf32> -> vector<30x128xf32>
    %c0_3 = arith.constant 0 : index
    %c0_4 = arith.constant 0 : index
    %4 = vector.load %arg3[%c0_3, %c0_4] : memref<1x128xf32, #tpu.memory_space<vmem>>, vector<1x128xf32>
    %5 = vector.broadcast %4 : vector<1x128xf32> to vector<30x128xf32>
    %6 = arith.addf %3, %5 : vector<30x128xf32>
    %c0_5 = arith.constant 0 : index
    %c0_6 = arith.constant 0 : index
    %7 = vector.load %arg4[%c0_5, %c0_6] : memref<30x128xf32, #tpu.memory_space<vmem>>, vector<30x128xf32>
    tpu.vector_store %arg4[%c0_5, %c0_6], %6 {strides = array<i32>} : memref<30x128xf32, #tpu.memory_space<vmem>>, vector<30x128xf32>,
    return
  }
  func.func @transform_0(%arg0: i32) -> (i32, i32) {
    %c0_i32 = arith.constant 0 : i32
    %c0_i32_0 = arith.constant 0 : i32
    return %arg0, %c0_i32 : i32, i32
  }
  func.func @transform_1(%arg0: i32) -> (i32, i32) {
    %c0_i32 = arith.constant 0 : i32
    %c0_i32_0 = arith.constant 0 : i32
    %c0_i32_1 = arith.constant 0 : i32
    return %c0_i32, %c0_i32_0 : i32, i32
  }
  func.func @transform_2(%arg0: i32) -> (i32, i32) {
    %c0_i32 = arith.constant 0 : i32
    %c0_i32_0 = arith.constant 0 : i32
    %c0_i32_1 = arith.constant 0 : i32
    return %c0_i32, %c0_i32_0 : i32, i32
  }
  func.func @transform_3(%arg0: i32) -> (i32, i32) {
    %c0_i32 = arith.constant 0 : i32
    %c0_i32_0 = arith.constant 0 : i32
    return %arg0, %c0_i32 : i32, i32
  }
}

module attributes {stable_mosaic.version = 11 : i64} {
  func.func @_matmul_bias_kernel(%arg0: i32, %arg1: memref<30x128xf32, #tpu.memory_space<vmem>>, %arg2: memref<128x384xbf16, #tpu.memory_space<vmem>>, %arg3: memref<1x384xf32, #tpu.memory_space<vmem>>, %arg4: memref<30x384xf32, #tpu.memory_space<vmem>>) attributes {dimension_semantics = [#tpu.dimension_semantics<parallel>], iteration_bounds = array<i64: 1>, scalar_prefetch = 0 : i64, scratch_operands = 0 : i64, tpu.core_type = #tpu.core_type<tc>, window_params = [{transform_indices = @transform_0, window_bounds = array<i64: 30, 128>}, {pipeline_mode = #tpu.pipeline_mode<synchronous>, transform_indices = @transform_1, window_bounds = array<i64: 128, 384>}, {pipeline_mode = #tpu.pipeline_mode<synchronous>, transform_indices = @transform_2, window_bounds = array<i64: 1, 384>}, {transform_indices = @transform_3, window_bounds = array<i64: 30, 384>}]} {
    %c0 = arith.constant 0 : index
    %c0_0 = arith.constant 0 : index
    %0 = vector.load %arg1[%c0, %c0_0] : memref<30x128xf32, #tpu.memory_space<vmem>>, vector<30x128xf32>
    %1 = arith.truncf %0 : vector<30x128xf32> to vector<30x128xbf16>
    %c0_1 = arith.constant 0 : index
    %c0_2 = arith.constant 0 : index
    %2 = vector.load %arg2[%c0_1, %c0_2] : memref<128x384xbf16, #tpu.memory_space<vmem>>, vector<128x384xbf16>
    %cst = arith.constant dense<0.000000e+00> : vector<30x384xf32>
    %3 = tpu.matmul %1, %2, %cst {dimension_numbers = #tpu.dot_dimension_numbers<[1], [0], [0], [1], [0, 0, 1, 1], [], []>} : vector<30x128xbf16>, vector<128x384xbf16>, vector<30x384xf32> -> vector<30x384xf32>
    %c0_3 = arith.constant 0 : index
    %c0_4 = arith.constant 0 : index
    %4 = vector.load %arg3[%c0_3, %c0_4] : memref<1x384xf32, #tpu.memory_space<vmem>>, vector<1x384xf32>
    %5 = vector.broadcast %4 : vector<1x384xf32> to vector<30x384xf32>
    %6 = arith.addf %3, %5 : vector<30x384xf32>
    %c0_5 = arith.constant 0 : index
    %c0_6 = arith.constant 0 : index
    %7 = vector.load %arg4[%c0_5, %c0_6] : memref<30x384xf32, #tpu.memory_space<vmem>>, vector<30x384xf32>
    tpu.vector_store %arg4[%c0_5, %c0_6], %6 {strides = array<i32>} : memref<30x384xf32, #tpu.memory_space<vmem>>, vector<30x384xf32>,
    return
  }
  func.func @transform_0(%arg0: i32) -> (i32, i32) {
    %c0_i32 = arith.constant 0 : i32
    %c0_i32_0 = arith.constant 0 : i32
    return %arg0, %c0_i32 : i32, i32
  }
  func.func @transform_1(%arg0: i32) -> (i32, i32) {
    %c0_i32 = arith.constant 0 : i32
    %c0_i32_0 = arith.constant 0 : i32
    %c0_i32_1 = arith.constant 0 : i32
    return %c0_i32, %c0_i32_0 : i32, i32
  }
  func.func @transform_2(%arg0: i32) -> (i32, i32) {
    %c0_i32 = arith.constant 0 : i32
    %c0_i32_0 = arith.constant 0 : i32
    %c0_i32_1 = arith.constant 0 : i32
    return %c0_i32, %c0_i32_0 : i32, i32
  }
  func.func @transform_3(%arg0: i32) -> (i32, i32) {
    %c0_i32 = arith.constant 0 : i32
    %c0_i32_0 = arith.constant 0 : i32
    return %arg0, %c0_i32 : i32, i32
  }
}

module attributes {stable_mosaic.version = 11 : i64} {
  func.func @_matmul_bias_kernel(%arg0: i32, %arg1: memref<15x128xf32, #tpu.memory_space<vmem>>, %arg2: memref<128x128xbf16, #tpu.memory_space<vmem>>, %arg3: memref<1x128xf32, #tpu.memory_space<vmem>>, %arg4: memref<15x128xf32, #tpu.memory_space<vmem>>) attributes {dimension_semantics = [#tpu.dimension_semantics<parallel>], iteration_bounds = array<i64: 1>, scalar_prefetch = 0 : i64, scratch_operands = 0 : i64, tpu.core_type = #tpu.core_type<tc>, window_params = [{transform_indices = @transform_0, window_bounds = array<i64: 15, 128>}, {pipeline_mode = #tpu.pipeline_mode<synchronous>, transform_indices = @transform_1, window_bounds = array<i64: 128, 128>}, {pipeline_mode = #tpu.pipeline_mode<synchronous>, transform_indices = @transform_2, window_bounds = array<i64: 1, 128>}, {transform_indices = @transform_3, window_bounds = array<i64: 15, 128>}]} {
    %c0 = arith.constant 0 : index
    %c0_0 = arith.constant 0 : index
    %0 = vector.load %arg1[%c0, %c0_0] : memref<15x128xf32, #tpu.memory_space<vmem>>, vector<15x128xf32>
    %1 = arith.truncf %0 : vector<15x128xf32> to vector<15x128xbf16>
    %c0_1 = arith.constant 0 : index
    %c0_2 = arith.constant 0 : index
    %2 = vector.load %arg2[%c0_1, %c0_2] : memref<128x128xbf16, #tpu.memory_space<vmem>>, vector<128x128xbf16>
    %cst = arith.constant dense<0.000000e+00> : vector<15x128xf32>
    %3 = tpu.matmul %1, %2, %cst {dimension_numbers = #tpu.dot_dimension_numbers<[1], [0], [0], [1], [0, 0, 1, 1], [], []>} : vector<15x128xbf16>, vector<128x128xbf16>, vector<15x128xf32> -> vector<15x128xf32>
    %c0_3 = arith.constant 0 : index
    %c0_4 = arith.constant 0 : index
    %4 = vector.load %arg3[%c0_3, %c0_4] : memref<1x128xf32, #tpu.memory_space<vmem>>, vector<1x128xf32>
    %5 = vector.broadcast %4 : vector<1x128xf32> to vector<15x128xf32>
    %6 = arith.addf %3, %5 : vector<15x128xf32>
    %c0_5 = arith.constant 0 : index
    %c0_6 = arith.constant 0 : index
    %7 = vector.load %arg4[%c0_5, %c0_6] : memref<15x128xf32, #tpu.memory_space<vmem>>, vector<15x128xf32>
    tpu.vector_store %arg4[%c0_5, %c0_6], %6 {strides = array<i32>} : memref<15x128xf32, #tpu.memory_space<vmem>>, vector<15x128xf32>,
    return
  }
  func.func @transform_0(%arg0: i32) -> (i32, i32) {
    %c0_i32 = arith.constant 0 : i32
    %c0_i32_0 = arith.constant 0 : i32
    return %arg0, %c0_i32 : i32, i32
  }
  func.func @transform_1(%arg0: i32) -> (i32, i32) {
    %c0_i32 = arith.constant 0 : i32
    %c0_i32_0 = arith.constant 0 : i32
    %c0_i32_1 = arith.constant 0 : i32
    return %c0_i32, %c0_i32_0 : i32, i32
  }
  func.func @transform_2(%arg0: i32) -> (i32, i32) {
    %c0_i32 = arith.constant 0 : i32
    %c0_i32_0 = arith.constant 0 : i32
    %c0_i32_1 = arith.constant 0 : i32
    return %c0_i32, %c0_i32_0 : i32, i32
  }
  func.func @transform_3(%arg0: i32) -> (i32, i32) {
    %c0_i32 = arith.constant 0 : i32
    %c0_i32_0 = arith.constant 0 : i32
    return %arg0, %c0_i32 : i32, i32
  }
}

module attributes {stable_mosaic.version = 11 : i64} {
  func.func @_matmul_bias_kernel(%arg0: i32, %arg1: memref<30x128xf32, #tpu.memory_space<vmem>>, %arg2: memref<128x128xbf16, #tpu.memory_space<vmem>>, %arg3: memref<1x128xf32, #tpu.memory_space<vmem>>, %arg4: memref<30x128xf32, #tpu.memory_space<vmem>>) attributes {dimension_semantics = [#tpu.dimension_semantics<parallel>], iteration_bounds = array<i64: 1>, scalar_prefetch = 0 : i64, scratch_operands = 0 : i64, tpu.core_type = #tpu.core_type<tc>, window_params = [{transform_indices = @transform_0, window_bounds = array<i64: 30, 128>}, {pipeline_mode = #tpu.pipeline_mode<synchronous>, transform_indices = @transform_1, window_bounds = array<i64: 128, 128>}, {pipeline_mode = #tpu.pipeline_mode<synchronous>, transform_indices = @transform_2, window_bounds = array<i64: 1, 128>}, {transform_indices = @transform_3, window_bounds = array<i64: 30, 128>}]} {
    %c0 = arith.constant 0 : index
    %c0_0 = arith.constant 0 : index
    %0 = vector.load %arg1[%c0, %c0_0] : memref<30x128xf32, #tpu.memory_space<vmem>>, vector<30x128xf32>
    %1 = arith.truncf %0 : vector<30x128xf32> to vector<30x128xbf16>
    %c0_1 = arith.constant 0 : index
    %c0_2 = arith.constant 0 : index
    %2 = vector.load %arg2[%c0_1, %c0_2] : memref<128x128xbf16, #tpu.memory_space<vmem>>, vector<128x128xbf16>
    %cst = arith.constant dense<0.000000e+00> : vector<30x128xf32>
    %3 = tpu.matmul %1, %2, %cst {dimension_numbers = #tpu.dot_dimension_numbers<[1], [0], [0], [1], [0, 0, 1, 1], [], []>} : vector<30x128xbf16>, vector<128x128xbf16>, vector<30x128xf32> -> vector<30x128xf32>
    %c0_3 = arith.constant 0 : index
    %c0_4 = arith.constant 0 : index
    %4 = vector.load %arg3[%c0_3, %c0_4] : memref<1x128xf32, #tpu.memory_space<vmem>>, vector<1x128xf32>
    %5 = vector.broadcast %4 : vector<1x128xf32> to vector<30x128xf32>
    %6 = arith.addf %3, %5 : vector<30x128xf32>
    %c0_5 = arith.constant 0 : index
    %c0_6 = arith.constant 0 : index
    %7 = vector.load %arg4[%c0_5, %c0_6] : memref<30x128xf32, #tpu.memory_space<vmem>>, vector<30x128xf32>
    tpu.vector_store %arg4[%c0_5, %c0_6], %6 {strides = array<i32>} : memref<30x128xf32, #tpu.memory_space<vmem>>, vector<30x128xf32>,
    return
  }
  func.func @transform_0(%arg0: i32) -> (i32, i32) {
    %c0_i32 = arith.constant 0 : i32
    %c0_i32_0 = arith.constant 0 : i32
    return %arg0, %c0_i32 : i32, i32
  }
  func.func @transform_1(%arg0: i32) -> (i32, i32) {
    %c0_i32 = arith.constant 0 : i32
    %c0_i32_0 = arith.constant 0 : i32
    %c0_i32_1 = arith.constant 0 : i32
    return %c0_i32, %c0_i32_0 : i32, i32
  }
  func.func @transform_2(%arg0: i32) -> (i32, i32) {
    %c0_i32 = arith.constant 0 : i32
    %c0_i32_0 = arith.constant 0 : i32
    %c0_i32_1 = arith.constant 0 : i32
    return %c0_i32, %c0_i32_0 : i32, i32
  }
  func.func @transform_3(%arg0: i32) -> (i32, i32) {
    %c0_i32 = arith.constant 0 : i32
    %c0_i32_0 = arith.constant 0 : i32
    return %arg0, %c0_i32 : i32, i32
  }
}

module attributes {stable_mosaic.version = 11 : i64} {
  func.func @_rel_attn_kernel(%arg0: i32, %arg1: memref<1x15x384xf32, #tpu.memory_space<vmem>>, %arg2: memref<15x128xf32, #tpu.memory_space<vmem>>, %arg3: memref<1x128xf32, #tpu.memory_space<vmem>>, %arg4: memref<1x128xf32, #tpu.memory_space<vmem>>, %arg5: memref<1x1x15xf32, #tpu.memory_space<vmem>>, %arg6: memref<1x15x128xf32, #tpu.memory_space<vmem>>) attributes {dimension_semantics = [#tpu.dimension_semantics<parallel>], iteration_bounds = array<i64: 2>, scalar_prefetch = 0 : i64, scratch_operands = 0 : i64, tpu.core_type = #tpu.core_type<tc>, window_params = [{transform_indices = @transform_0, window_bounds = array<i64: 1, 15, 384>}, {pipeline_mode = #tpu.pipeline_mode<synchronous>, transform_indices = @transform_1, window_bounds = array<i64: 15, 128>}, {pipeline_mode = #tpu.pipeline_mode<synchronous>, transform_indices = @transform_2, window_bounds = array<i64: 1, 128>}, {pipeline_mode = #tpu.pipeline_mode<synchronous>, transform_indices = @transform_3, window_bounds = array<i64: 1, 128>}, {transform_indices = @transform_4, window_bounds = array<i64: 1, 1, 15>}, {transform_indices = @transform_5, window_bounds = array<i64: 1, 15, 128>}]} {
    %c0 = arith.constant 0 : index
    %c0_0 = arith.constant 0 : index
    %c0_1 = arith.constant 0 : index
    %0 = vector.load %arg1[%c0, %c0_0, %c0_1] : memref<1x15x384xf32, #tpu.memory_space<vmem>>, vector<1x15x384xf32>
    %1 = vector.shape_cast %0 : vector<1x15x384xf32> to vector<15x384xf32>
    %2 = vector.extract_strided_slice %1 {offsets = [0, 0], sizes = [15, 128], strides = [1, 1]} : vector<15x384xf32> to vector<15x128xf32>
    %3 = vector.extract_strided_slice %1 {offsets = [0, 128], sizes = [15, 128], strides = [1, 1]} : vector<15x384xf32> to vector<15x128xf32>
    %4 = vector.extract_strided_slice %1 {offsets = [0, 256], sizes = [15, 128], strides = [1, 1]} : vector<15x384xf32> to vector<15x128xf32>
    %c0_2 = arith.constant 0 : index
    %c0_3 = arith.constant 0 : index
    %5 = vector.load %arg2[%c0_2, %c0_3] : memref<15x128xf32, #tpu.memory_space<vmem>>, vector<15x128xf32>
    %c0_4 = arith.constant 0 : index
    %c0_5 = arith.constant 0 : index
    %6 = vector.load %arg3[%c0_4, %c0_5] : memref<1x128xf32, #tpu.memory_space<vmem>>, vector<1x128xf32>
    %7 = vector.broadcast %6 : vector<1x128xf32> to vector<15x128xf32>
    %8 = arith.addf %2, %7 : vector<15x128xf32>
    %c0_6 = arith.constant 0 : index
    %c0_7 = arith.constant 0 : index
    %9 = vector.load %arg4[%c0_6, %c0_7] : memref<1x128xf32, #tpu.memory_space<vmem>>, vector<1x128xf32>
    %10 = vector.broadcast %9 : vector<1x128xf32> to vector<15x128xf32>
    %11 = arith.addf %2, %10 : vector<15x128xf32>
    %c0_8 = arith.constant 0 : index
    %c0_9 = arith.constant 0 : index
    %c0_10 = arith.constant 0 : index
    %12 = vector.load %arg5[%c0_8, %c0_9, %c0_10] : memref<1x1x15xf32, #tpu.memory_space<vmem>>, vector<1x1x15xf32>
    %13 = vector.shape_cast %12 : vector<1x1x15xf32> to vector<1x15xf32>
    %14 = vector.extract_strided_slice %8 {offsets = [0, 0], sizes = [15, 32], strides = [1, 1]} : vector<15x128xf32> to vector<15x32xf32>
    %15 = vector.extract_strided_slice %11 {offsets = [0, 0], sizes = [15, 32], strides = [1, 1]} : vector<15x128xf32> to vector<15x32xf32>
    %16 = tpu.concatenate %14, %15 in 1 : vector<15x32xf32>, vector<15x32xf32> -> vector<15x64xf32>
    %17 = arith.truncf %16 : vector<15x64xf32> to vector<15x64xbf16>
    %18 = vector.extract_strided_slice %3 {offsets = [0, 0], sizes = [15, 32], strides = [1, 1]} : vector<15x128xf32> to vector<15x32xf32>
    %19 = vector.extract_strided_slice %5 {offsets = [0, 0], sizes = [15, 32], strides = [1, 1]} : vector<15x128xf32> to vector<15x32xf32>
    %20 = tpu.concatenate %18, %19 in 1 : vector<15x32xf32>, vector<15x32xf32> -> vector<15x64xf32>
    %21 = arith.truncf %20 : vector<15x64xf32> to vector<15x64xbf16>
    %cst = arith.constant dense<0.000000e+00> : vector<15x15xf32>
    %22 = tpu.matmul %17, %21, %cst {dimension_numbers = #tpu.dot_dimension_numbers<[1], [1], [0], [0], [0, 0, 1, 0], [], []>} : vector<15x64xbf16>, vector<15x64xbf16>, vector<15x15xf32> -> vector<15x15xf32>
    %cst_11 = arith.constant 0.176776692 : f32
    %23 = vector.broadcast %cst_11 : f32 to vector<15x15xf32>
    %24 = arith.mulf %22, %23 : vector<15x15xf32>
    %25 = vector.broadcast %13 : vector<1x15xf32> to vector<15x15xf32>
    %26 = arith.addf %24, %25 : vector<15x15xf32>
    %cst_12 = arith.constant dense<0xFF800000> : vector<15xf32>
    %27 = vector.multi_reduction <maximumf>, %26, %cst_12 [1] : vector<15x15xf32> to vector<15xf32>
    %28 = vector.shape_cast %27 : vector<15xf32> to vector<15x1xf32>
    %29 = vector.broadcast %28 : vector<15x1xf32> to vector<15x15xf32>
    %30 = arith.subf %26, %29 : vector<15x15xf32>
    %31 = math.exp %30 : vector<15x15xf32>
    %cst_13 = arith.constant dense<0.000000e+00> : vector<15xf32>
    %32 = vector.multi_reduction <add>, %31, %cst_13 [1] : vector<15x15xf32> to vector<15xf32>
    %33 = vector.shape_cast %32 : vector<15xf32> to vector<15x1xf32>
    %34 = tpu.reciprocal %33 {approx = true} : vector<15x1xf32> -> vector<15x1xf32>
    %35 = vector.broadcast %34 : vector<15x1xf32> to vector<15x15xf32>
    %36 = arith.mulf %31, %35 : vector<15x15xf32>
    %37 = arith.truncf %36 : vector<15x15xf32> to vector<15x15xbf16>
    %38 = vector.extract_strided_slice %4 {offsets = [0, 0], sizes = [15, 32], strides = [1, 1]} : vector<15x128xf32> to vector<15x32xf32>
    %39 = arith.truncf %38 : vector<15x32xf32> to vector<15x32xbf16>
    %cst_14 = arith.constant dense<0.000000e+00> : vector<15x32xf32>
    %40 = tpu.matmul %37, %39, %cst_14 {dimension_numbers = #tpu.dot_dimension_numbers<[1], [0], [0], [1], [0, 0, 1, 1], [], []>} : vector<15x15xbf16>, vector<15x32xbf16>, vector<15x32xf32> -> vector<15x32xf32>
    %41 = vector.extract_strided_slice %8 {offsets = [0, 32], sizes = [15, 32], strides = [1, 1]} : vector<15x128xf32> to vector<15x32xf32>
    %42 = vector.extract_strided_slice %11 {offsets = [0, 32], sizes = [15, 32], strides = [1, 1]} : vector<15x128xf32> to vector<15x32xf32>
    %43 = tpu.concatenate %41, %42 in 1 : vector<15x32xf32>, vector<15x32xf32> -> vector<15x64xf32>
    %44 = arith.truncf %43 : vector<15x64xf32> to vector<15x64xbf16>
    %45 = vector.extract_strided_slice %3 {offsets = [0, 32], sizes = [15, 32], strides = [1, 1]} : vector<15x128xf32> to vector<15x32xf32>
    %46 = vector.extract_strided_slice %5 {offsets = [0, 32], sizes = [15, 32], strides = [1, 1]} : vector<15x128xf32> to vector<15x32xf32>
    %47 = tpu.concatenate %45, %46 in 1 : vector<15x32xf32>, vector<15x32xf32> -> vector<15x64xf32>
    %48 = arith.truncf %47 : vector<15x64xf32> to vector<15x64xbf16>
    %cst_15 = arith.constant dense<0.000000e+00> : vector<15x15xf32>
    %49 = tpu.matmul %44, %48, %cst_15 {dimension_numbers = #tpu.dot_dimension_numbers<[1], [1], [0], [0], [0, 0, 1, 0], [], []>} : vector<15x64xbf16>, vector<15x64xbf16>, vector<15x15xf32> -> vector<15x15xf32>
    %cst_16 = arith.constant 0.176776692 : f32
    %50 = vector.broadcast %cst_16 : f32 to vector<15x15xf32>
    %51 = arith.mulf %49, %50 : vector<15x15xf32>
    %52 = vector.broadcast %13 : vector<1x15xf32> to vector<15x15xf32>
    %53 = arith.addf %51, %52 : vector<15x15xf32>
    %cst_17 = arith.constant dense<0xFF800000> : vector<15xf32>
    %54 = vector.multi_reduction <maximumf>, %53, %cst_17 [1] : vector<15x15xf32> to vector<15xf32>
    %55 = vector.shape_cast %54 : vector<15xf32> to vector<15x1xf32>
    %56 = vector.broadcast %55 : vector<15x1xf32> to vector<15x15xf32>
    %57 = arith.subf %53, %56 : vector<15x15xf32>
    %58 = math.exp %57 : vector<15x15xf32>
    %cst_18 = arith.constant dense<0.000000e+00> : vector<15xf32>
    %59 = vector.multi_reduction <add>, %58, %cst_18 [1] : vector<15x15xf32> to vector<15xf32>
    %60 = vector.shape_cast %59 : vector<15xf32> to vector<15x1xf32>
    %61 = tpu.reciprocal %60 {approx = true} : vector<15x1xf32> -> vector<15x1xf32>
    %62 = vector.broadcast %61 : vector<15x1xf32> to vector<15x15xf32>
    %63 = arith.mulf %58, %62 : vector<15x15xf32>
    %64 = arith.truncf %63 : vector<15x15xf32> to vector<15x15xbf16>
    %65 = vector.extract_strided_slice %4 {offsets = [0, 32], sizes = [15, 32], strides = [1, 1]} : vector<15x128xf32> to vector<15x32xf32>
    %66 = arith.truncf %65 : vector<15x32xf32> to vector<15x32xbf16>
    %cst_19 = arith.constant dense<0.000000e+00> : vector<15x32xf32>
    %67 = tpu.matmul %64, %66, %cst_19 {dimension_numbers = #tpu.dot_dimension_numbers<[1], [0], [0], [1], [0, 0, 1, 1], [], []>} : vector<15x15xbf16>, vector<15x32xbf16>, vector<15x32xf32> -> vector<15x32xf32>
    %68 = vector.extract_strided_slice %8 {offsets = [0, 64], sizes = [15, 32], strides = [1, 1]} : vector<15x128xf32> to vector<15x32xf32>
    %69 = vector.extract_strided_slice %11 {offsets = [0, 64], sizes = [15, 32], strides = [1, 1]} : vector<15x128xf32> to vector<15x32xf32>
    %70 = tpu.concatenate %68, %69 in 1 : vector<15x32xf32>, vector<15x32xf32> -> vector<15x64xf32>
    %71 = arith.truncf %70 : vector<15x64xf32> to vector<15x64xbf16>
    %72 = vector.extract_strided_slice %3 {offsets = [0, 64], sizes = [15, 32], strides = [1, 1]} : vector<15x128xf32> to vector<15x32xf32>
    %73 = vector.extract_strided_slice %5 {offsets = [0, 64], sizes = [15, 32], strides = [1, 1]} : vector<15x128xf32> to vector<15x32xf32>
    %74 = tpu.concatenate %72, %73 in 1 : vector<15x32xf32>, vector<15x32xf32> -> vector<15x64xf32>
    %75 = arith.truncf %74 : vector<15x64xf32> to vector<15x64xbf16>
    %cst_20 = arith.constant dense<0.000000e+00> : vector<15x15xf32>
    %76 = tpu.matmul %71, %75, %cst_20 {dimension_numbers = #tpu.dot_dimension_numbers<[1], [1], [0], [0], [0, 0, 1, 0], [], []>} : vector<15x64xbf16>, vector<15x64xbf16>, vector<15x15xf32> -> vector<15x15xf32>
    %cst_21 = arith.constant 0.176776692 : f32
    %77 = vector.broadcast %cst_21 : f32 to vector<15x15xf32>
    %78 = arith.mulf %76, %77 : vector<15x15xf32>
    %79 = vector.broadcast %13 : vector<1x15xf32> to vector<15x15xf32>
    %80 = arith.addf %78, %79 : vector<15x15xf32>
    %cst_22 = arith.constant dense<0xFF800000> : vector<15xf32>
    %81 = vector.multi_reduction <maximumf>, %80, %cst_22 [1] : vector<15x15xf32> to vector<15xf32>
    %82 = vector.shape_cast %81 : vector<15xf32> to vector<15x1xf32>
    %83 = vector.broadcast %82 : vector<15x1xf32> to vector<15x15xf32>
    %84 = arith.subf %80, %83 : vector<15x15xf32>
    %85 = math.exp %84 : vector<15x15xf32>
    %cst_23 = arith.constant dense<0.000000e+00> : vector<15xf32>
    %86 = vector.multi_reduction <add>, %85, %cst_23 [1] : vector<15x15xf32> to vector<15xf32>
    %87 = vector.shape_cast %86 : vector<15xf32> to vector<15x1xf32>
    %88 = tpu.reciprocal %87 {approx = true} : vector<15x1xf32> -> vector<15x1xf32>
    %89 = vector.broadcast %88 : vector<15x1xf32> to vector<15x15xf32>
    %90 = arith.mulf %85, %89 : vector<15x15xf32>
    %91 = arith.truncf %90 : vector<15x15xf32> to vector<15x15xbf16>
    %92 = vector.extract_strided_slice %4 {offsets = [0, 64], sizes = [15, 32], strides = [1, 1]} : vector<15x128xf32> to vector<15x32xf32>
    %93 = arith.truncf %92 : vector<15x32xf32> to vector<15x32xbf16>
    %cst_24 = arith.constant dense<0.000000e+00> : vector<15x32xf32>
    %94 = tpu.matmul %91, %93, %cst_24 {dimension_numbers = #tpu.dot_dimension_numbers<[1], [0], [0], [1], [0, 0, 1, 1], [], []>} : vector<15x15xbf16>, vector<15x32xbf16>, vector<15x32xf32> -> vector<15x32xf32>
    %95 = vector.extract_strided_slice %8 {offsets = [0, 96], sizes = [15, 32], strides = [1, 1]} : vector<15x128xf32> to vector<15x32xf32>
    %96 = vector.extract_strided_slice %11 {offsets = [0, 96], sizes = [15, 32], strides = [1, 1]} : vector<15x128xf32> to vector<15x32xf32>
    %97 = tpu.concatenate %95, %96 in 1 : vector<15x32xf32>, vector<15x32xf32> -> vector<15x64xf32>
    %98 = arith.truncf %97 : vector<15x64xf32> to vector<15x64xbf16>
    %99 = vector.extract_strided_slice %3 {offsets = [0, 96], sizes = [15, 32], strides = [1, 1]} : vector<15x128xf32> to vector<15x32xf32>
    %100 = vector.extract_strided_slice %5 {offsets = [0, 96], sizes = [15, 32], strides = [1, 1]} : vector<15x128xf32> to vector<15x32xf32>
    %101 = tpu.concatenate %99, %100 in 1 : vector<15x32xf32>, vector<15x32xf32> -> vector<15x64xf32>
    %102 = arith.truncf %101 : vector<15x64xf32> to vector<15x64xbf16>
    %cst_25 = arith.constant dense<0.000000e+00> : vector<15x15xf32>
    %103 = tpu.matmul %98, %102, %cst_25 {dimension_numbers = #tpu.dot_dimension_numbers<[1], [1], [0], [0], [0, 0, 1, 0], [], []>} : vector<15x64xbf16>, vector<15x64xbf16>, vector<15x15xf32> -> vector<15x15xf32>
    %cst_26 = arith.constant 0.176776692 : f32
    %104 = vector.broadcast %cst_26 : f32 to vector<15x15xf32>
    %105 = arith.mulf %103, %104 : vector<15x15xf32>
    %106 = vector.broadcast %13 : vector<1x15xf32> to vector<15x15xf32>
    %107 = arith.addf %105, %106 : vector<15x15xf32>
    %cst_27 = arith.constant dense<0xFF800000> : vector<15xf32>
    %108 = vector.multi_reduction <maximumf>, %107, %cst_27 [1] : vector<15x15xf32> to vector<15xf32>
    %109 = vector.shape_cast %108 : vector<15xf32> to vector<15x1xf32>
    %110 = vector.broadcast %109 : vector<15x1xf32> to vector<15x15xf32>
    %111 = arith.subf %107, %110 : vector<15x15xf32>
    %112 = math.exp %111 : vector<15x15xf32>
    %cst_28 = arith.constant dense<0.000000e+00> : vector<15xf32>
    %113 = vector.multi_reduction <add>, %112, %cst_28 [1] : vector<15x15xf32> to vector<15xf32>
    %114 = vector.shape_cast %113 : vector<15xf32> to vector<15x1xf32>
    %115 = tpu.reciprocal %114 {approx = true} : vector<15x1xf32> -> vector<15x1xf32>
    %116 = vector.broadcast %115 : vector<15x1xf32> to vector<15x15xf32>
    %117 = arith.mulf %112, %116 : vector<15x15xf32>
    %118 = arith.truncf %117 : vector<15x15xf32> to vector<15x15xbf16>
    %119 = vector.extract_strided_slice %4 {offsets = [0, 96], sizes = [15, 32], strides = [1, 1]} : vector<15x128xf32> to vector<15x32xf32>
    %120 = arith.truncf %119 : vector<15x32xf32> to vector<15x32xbf16>
    %cst_29 = arith.constant dense<0.000000e+00> : vector<15x32xf32>
    %121 = tpu.matmul %118, %120, %cst_29 {dimension_numbers = #tpu.dot_dimension_numbers<[1], [0], [0], [1], [0, 0, 1, 1], [], []>} : vector<15x15xbf16>, vector<15x32xbf16>, vector<15x32xf32> -> vector<15x32xf32>
    %122 = tpu.concatenate %40, %67, %94, %121 in 1 : vector<15x32xf32>, vector<15x32xf32>, vector<15x32xf32>, vector<15x32xf32> -> vector<15x128xf32>
    %c0_30 = arith.constant 0 : index
    %c0_31 = arith.constant 0 : index
    %c0_32 = arith.constant 0 : index
    %123 = vector.load %arg6[%c0_30, %c0_31, %c0_32] : memref<1x15x128xf32, #tpu.memory_space<vmem>>, vector<1x15x128xf32>
    %124 = vector.shape_cast %123 : vector<1x15x128xf32> to vector<15x128xf32>
    %125 = vector.shape_cast %122 : vector<15x128xf32> to vector<1x15x128xf32>
    tpu.vector_store %arg6[%c0_30, %c0_31, %c0_32], %125 {strides = array<i32>} : memref<1x15x128xf32, #tpu.memory_space<vmem>>, vector<1x15x128xf32>,
    return
  }
  func.func @transform_0(%arg0: i32) -> (i32, i32, i32) {
    %c0_i32 = arith.constant 0 : i32
    %c0_i32_0 = arith.constant 0 : i32
    %c0_i32_1 = arith.constant 0 : i32
    return %arg0, %c0_i32, %c0_i32_0 : i32, i32, i32
  }
  func.func @transform_1(%arg0: i32) -> (i32, i32) {
    %c0_i32 = arith.constant 0 : i32
    %c0_i32_0 = arith.constant 0 : i32
    %c0_i32_1 = arith.constant 0 : i32
    return %c0_i32, %c0_i32_0 : i32, i32
  }
  func.func @transform_2(%arg0: i32) -> (i32, i32) {
    %c0_i32 = arith.constant 0 : i32
    %c0_i32_0 = arith.constant 0 : i32
    %c0_i32_1 = arith.constant 0 : i32
    return %c0_i32, %c0_i32_0 : i32, i32
  }
  func.func @transform_3(%arg0: i32) -> (i32, i32) {
    %c0_i32 = arith.constant 0 : i32
    %c0_i32_0 = arith.constant 0 : i32
    %c0_i32_1 = arith.constant 0 : i32
    return %c0_i32, %c0_i32_0 : i32, i32
  }
  func.func @transform_4(%arg0: i32) -> (i32, i32, i32) {
    %c0_i32 = arith.constant 0 : i32
    %c0_i32_0 = arith.constant 0 : i32
    %c0_i32_1 = arith.constant 0 : i32
    return %arg0, %c0_i32, %c0_i32_0 : i32, i32, i32
  }
  func.func @transform_5(%arg0: i32) -> (i32, i32, i32) {
    %c0_i32 = arith.constant 0 : i32
    %c0_i32_0 = arith.constant 0 : i32
    %c0_i32_1 = arith.constant 0 : i32
    return %arg0, %c0_i32, %c0_i32_0 : i32, i32, i32
  }
}

module attributes {stable_mosaic.version = 11 : i64} {
  func.func @_dwconv_kernel(%arg0: i32, %arg1: memref<1x29x128xf32, #tpu.memory_space<vmem>>, %arg2: memref<15x128xf32, #tpu.memory_space<vmem>>, %arg3: memref<1x128xf32, #tpu.memory_space<vmem>>, %arg4: memref<1x15x128xf32, #tpu.memory_space<vmem>>) attributes {dimension_semantics = [#tpu.dimension_semantics<parallel>], iteration_bounds = array<i64: 2>, scalar_prefetch = 0 : i64, scratch_operands = 0 : i64, tpu.core_type = #tpu.core_type<tc>, window_params = [{transform_indices = @transform_0, window_bounds = array<i64: 1, 29, 128>}, {pipeline_mode = #tpu.pipeline_mode<synchronous>, transform_indices = @transform_1, window_bounds = array<i64: 15, 128>}, {pipeline_mode = #tpu.pipeline_mode<synchronous>, transform_indices = @transform_2, window_bounds = array<i64: 1, 128>}, {transform_indices = @transform_3, window_bounds = array<i64: 1, 15, 128>}]} {
    %c0 = arith.constant 0 : index
    %c0_0 = arith.constant 0 : index
    %c0_1 = arith.constant 0 : index
    %0 = vector.load %arg1[%c0, %c0_0, %c0_1] : memref<1x29x128xf32, #tpu.memory_space<vmem>>, vector<1x29x128xf32>
    %1 = vector.shape_cast %0 : vector<1x29x128xf32> to vector<29x128xf32>
    %c0_2 = arith.constant 0 : index
    %c0_3 = arith.constant 0 : index
    %2 = vector.load %arg2[%c0_2, %c0_3] : memref<15x128xf32, #tpu.memory_space<vmem>>, vector<15x128xf32>
    %3 = vector.extract_strided_slice %1 {offsets = [0, 0], sizes = [15, 128], strides = [1, 1]} : vector<29x128xf32> to vector<15x128xf32>
    %4 = vector.extract_strided_slice %2 {offsets = [0, 0], sizes = [1, 128], strides = [1, 1]} : vector<15x128xf32> to vector<1x128xf32>
    %5 = vector.shape_cast %4 : vector<1x128xf32> to vector<128xf32>
    %6 = vector.shape_cast %5 : vector<128xf32> to vector<1x128xf32>
    %7 = vector.broadcast %6 : vector<1x128xf32> to vector<15x128xf32>
    %8 = arith.mulf %3, %7 : vector<15x128xf32>
    %c0_4 = arith.constant 0 : index
    %c0_5 = arith.constant 0 : index
    %9 = vector.load %arg3[%c0_4, %c0_5] : memref<1x128xf32, #tpu.memory_space<vmem>>, vector<1x128xf32>
    %10 = vector.broadcast %9 : vector<1x128xf32> to vector<15x128xf32>
    %11 = arith.addf %8, %10 : vector<15x128xf32>
    %12 = vector.extract_strided_slice %1 {offsets = [1, 0], sizes = [15, 128], strides = [1, 1]} : vector<29x128xf32> to vector<15x128xf32>
    %13 = vector.extract_strided_slice %2 {offsets = [1, 0], sizes = [1, 128], strides = [1, 1]} : vector<15x128xf32> to vector<1x128xf32>
    %14 = vector.shape_cast %13 : vector<1x128xf32> to vector<128xf32>
    %15 = vector.shape_cast %14 : vector<128xf32> to vector<1x128xf32>
    %16 = vector.broadcast %15 : vector<1x128xf32> to vector<15x128xf32>
    %17 = arith.mulf %12, %16 : vector<15x128xf32>
    %18 = arith.addf %11, %17 : vector<15x128xf32>
    %19 = vector.extract_strided_slice %1 {offsets = [2, 0], sizes = [15, 128], strides = [1, 1]} : vector<29x128xf32> to vector<15x128xf32>
    %20 = vector.extract_strided_slice %2 {offsets = [2, 0], sizes = [1, 128], strides = [1, 1]} : vector<15x128xf32> to vector<1x128xf32>
    %21 = vector.shape_cast %20 : vector<1x128xf32> to vector<128xf32>
    %22 = vector.shape_cast %21 : vector<128xf32> to vector<1x128xf32>
    %23 = vector.broadcast %22 : vector<1x128xf32> to vector<15x128xf32>
    %24 = arith.mulf %19, %23 : vector<15x128xf32>
    %25 = arith.addf %18, %24 : vector<15x128xf32>
    %26 = vector.extract_strided_slice %1 {offsets = [3, 0], sizes = [15, 128], strides = [1, 1]} : vector<29x128xf32> to vector<15x128xf32>
    %27 = vector.extract_strided_slice %2 {offsets = [3, 0], sizes = [1, 128], strides = [1, 1]} : vector<15x128xf32> to vector<1x128xf32>
    %28 = vector.shape_cast %27 : vector<1x128xf32> to vector<128xf32>
    %29 = vector.shape_cast %28 : vector<128xf32> to vector<1x128xf32>
    %30 = vector.broadcast %29 : vector<1x128xf32> to vector<15x128xf32>
    %31 = arith.mulf %26, %30 : vector<15x128xf32>
    %32 = arith.addf %25, %31 : vector<15x128xf32>
    %33 = vector.extract_strided_slice %1 {offsets = [4, 0], sizes = [15, 128], strides = [1, 1]} : vector<29x128xf32> to vector<15x128xf32>
    %34 = vector.extract_strided_slice %2 {offsets = [4, 0], sizes = [1, 128], strides = [1, 1]} : vector<15x128xf32> to vector<1x128xf32>
    %35 = vector.shape_cast %34 : vector<1x128xf32> to vector<128xf32>
    %36 = vector.shape_cast %35 : vector<128xf32> to vector<1x128xf32>
    %37 = vector.broadcast %36 : vector<1x128xf32> to vector<15x128xf32>
    %38 = arith.mulf %33, %37 : vector<15x128xf32>
    %39 = arith.addf %32, %38 : vector<15x128xf32>
    %40 = vector.extract_strided_slice %1 {offsets = [5, 0], sizes = [15, 128], strides = [1, 1]} : vector<29x128xf32> to vector<15x128xf32>
    %41 = vector.extract_strided_slice %2 {offsets = [5, 0], sizes = [1, 128], strides = [1, 1]} : vector<15x128xf32> to vector<1x128xf32>
    %42 = vector.shape_cast %41 : vector<1x128xf32> to vector<128xf32>
    %43 = vector.shape_cast %42 : vector<128xf32> to vector<1x128xf32>
    %44 = vector.broadcast %43 : vector<1x128xf32> to vector<15x128xf32>
    %45 = arith.mulf %40, %44 : vector<15x128xf32>
    %46 = arith.addf %39, %45 : vector<15x128xf32>
    %47 = vector.extract_strided_slice %1 {offsets = [6, 0], sizes = [15, 128], strides = [1, 1]} : vector<29x128xf32> to vector<15x128xf32>
    %48 = vector.extract_strided_slice %2 {offsets = [6, 0], sizes = [1, 128], strides = [1, 1]} : vector<15x128xf32> to vector<1x128xf32>
    %49 = vector.shape_cast %48 : vector<1x128xf32> to vector<128xf32>
    %50 = vector.shape_cast %49 : vector<128xf32> to vector<1x128xf32>
    %51 = vector.broadcast %50 : vector<1x128xf32> to vector<15x128xf32>
    %52 = arith.mulf %47, %51 : vector<15x128xf32>
    %53 = arith.addf %46, %52 : vector<15x128xf32>
    %54 = vector.extract_strided_slice %1 {offsets = [7, 0], sizes = [15, 128], strides = [1, 1]} : vector<29x128xf32> to vector<15x128xf32>
    %55 = vector.extract_strided_slice %2 {offsets = [7, 0], sizes = [1, 128], strides = [1, 1]} : vector<15x128xf32> to vector<1x128xf32>
    %56 = vector.shape_cast %55 : vector<1x128xf32> to vector<128xf32>
    %57 = vector.shape_cast %56 : vector<128xf32> to vector<1x128xf32>
    %58 = vector.broadcast %57 : vector<1x128xf32> to vector<15x128xf32>
    %59 = arith.mulf %54, %58 : vector<15x128xf32>
    %60 = arith.addf %53, %59 : vector<15x128xf32>
    %61 = vector.extract_strided_slice %1 {offsets = [8, 0], sizes = [15, 128], strides = [1, 1]} : vector<29x128xf32> to vector<15x128xf32>
    %62 = vector.extract_strided_slice %2 {offsets = [8, 0], sizes = [1, 128], strides = [1, 1]} : vector<15x128xf32> to vector<1x128xf32>
    %63 = vector.shape_cast %62 : vector<1x128xf32> to vector<128xf32>
    %64 = vector.shape_cast %63 : vector<128xf32> to vector<1x128xf32>
    %65 = vector.broadcast %64 : vector<1x128xf32> to vector<15x128xf32>
    %66 = arith.mulf %61, %65 : vector<15x128xf32>
    %67 = arith.addf %60, %66 : vector<15x128xf32>
    %68 = vector.extract_strided_slice %1 {offsets = [9, 0], sizes = [15, 128], strides = [1, 1]} : vector<29x128xf32> to vector<15x128xf32>
    %69 = vector.extract_strided_slice %2 {offsets = [9, 0], sizes = [1, 128], strides = [1, 1]} : vector<15x128xf32> to vector<1x128xf32>
    %70 = vector.shape_cast %69 : vector<1x128xf32> to vector<128xf32>
    %71 = vector.shape_cast %70 : vector<128xf32> to vector<1x128xf32>
    %72 = vector.broadcast %71 : vector<1x128xf32> to vector<15x128xf32>
    %73 = arith.mulf %68, %72 : vector<15x128xf32>
    %74 = arith.addf %67, %73 : vector<15x128xf32>
    %75 = vector.extract_strided_slice %1 {offsets = [10, 0], sizes = [15, 128], strides = [1, 1]} : vector<29x128xf32> to vector<15x128xf32>
    %76 = vector.extract_strided_slice %2 {offsets = [10, 0], sizes = [1, 128], strides = [1, 1]} : vector<15x128xf32> to vector<1x128xf32>
    %77 = vector.shape_cast %76 : vector<1x128xf32> to vector<128xf32>
    %78 = vector.shape_cast %77 : vector<128xf32> to vector<1x128xf32>
    %79 = vector.broadcast %78 : vector<1x128xf32> to vector<15x128xf32>
    %80 = arith.mulf %75, %79 : vector<15x128xf32>
    %81 = arith.addf %74, %80 : vector<15x128xf32>
    %82 = vector.extract_strided_slice %1 {offsets = [11, 0], sizes = [15, 128], strides = [1, 1]} : vector<29x128xf32> to vector<15x128xf32>
    %83 = vector.extract_strided_slice %2 {offsets = [11, 0], sizes = [1, 128], strides = [1, 1]} : vector<15x128xf32> to vector<1x128xf32>
    %84 = vector.shape_cast %83 : vector<1x128xf32> to vector<128xf32>
    %85 = vector.shape_cast %84 : vector<128xf32> to vector<1x128xf32>
    %86 = vector.broadcast %85 : vector<1x128xf32> to vector<15x128xf32>
    %87 = arith.mulf %82, %86 : vector<15x128xf32>
    %88 = arith.addf %81, %87 : vector<15x128xf32>
    %89 = vector.extract_strided_slice %1 {offsets = [12, 0], sizes = [15, 128], strides = [1, 1]} : vector<29x128xf32> to vector<15x128xf32>
    %90 = vector.extract_strided_slice %2 {offsets = [12, 0], sizes = [1, 128], strides = [1, 1]} : vector<15x128xf32> to vector<1x128xf32>
    %91 = vector.shape_cast %90 : vector<1x128xf32> to vector<128xf32>
    %92 = vector.shape_cast %91 : vector<128xf32> to vector<1x128xf32>
    %93 = vector.broadcast %92 : vector<1x128xf32> to vector<15x128xf32>
    %94 = arith.mulf %89, %93 : vector<15x128xf32>
    %95 = arith.addf %88, %94 : vector<15x128xf32>
    %96 = vector.extract_strided_slice %1 {offsets = [13, 0], sizes = [15, 128], strides = [1, 1]} : vector<29x128xf32> to vector<15x128xf32>
    %97 = vector.extract_strided_slice %2 {offsets = [13, 0], sizes = [1, 128], strides = [1, 1]} : vector<15x128xf32> to vector<1x128xf32>
    %98 = vector.shape_cast %97 : vector<1x128xf32> to vector<128xf32>
    %99 = vector.shape_cast %98 : vector<128xf32> to vector<1x128xf32>
    %100 = vector.broadcast %99 : vector<1x128xf32> to vector<15x128xf32>
    %101 = arith.mulf %96, %100 : vector<15x128xf32>
    %102 = arith.addf %95, %101 : vector<15x128xf32>
    %103 = vector.extract_strided_slice %1 {offsets = [14, 0], sizes = [15, 128], strides = [1, 1]} : vector<29x128xf32> to vector<15x128xf32>
    %104 = vector.extract_strided_slice %2 {offsets = [14, 0], sizes = [1, 128], strides = [1, 1]} : vector<15x128xf32> to vector<1x128xf32>
    %105 = vector.shape_cast %104 : vector<1x128xf32> to vector<128xf32>
    %106 = vector.shape_cast %105 : vector<128xf32> to vector<1x128xf32>
    %107 = vector.broadcast %106 : vector<1x128xf32> to vector<15x128xf32>
    %108 = arith.mulf %103, %107 : vector<15x128xf32>
    %109 = arith.addf %102, %108 : vector<15x128xf32>
    %c0_6 = arith.constant 0 : index
    %c0_7 = arith.constant 0 : index
    %c0_8 = arith.constant 0 : index
    %110 = vector.load %arg4[%c0_6, %c0_7, %c0_8] : memref<1x15x128xf32, #tpu.memory_space<vmem>>, vector<1x15x128xf32>
    %111 = vector.shape_cast %110 : vector<1x15x128xf32> to vector<15x128xf32>
    %112 = vector.shape_cast %109 : vector<15x128xf32> to vector<1x15x128xf32>
    tpu.vector_store %arg4[%c0_6, %c0_7, %c0_8], %112 {strides = array<i32>} : memref<1x15x128xf32, #tpu.memory_space<vmem>>, vector<1x15x128xf32>,
    return
  }
  func.func @transform_0(%arg0: i32) -> (i32, i32, i32) {
    %c0_i32 = arith.constant 0 : i32
    %c0_i32_0 = arith.constant 0 : i32
    %c0_i32_1 = arith.constant 0 : i32
    return %arg0, %c0_i32, %c0_i32_0 : i32, i32, i32
  }
  func.func @transform_1(%arg0: i32) -> (i32, i32) {
    %c0_i32 = arith.constant 0 : i32
    %c0_i32_0 = arith.constant 0 : i32
    %c0_i32_1 = arith.constant 0 : i32
    return %c0_i32, %c0_i32_0 : i32, i32
  }
  func.func @transform_2(%arg0: i32) -> (i32, i32) {
    %c0_i32 = arith.constant 0 : i32
    %c0_i32_0 = arith.constant 0 : i32
    %c0_i32_1 = arith.constant 0 : i32
    return %c0_i32, %c0_i32_0 : i32, i32
  }
  func.func @transform_3(%arg0: i32) -> (i32, i32, i32) {
    %c0_i32 = arith.constant 0 : i32
    %c0_i32_0 = arith.constant 0 : i32
    %c0_i32_1 = arith.constant 0 : i32
    return %arg0, %c0_i32, %c0_i32_0 : i32, i32, i32
  }
}

module attributes {stable_mosaic.version = 11 : i64} {
  func.func @_matmul_bias_kernel(%arg0: i32, %arg1: memref<30x768xf32, #tpu.memory_space<vmem>>, %arg2: memref<768x128xbf16, #tpu.memory_space<vmem>>, %arg3: memref<1x128xf32, #tpu.memory_space<vmem>>, %arg4: memref<30x128xf32, #tpu.memory_space<vmem>>) attributes {dimension_semantics = [#tpu.dimension_semantics<parallel>], iteration_bounds = array<i64: 1>, scalar_prefetch = 0 : i64, scratch_operands = 0 : i64, tpu.core_type = #tpu.core_type<tc>, window_params = [{transform_indices = @transform_0, window_bounds = array<i64: 30, 768>}, {pipeline_mode = #tpu.pipeline_mode<synchronous>, transform_indices = @transform_1, window_bounds = array<i64: 768, 128>}, {pipeline_mode = #tpu.pipeline_mode<synchronous>, transform_indices = @transform_2, window_bounds = array<i64: 1, 128>}, {transform_indices = @transform_3, window_bounds = array<i64: 30, 128>}]} {
    %c0 = arith.constant 0 : index
    %c0_0 = arith.constant 0 : index
    %0 = vector.load %arg1[%c0, %c0_0] : memref<30x768xf32, #tpu.memory_space<vmem>>, vector<30x768xf32>
    %1 = arith.truncf %0 : vector<30x768xf32> to vector<30x768xbf16>
    %c0_1 = arith.constant 0 : index
    %c0_2 = arith.constant 0 : index
    %2 = vector.load %arg2[%c0_1, %c0_2] : memref<768x128xbf16, #tpu.memory_space<vmem>>, vector<768x128xbf16>
    %cst = arith.constant dense<0.000000e+00> : vector<30x128xf32>
    %3 = tpu.matmul %1, %2, %cst {dimension_numbers = #tpu.dot_dimension_numbers<[1], [0], [0], [1], [0, 0, 1, 1], [], []>} : vector<30x768xbf16>, vector<768x128xbf16>, vector<30x128xf32> -> vector<30x128xf32>
    %c0_3 = arith.constant 0 : index
    %c0_4 = arith.constant 0 : index
    %4 = vector.load %arg3[%c0_3, %c0_4] : memref<1x128xf32, #tpu.memory_space<vmem>>, vector<1x128xf32>
    %5 = vector.broadcast %4 : vector<1x128xf32> to vector<30x128xf32>
    %6 = arith.addf %3, %5 : vector<30x128xf32>
    %c0_5 = arith.constant 0 : index
    %c0_6 = arith.constant 0 : index
    %7 = vector.load %arg4[%c0_5, %c0_6] : memref<30x128xf32, #tpu.memory_space<vmem>>, vector<30x128xf32>
    tpu.vector_store %arg4[%c0_5, %c0_6], %6 {strides = array<i32>} : memref<30x128xf32, #tpu.memory_space<vmem>>, vector<30x128xf32>,
    return
  }
  func.func @transform_0(%arg0: i32) -> (i32, i32) {
    %c0_i32 = arith.constant 0 : i32
    %c0_i32_0 = arith.constant 0 : i32
    return %arg0, %c0_i32 : i32, i32
  }
  func.func @transform_1(%arg0: i32) -> (i32, i32) {
    %c0_i32 = arith.constant 0 : i32
    %c0_i32_0 = arith.constant 0 : i32
    %c0_i32_1 = arith.constant 0 : i32
    return %c0_i32, %c0_i32_0 : i32, i32
  }
  func.func @transform_2(%arg0: i32) -> (i32, i32) {
    %c0_i32 = arith.constant 0 : i32
    %c0_i32_0 = arith.constant 0 : i32
    %c0_i32_1 = arith.constant 0 : i32
    return %c0_i32, %c0_i32_0 : i32, i32
  }
  func.func @transform_3(%arg0: i32) -> (i32, i32) {
    %c0_i32 = arith.constant 0 : i32
    %c0_i32_0 = arith.constant 0 : i32
    return %arg0, %c0_i32 : i32, i32
  }
}

module attributes {stable_mosaic.version = 11 : i64} {
  func.func @_matmul_bias_kernel(%arg0: i32, %arg1: memref<2x512xf32, #tpu.memory_space<vmem>>, %arg2: memref<512x128xbf16, #tpu.memory_space<vmem>>, %arg3: memref<1x128xf32, #tpu.memory_space<vmem>>, %arg4: memref<2x128xf32, #tpu.memory_space<vmem>>) attributes {dimension_semantics = [#tpu.dimension_semantics<parallel>], iteration_bounds = array<i64: 1>, scalar_prefetch = 0 : i64, scratch_operands = 0 : i64, tpu.core_type = #tpu.core_type<tc>, window_params = [{transform_indices = @transform_0, window_bounds = array<i64: 2, 512>}, {pipeline_mode = #tpu.pipeline_mode<synchronous>, transform_indices = @transform_1, window_bounds = array<i64: 512, 128>}, {pipeline_mode = #tpu.pipeline_mode<synchronous>, transform_indices = @transform_2, window_bounds = array<i64: 1, 128>}, {transform_indices = @transform_3, window_bounds = array<i64: 2, 128>}]} {
    %c0 = arith.constant 0 : index
    %c0_0 = arith.constant 0 : index
    %0 = vector.load %arg1[%c0, %c0_0] : memref<2x512xf32, #tpu.memory_space<vmem>>, vector<2x512xf32>
    %1 = arith.truncf %0 : vector<2x512xf32> to vector<2x512xbf16>
    %c0_1 = arith.constant 0 : index
    %c0_2 = arith.constant 0 : index
    %2 = vector.load %arg2[%c0_1, %c0_2] : memref<512x128xbf16, #tpu.memory_space<vmem>>, vector<512x128xbf16>
    %cst = arith.constant dense<0.000000e+00> : vector<2x128xf32>
    %3 = tpu.matmul %1, %2, %cst {dimension_numbers = #tpu.dot_dimension_numbers<[1], [0], [0], [1], [0, 0, 1, 1], [], []>} : vector<2x512xbf16>, vector<512x128xbf16>, vector<2x128xf32> -> vector<2x128xf32>
    %c0_3 = arith.constant 0 : index
    %c0_4 = arith.constant 0 : index
    %4 = vector.load %arg3[%c0_3, %c0_4] : memref<1x128xf32, #tpu.memory_space<vmem>>, vector<1x128xf32>
    %5 = vector.broadcast %4 : vector<1x128xf32> to vector<2x128xf32>
    %6 = arith.addf %3, %5 : vector<2x128xf32>
    %c0_5 = arith.constant 0 : index
    %c0_6 = arith.constant 0 : index
    %7 = vector.load %arg4[%c0_5, %c0_6] : memref<2x128xf32, #tpu.memory_space<vmem>>, vector<2x128xf32>
    tpu.vector_store %arg4[%c0_5, %c0_6], %6 {strides = array<i32>} : memref<2x128xf32, #tpu.memory_space<vmem>>, vector<2x128xf32>,
    return
  }
  func.func @transform_0(%arg0: i32) -> (i32, i32) {
    %c0_i32 = arith.constant 0 : i32
    %c0_i32_0 = arith.constant 0 : i32
    return %arg0, %c0_i32 : i32, i32
  }
  func.func @transform_1(%arg0: i32) -> (i32, i32) {
    %c0_i32 = arith.constant 0 : i32
    %c0_i32_0 = arith.constant 0 : i32
    %c0_i32_1 = arith.constant 0 : i32
    return %c0_i32, %c0_i32_0 : i32, i32
  }
  func.func @transform_2(%arg0: i32) -> (i32, i32) {
    %c0_i32 = arith.constant 0 : i32
    %c0_i32_0 = arith.constant 0 : i32
    %c0_i32_1 = arith.constant 0 : i32
    return %c0_i32, %c0_i32_0 : i32, i32
  }
  func.func @transform_3(%arg0: i32) -> (i32, i32) {
    %c0_i32 = arith.constant 0 : i32
    %c0_i32_0 = arith.constant 0 : i32
    return %arg0, %c0_i32 : i32, i32
  }
}

</mosaic_0001>

<llo_original>
// kernel: conformer_forward.37
$region0: #{conformer_forward.37}
  #allocation0 [shape = 'u32[]', space=smem, size = 0x4, offset = 0x4, fixed_abs, tag = 'smem constant byte address 0x4 - core index']
  #allocation1 [shape = 'u32[72,128]{1,0:T(1,128)}', space=vmem, size = 0x9000, scoped, tag = 'internal scratch']
  %s0 = inlined_call_operand.vmem [shape: f32[210,9], index: 0, kind: input, shape index: {}]
  %s1 = inlined_call_operand.vmem [shape: bf16[9,128], index: 1, kind: input, shape index: {}]
  %s2 = inlined_call_operand.vmem [shape: f32[1,128], index: 2, kind: input, shape index: {}]
  %s3 = inlined_call_operand.vmem [shape: f32[210,128], index: 3, kind: output, shape index: {}]
  %s4 = sld [smem:[#allocation0]]
  $region22: #{conformer_forward.37} parent=0
    _
  %s6 = ssub.s32 1, %s4
  %s7 = scalar_select 0, %s6, %s4
  // Predicated region
  $region2: #{conformer_forward.37} parent=0 // pred_check
    _
  $region3: #{conformer_forward.37} parent=0 // pred_check_branch
    %9 = sbr.rel (0) target = $region5
  $region4: #{conformer_forward.37} parent=0 // pred_region
    _
  $region5: #{conformer_forward.37} parent=0 // pred_fallthru
    _
  // Predicated region
  $region6: #{conformer_forward.37} parent=0 // pred_check
    _
  $region7: #{conformer_forward.37} parent=0 // pred_check_branch
    %11 = sbr.rel (0) target = $region9
  $region8: #{conformer_forward.37} parent=0 // pred_region
    _
  $region9: #{conformer_forward.37} parent=0 // pred_fallthru
    _
  // Predicated region
  $region10: #{conformer_forward.37} parent=0 // pred_check
    _
  $region11: #{conformer_forward.37} parent=0 // pred_check_branch
    %13 = sbr.rel (0) target = $region13
  $region12: #{conformer_forward.37} parent=0 // pred_region
    _
  $region13: #{conformer_forward.37} parent=0 // pred_fallthru
    _
  %v15 = vld [vmem:[%s0] sm:$0xff]
  %v16 = vld [vmem:[%s0 + $0x8] sm:$0xff]
  %v17 = vld [vmem:[%s0 + $0x10] sm:$0xff]
  %v18 = vld [vmem:[%s0 + $0x18] sm:$0xff]
  %v19 = vld [vmem:[%s0 + $0x20] sm:$0xff]
  %v20 = vld [vmem:[%s0 + $0x28] sm:$0xff]
  %v21 = vld [vmem:[%s0 + $0x30] sm:$0xff]
  %v22 = vld [vmem:[%s0 + $0x38] sm:$0xff]
  %v23 = vld [vmem:[%s0 + $0x40] sm:$0xff]
  %v24 = vld [vmem:[%s0 + $0x48] sm:$0xff]
  %v25 = vld [vmem:[%s0 + $0x50] sm:$0xff]
  %v26 = vld [vmem:[%s0 + $0x58] sm:$0xff]
  %v27 = vld [vmem:[%s0 + $0x60] sm:$0xff]
  %v28 = vld [vmem:[%s0 + $0x68] sm:$0xff]
  %v29 = vld [vmem:[%s0 + $0x70] sm:$0xff]
  %v30 = vld [vmem:[%s0 + $0x78] sm:$0xff]
  %v31 = vld [vmem:[%s0 + $0x80] sm:$0xff]
  %v32 = vld [vmem:[%s0 + $0x88] sm:$0xff]
  %v33 = vld [vmem:[%s0 + $0x90] sm:$0xff]
  %v34 = vld [vmem:[%s0 + $0x98] sm:$0xff]
  %v35 = vld [vmem:[%s0 + $0xa0] sm:$0xff]
  %v36 = vld [vmem:[%s0 + $0xa8] sm:$0xff]
  %v37 = vld [vmem:[%s0 + $0xb0] sm:$0xff]
  %v38 = vld [vmem:[%s0 + $0xb8] sm:$0xff]
  %v39 = vld [vmem:[%s0 + $0xc0] sm:$0xff]
  %v40 = vld [vmem:[%s0 + $0xc8] sm:$0xff]
  %v41 = vld [vmem:[%s0 + $0xd0] sm:$0x3]
  %v42 = vpack.c.bf16 %v16, %v15
  %v43 = vpack.c.bf16 %v18, %v17
  %v44 = vpack.c.bf16 %v20, %v19
  %v45 = vpack.c.bf16 %v22, %v21
  %v46 = vpack.c.bf16 %v24, %v23
  %v47 = vpack.c.bf16 %v26, %v25
  %v48 = vpack.c.bf16 %v28, %v27
  %v49 = vpack.c.bf16 %v30, %v29
  %v50 = vpack.c.bf16 %v32, %v31
  %v51 = vpack.c.bf16 %v34, %v33
  %v52 = vpack.c.bf16 %v36, %v35
  %v53 = vpack.c.bf16 %v38, %v37
  %v54 = vpack.c.bf16 %v40, %v39
  %v55 = vpack.c.bf16 %v41, %v41
  %v56 = vld [vmem:[%s1] sm:$0xf]
  %v57 = vld [vmem:[%s1 + $0x4] sm:$0x1]
  %v58 = vld [vmem:[%s2] sm:$0x1]
  %v60 = vperm.slane %v58, 0
  %v64 = vunpack.c.l.b16 %v56
  %v65 = vunpack.c.l.b16 %v57
  %v66 = vpack.c.b16 %v65, %v64
  %vm67 = vcmask 72704
  %v69 = vsel %vm67, %v42, 0
  %v72 = vsel %vm67, %v43, 0
  %v75 = vsel %vm67, %v44, 0
  %v78 = vsel %vm67, %v45, 0
  %v81 = vsel %vm67, %v46, 0
  %v84 = vsel %vm67, %v47, 0
  %v87 = vsel %vm67, %v48, 0
  %v90 = vsel %vm67, %v49, 0
  %v93 = vsel %vm67, %v50, 0
  %v96 = vsel %vm67, %v51, 0
  %v99 = vsel %vm67, %v52, 0
  %v102 = vsel %vm67, %v53, 0
  %v105 = vsel %vm67, %v54, 0
  %v108 = vsel %vm67, %v55, 0
  %vm110 = vcmask 1043456
  %vm111 = vcmask 1044480
  %v112 = vsel %vm110, 4294967295, 65535
  %v113 = vsel %vm111, %v112, 0
  %v115 = vand.u32 %v66, %v113
  %117 = vmatpush.bf16.msra.mxu0 0
  %118 = vmatpush.bf16.msra.mxu0 0
  %119 = vmatpush.bf16.msra.mxu0 0
  %120 = vmatpush.bf16.msra.mxu0 0
  %121 = vmatpush.bf16.msra.mxu0 0
  %122 = vmatpush.bf16.msra.mxu0 0
  %123 = vmatpush.bf16.msra.mxu0 0
  %124 = vmatpush.bf16.msra.mxu0 %v115
  %125 = vmatmul.bf16.gmra.mxu0 %v69
  %v126 = vpop.f32.mrf.mxu0
  %v127 = vadd.f32 %v60, %v126
  %v128 = vpop.f32.mrf.mxu0
  %v129 = vadd.f32 %v60, %v128
  %130 = vmatmul.bf16.gmra.mxu0 %v72
  %v131 = vpop.f32.mrf.mxu0
  %v132 = vadd.f32 %v60, %v131
  %v133 = vpop.f32.mrf.mxu0
  %v134 = vadd.f32 %v60, %v133
  %135 = vmatmul.bf16.gmra.mxu0 %v75
  %v136 = vpop.f32.mrf.mxu0
  %v137 = vadd.f32 %v60, %v136
  %v138 = vpop.f32.mrf.mxu0
  %v139 = vadd.f32 %v60, %v138
  %140 = vmatmul.bf16.gmra.mxu0 %v78
  %v141 = vpop.f32.mrf.mxu0
  %v142 = vadd.f32 %v60, %v141
  %v143 = vpop.f32.mrf.mxu0
  %v144 = vadd.f32 %v60, %v143
  %145 = vmatmul.bf16.gmra.mxu0 %v81
  %v146 = vpop.f32.mrf.mxu0
  %v147 = vadd.f32 %v60, %v146
  %v148 = vpop.f32.mrf.mxu0
  %v149 = vadd.f32 %v60, %v148
  %150 = vmatmul.bf16.gmra.mxu0 %v84
  %v151 = vpop.f32.mrf.mxu0
  %v152 = vadd.f32 %v60, %v151
  %v153 = vpop.f32.mrf.mxu0
  %v154 = vadd.f32 %v60, %v153
  %155 = vmatmul.bf16.gmra.mxu0 %v87
  %v156 = vpop.f32.mrf.mxu0
  %v157 = vadd.f32 %v60, %v156
  %v158 = vpop.f32.mrf.mxu0
  %v159 = vadd.f32 %v60, %v158
  %160 = vmatmul.bf16.gmra.mxu0 %v90
  %v161 = vpop.f32.mrf.mxu0
  %v162 = vadd.f32 %v60, %v161
  %v163 = vpop.f32.mrf.mxu0
  %v164 = vadd.f32 %v60, %v163
  %165 = vmatmul.bf16.gmra.mxu0 %v93
  %v166 = vpop.f32.mrf.mxu0
  %v167 = vadd.f32 %v60, %v166
  %v168 = vpop.f32.mrf.mxu0
  %v169 = vadd.f32 %v60, %v168
  %170 = vmatmul.bf16.gmra.mxu0 %v96
  %v171 = vpop.f32.mrf.mxu0
  %v172 = vadd.f32 %v60, %v171
  %v173 = vpop.f32.mrf.mxu0
  %v174 = vadd.f32 %v60, %v173
  %175 = vmatmul.bf16.gmra.mxu0 %v99
  %v176 = vpop.f32.mrf.mxu0
  %v177 = vadd.f32 %v60, %v176
  %v178 = vpop.f32.mrf.mxu0
  %v179 = vadd.f32 %v60, %v178
  %180 = vmatmul.bf16.gmra.mxu0 %v102
  %v181 = vpop.f32.mrf.mxu0
  %v182 = vadd.f32 %v60, %v181
  %v183 = vpop.f32.mrf.mxu0
  %v184 = vadd.f32 %v60, %v183
  %185 = vmatmul.bf16.gmra.mxu0 %v105
  %v186 = vpop.f32.mrf.mxu0
  %v187 = vadd.f32 %v60, %v186
  %v188 = vpop.f32.mrf.mxu0
  %v189 = vadd.f32 %v60, %v188
  %190 = vmatmul.bf16.gmra.mxu0 %v108
  %v191 = vpop.f32.mrf.mxu0
  %v192 = vadd.f32 %v60, %v191
  %v193 = vpop.f32.mrf.mxu0
  %194 = vdwg.mxu0
  %195 = vst [vmem:[%s3] sm:$0xff] %v127
  %196 = vst [vmem:[%s3 + $0x8] sm:$0xff] %v129
  %197 = vst [vmem:[%s3 + $0x10] sm:$0xff] %v132
  %198 = vst [vmem:[%s3 + $0x18] sm:$0xff] %v134
  %199 = vst [vmem:[%s3 + $0x20] sm:$0xff] %v137
  %200 = vst [vmem:[%s3 + $0x28] sm:$0xff] %v139
  %201 = vst [vmem:[%s3 + $0x30] sm:$0xff] %v142
  %202 = vst [vmem:[%s3 + $0x38] sm:$0xff] %v144
  %203 = vst [vmem:[%s3 + $0x40] sm:$0xff] %v147
  %204 = vst [vmem:[%s3 + $0x48] sm:$0xff] %v149
  %205 = vst [vmem:[%s3 + $0x50] sm:$0xff] %v152
  %206 = vst [vmem:[%s3 + $0x58] sm:$0xff] %v154
  %207 = vst [vmem:[%s3 + $0x60] sm:$0xff] %v157
  %208 = vst [vmem:[%s3 + $0x68] sm:$0xff] %v159
  %209 = vst [vmem:[%s3 + $0x70] sm:$0xff] %v162
  %210 = vst [vmem:[%s3 + $0x78] sm:$0xff] %v164
  %211 = vst [vmem:[%s3 + $0x80] sm:$0xff] %v167
  %212 = vst [vmem:[%s3 + $0x88] sm:$0xff] %v169
  %213 = vst [vmem:[%s3 + $0x90] sm:$0xff] %v172
  %214 = vst [vmem:[%s3 + $0x98] sm:$0xff] %v174
  %215 = vst [vmem:[%s3 + $0xa0] sm:$0xff] %v177
  %216 = vst [vmem:[%s3 + $0xa8] sm:$0xff] %v179
  %217 = vst [vmem:[%s3 + $0xb0] sm:$0xff] %v182
  %218 = vst [vmem:[%s3 + $0xb8] sm:$0xff] %v184
  %219 = vst [vmem:[%s3 + $0xc0] sm:$0xff] %v187
  %220 = vst [vmem:[%s3 + $0xc8] sm:$0xff] %v189
  %221 = vst [vmem:[%s3 + $0xd0] sm:$0x3] %v192
  // Predicated region
  $region14: #{conformer_forward.37} parent=0 // pred_check
    _
  $region15: #{conformer_forward.37} parent=0 // pred_check_branch
    %223 = sbr.rel (0) target = $region17
  $region16: #{conformer_forward.37} parent=0 // pred_region
    _
  $region17: #{conformer_forward.37} parent=0 // pred_fallthru
    _
  // Predicated region
  $region18: #{conformer_forward.37} parent=0 // pred_check
    _
  $region19: #{conformer_forward.37} parent=0 // pred_check_branch
    %225 = sbr.rel (0) target = $region21
  $region20: #{conformer_forward.37} parent=0 // pred_region
    _
  $region21: #{conformer_forward.37} parent=0 // pred_fallthru
    _

// kernel: conformer_forward.39
$region0: #{conformer_forward.39}
  #allocation0 [shape = 'u32[]', space=smem, size = 0x4, offset = 0x4, fixed_abs, tag = 'smem constant byte address 0x4 - core index']
  #allocation1 [shape = 'u32[72,128]{1,0:T(1,128)}', space=vmem, size = 0x9000, scoped, tag = 'internal scratch']
  %s0 = inlined_call_operand.vmem [shape: f32[30,128], index: 0, kind: input, shape index: {}]
  %s1 = inlined_call_operand.vmem [shape: f32[1,128], index: 1, kind: input, shape index: {}]
  %s2 = inlined_call_operand.vmem [shape: f32[1,128], index: 2, kind: input, shape index: {}]
  %s3 = inlined_call_operand.vmem [shape: f32[30,128], index: 3, kind: output, shape index: {}]
  %s4 = sld [smem:[#allocation0]]
  $region22: #{conformer_forward.39} parent=0
    _
  %s6 = ssub.s32 1, %s4
  %s7 = scalar_select 0, %s6, %s4
  // Predicated region
  $region2: #{conformer_forward.39} parent=0 // pred_check
    _
  $region3: #{conformer_forward.39} parent=0 // pred_check_branch
    %9 = sbr.rel (0) target = $region5
  $region4: #{conformer_forward.39} parent=0 // pred_region
    _
  $region5: #{conformer_forward.39} parent=0 // pred_fallthru
    _
  // Predicated region
  $region6: #{conformer_forward.39} parent=0 // pred_check
    _
  $region7: #{conformer_forward.39} parent=0 // pred_check_branch
    %11 = sbr.rel (0) target = $region9
  $region8: #{conformer_forward.39} parent=0 // pred_region
    _
  $region9: #{conformer_forward.39} parent=0 // pred_fallthru
    _
  // Predicated region
  $region10: #{conformer_forward.39} parent=0 // pred_check
    _
  $region11: #{conformer_forward.39} parent=0 // pred_check_branch
    %13 = sbr.rel (0) target = $region13
  $region12: #{conformer_forward.39} parent=0 // pred_region
    _
  $region13: #{conformer_forward.39} parent=0 // pred_fallthru
    _
  %v14 = vld [vmem:[%s0] sm:$0xff]
  %v15 = vld [vmem:[%s0 + $0x8] sm:$0xff]
  %v16 = vld [vmem:[%s0 + $0x10] sm:$0xff]
  %v17 = vld [vmem:[%s0 + $0x18] sm:$0x3f]
  %18 = vadd.xlane.f32.xlu0 %v14
  %v19 = vpop.xlane.xlu0 %18
  %20 = vadd.xlane.f32.xlu0 %v15
  %v21 = vpop.xlane.xlu0 %20
  %22 = vadd.xlane.f32.xlu0 %v16
  %v23 = vpop.xlane.xlu0 %22
  %vm24 = vcmask 1045504
  %v25 = vsel %vm24, %v17, 0.0
  %26 = vadd.xlane.f32.xlu0 %v25
  %v27 = vpop.xlane.xlu0 %26
  %v28 = vrcp.pop 128.0
  %v29 = vmul.f32 128.0, %v28
  %v30 = vsub.f32 1.0, %v29
  %v31 = vmul.f32 %v28, %v30
  %v32 = vadd.f32 %v28, %v31
  %vm33 = vweird.f32 %v28
  %v34 = vsel %vm33, %v28, %v32
  %v35 = vmul.f32 %v19, %v34
  %v36 = vmul.f32 %v21, %v34
  %v37 = vmul.f32 %v23, %v34
  %v38 = vmul.f32 %v27, %v34
  %v39 = vsub.f32 %v14, %v35
  %v40 = vsub.f32 %v15, %v36
  %v41 = vsub.f32 %v16, %v37
  %v42 = vsub.f32 %v17, %v38
  %v43 = vmul.f32 %v39, %v39
  %v44 = vmul.f32 %v40, %v40
  %v45 = vmul.f32 %v41, %v41
  %v46 = vmul.f32 %v42, %v42
  %47 = vadd.xlane.f32.xlu0 %v43
  %v48 = vpop.xlane.xlu0 %47
  %49 = vadd.xlane.f32.xlu0 %v44
  %v50 = vpop.xlane.xlu0 %49
  %51 = vadd.xlane.f32.xlu0 %v45
  %v52 = vpop.xlane.xlu0 %51
  %v53 = vsel %vm24, %v46, 0.0
  %54 = vadd.xlane.f32.xlu0 %v53
  %v55 = vpop.xlane.xlu0 %54
  %v56 = vmul.f32 %v48, %v34
  %v57 = vmul.f32 %v50, %v34
  %v58 = vmul.f32 %v52, %v34
  %v59 = vmul.f32 %v55, %v34
  %v60 = vadd.f32 %v56, 1e-05
  %v61 = vadd.f32 %v57, 1e-05
  %v62 = vadd.f32 %v58, 1e-05
  %v63 = vadd.f32 %v59, 1e-05
  %v64 = vrsqrt.pop %v60
  %v65 = vmul.f32 %v64, %v60
  %v66 = vmul.f32 %v65, %v64
  %v67 = vmul.f32 0.5, %v66
  %v68 = vsub.f32 1.5, %v67
  %v69 = vmul.f32 %v64, %v68
  %vm70 = vweird.f32 %v60
  %vm71 = vweird.f32 %v64
  %vm72 = vmor %vm70, %vm71
  %v73 = vsel %vm72, %v64, %v69
  %v74 = vrsqrt.pop %v61
  %v75 = vmul.f32 %v74, %v61
  %v76 = vmul.f32 %v75, %v74
  %v77 = vmul.f32 0.5, %v76
  %v78 = vsub.f32 1.5, %v77
  %v79 = vmul.f32 %v74, %v78
  %vm80 = vweird.f32 %v61
  %vm81 = vweird.f32 %v74
  %vm82 = vmor %vm80, %vm81
  %v83 = vsel %vm82, %v74, %v79
  %v84 = vrsqrt.pop %v62
  %v85 = vmul.f32 %v84, %v62
  %v86 = vmul.f32 %v85, %v84
  %v87 = vmul.f32 0.5, %v86
  %v88 = vsub.f32 1.5, %v87
  %v89 = vmul.f32 %v84, %v88
  %vm90 = vweird.f32 %v62
  %vm91 = vweird.f32 %v84
  %vm92 = vmor %vm90, %vm91
  %v93 = vsel %vm92, %v84, %v89
  %v94 = vrsqrt.pop %v63
  %v95 = vmul.f32 %v94, %v63
  %v96 = vmul.f32 %v95, %v94
  %v97 = vmul.f32 0.5, %v96
  %v98 = vsub.f32 1.5, %v97
  %v99 = vmul.f32 %v94, %v98
  %vm100 = vweird.f32 %v63
  %vm101 = vweird.f32 %v94
  %vm102 = vmor %vm100, %vm101
  %v103 = vsel %vm102, %v94, %v99
  %v104 = vmul.f32 %v39, %v73
  %v105 = vmul.f32 %v40, %v83
  %v106 = vmul.f32 %v41, %v93
  %v107 = vmul.f32 %v42, %v103
  %v108 = vld [vmem:[%s1] sm:$0x1]
  %v110 = vperm.slane %v108, 0
  %v112 = vmul.f32 %v104, %v110
  %v113 = vmul.f32 %v105, %v110
  %v114 = vmul.f32 %v106, %v110
  %v115 = vmul.f32 %v107, %v110
  %v116 = vld [vmem:[%s2] sm:$0x1]
  %v118 = vperm.slane %v116, 0
  %v120 = vadd.f32 %v112, %v118
  %v121 = vadd.f32 %v113, %v118
  %v122 = vadd.f32 %v114, %v118
  %v123 = vadd.f32 %v115, %v118
  %124 = vst [vmem:[%s3] sm:$0xff] %v120
  %125 = vst [vmem:[%s3 + $0x8] sm:$0xff] %v121
  %126 = vst [vmem:[%s3 + $0x10] sm:$0xff] %v122
  %127 = vst [vmem:[%s3 + $0x18] sm:$0x3f] %v123
  // Predicated region
  $region14: #{conformer_forward.39} parent=0 // pred_check
    _
  $region15: #{conformer_forward.39} parent=0 // pred_check_branch
    %129 = sbr.rel (0) target = $region17
  $region16: #{conformer_forward.39} parent=0 // pred_region
    _
  $region17: #{conformer_forward.39} parent=0 // pred_fallthru
    _
  // Predicated region
  $region18: #{conformer_forward.39} parent=0 // pred_check
    _
  $region19: #{conformer_forward.39} parent=0 // pred_check_branch
    %131 = sbr.rel (0) target = $region21
  $region20: #{conformer_forward.39} parent=0 // pred_region
    _
  $region21: #{conformer_forward.39} parent=0 // pred_fallthru
    _

// kernel: conformer_forward.38
$region0: #{conformer_forward.38}
  #allocation0 [shape = 'u32[]', space=smem, size = 0x4, offset = 0x4, fixed_abs, tag = 'smem constant byte address 0x4 - core index']
  #allocation1 [shape = 'u32[72,128]{1,0:T(1,128)}', space=vmem, size = 0x9000, scoped, tag = 'internal scratch']
  %s0 = inlined_call_operand.vmem [shape: f32[30,896], index: 0, kind: input, shape index: {}]
  %s1 = inlined_call_operand.vmem [shape: bf16[896,128], index: 1, kind: input, shape index: {}]
  %s2 = inlined_call_operand.vmem [shape: f32[1,128], index: 2, kind: input, shape index: {}]
  %s3 = inlined_call_operand.vmem [shape: f32[30,128], index: 3, kind: output, shape index: {}]
  %s4 = sld [smem:[#allocation0]]
  $region22: #{conformer_forward.38} parent=0
    _
  %s6 = ssub.s32 1, %s4
  %s7 = scalar_select 0, %s6, %s4
  // Predicated region
  $region2: #{conformer_forward.38} parent=0 // pred_check
    _
  $region3: #{conformer_forward.38} parent=0 // pred_check_branch
    %9 = sbr.rel (0) target = $region5
  $region4: #{conformer_forward.38} parent=0 // pred_region
    _
  $region5: #{conformer_forward.38} parent=0 // pred_fallthru
    _
  // Predicated region
  $region6: #{conformer_forward.38} parent=0 // pred_check
    _
  $region7: #{conformer_forward.38} parent=0 // pred_check_branch
    %11 = sbr.rel (0) target = $region9
  $region8: #{conformer_forward.38} parent=0 // pred_region
    _
  $region9: #{conformer_forward.38} parent=0 // pred_fallthru
    _
  // Predicated region
  $region10: #{conformer_forward.38} parent=0 // pred_check
    _
  $region11: #{conformer_forward.38} parent=0 // pred_check_branch
    %13 = sbr.rel (0) target = $region13
  $region12: #{conformer_forward.38} parent=0 // pred_region
    _
  $region13: #{conformer_forward.38} parent=0 // pred_fallthru
    _
  %v14 = vld [vmem:[%s0] sm:$0xff]
  %v15 = vld [vmem:[%s0 + $0x8] sm:$0xff]
  %v16 = vld [vmem:[%s0 + $0x10] sm:$0xff]
  %v17 = vld [vmem:[%s0 + $0x18] sm:$0xff]
  %v18 = vld [vmem:[%s0 + $0x20] sm:$0xff]
  %v19 = vld [vmem:[%s0 + $0x28] sm:$0xff]
  %v20 = vld [vmem:[%s0 + $0x30] sm:$0xff]
  %v21 = vld [vmem:[%s0 + $0x38] sm:$0xff]
  %v22 = vld [vmem:[%s0 + $0x40] sm:$0xff]
  %v23 = vld [vmem:[%s0 + $0x48] sm:$0xff]
  %v24 = vld [vmem:[%s0 + $0x50] sm:$0xff]
  %v25 = vld [vmem:[%s0 + $0x58] sm:$0xff]
  %v26 = vld [vmem:[%s0 + $0x60] sm:$0xff]
  %v27 = vld [vmem:[%s0 + $0x68] sm:$0xff]
  %v28 = vld [vmem:[%s0 + $0x70] sm:$0xff]
  %v29 = vld [vmem:[%s0 + $0x78] sm:$0xff]
  %v30 = vld [vmem:[%s0 + $0x80] sm:$0xff]
  %v31 = vld [vmem:[%s0 + $0x88] sm:$0xff]
  %v32 = vld [vmem:[%s0 + $0x90] sm:$0xff]
  %v33 = vld [vmem:[%s0 + $0x98] sm:$0xff]
  %v34 = vld [vmem:[%s0 + $0xa0] sm:$0xff]
  %v35 = vld [vmem:[%s0 + $0xa8] sm:$0x3f]
  %v36 = vld [vmem:[%s0 + $0xb0] sm:$0x3f]
  %v37 = vld [vmem:[%s0 + $0xb8] sm:$0x3f]
  %v38 = vld [vmem:[%s0 + $0xc0] sm:$0x3f]
  %v39 = vld [vmem:[%s0 + $0xc8] sm:$0x3f]
  %v40 = vld [vmem:[%s0 + $0xd0] sm:$0x3f]
  %v41 = vld [vmem:[%s0 + $0xd8] sm:$0x3f]
  %v42 = vpack.c.bf16 %v21, %v14
  %v43 = vpack.c.bf16 %v22, %v15
  %v44 = vpack.c.bf16 %v23, %v16
  %v45 = vpack.c.bf16 %v24, %v17
  %v46 = vpack.c.bf16 %v25, %v18
  %v47 = vpack.c.bf16 %v26, %v19
  %v48 = vpack.c.bf16 %v27, %v20
  %v49 = vpack.c.bf16 %v35, %v28
  %v50 = vpack.c.bf16 %v36, %v29
  %v51 = vpack.c.bf16 %v37, %v30
  %v52 = vpack.c.bf16 %v38, %v31
  %v53 = vpack.c.bf16 %v39, %v32
  %v54 = vpack.c.bf16 %v40, %v33
  %v55 = vpack.c.bf16 %v41, %v34
  %v56 = vld [vmem:[%s1] sm:$0xf]
  %v57 = vld [vmem:[%s1 + $0x4] sm:$0xf]
  %v58 = vld [vmem:[%s1 + $0x8] sm:$0xf]
  %v59 = vld [vmem:[%s1 + $0xc] sm:$0xf]
  %v60 = vld [vmem:[%s1 + $0x10] sm:$0xf]
  %v61 = vld [vmem:[%s1 + $0x14] sm:$0xf]
  %v62 = vld [vmem:[%s1 + $0x18] sm:$0xf]
  %v63 = vld [vmem:[%s1 + $0x1c] sm:$0xf]
  %v64 = vld [vmem:[%s1 + $0x20] sm:$0xf]
  %v65 = vld [vmem:[%s1 + $0x24] sm:$0xf]
  %v66 = vld [vmem:[%s1 + $0x28] sm:$0xf]
  %v67 = vld [vmem:[%s1 + $0x2c] sm:$0xf]
  %v68 = vld [vmem:[%s1 + $0x30] sm:$0xf]
  %v69 = vld [vmem:[%s1 + $0x34] sm:$0xf]
  %v70 = vld [vmem:[%s1 + $0x38] sm:$0xf]
  %v71 = vld [vmem:[%s1 + $0x3c] sm:$0xf]
  %v72 = vld [vmem:[%s1 + $0x40] sm:$0xf]
  %v73 = vld [vmem:[%s1 + $0x44] sm:$0xf]
  %v74 = vld [vmem:[%s1 + $0x48] sm:$0xf]
  %v75 = vld [vmem:[%s1 + $0x4c] sm:$0xf]
  %v76 = vld [vmem:[%s1 + $0x50] sm:$0xf]
  %v77 = vld [vmem:[%s1 + $0x54] sm:$0xf]
  %v78 = vld [vmem:[%s1 + $0x58] sm:$0xf]
  %v79 = vld [vmem:[%s1 + $0x5c] sm:$0xf]
  %v80 = vld [vmem:[%s1 + $0x60] sm:$0xf]
  %v81 = vld [vmem:[%s1 + $0x64] sm:$0xf]
  %v82 = vld [vmem:[%s1 + $0x68] sm:$0xf]
  %v83 = vld [vmem:[%s1 + $0x6c] sm:$0xf]
  %v84 = vld [vmem:[%s1 + $0x70] sm:$0xf]
  %v85 = vld [vmem:[%s1 + $0x74] sm:$0xf]
  %v86 = vld [vmem:[%s1 + $0x78] sm:$0xf]
  %v87 = vld [vmem:[%s1 + $0x7c] sm:$0xf]
  %v88 = vld [vmem:[%s1 + $0x80] sm:$0xf]
  %v89 = vld [vmem:[%s1 + $0x84] sm:$0xf]
  %v90 = vld [vmem:[%s1 + $0x88] sm:$0xf]
  %v91 = vld [vmem:[%s1 + $0x8c] sm:$0xf]
  %v92 = vld [vmem:[%s1 + $0x90] sm:$0xf]
  %v93 = vld [vmem:[%s1 + $0x94] sm:$0xf]
  %v94 = vld [vmem:[%s1 + $0x98] sm:$0xf]
  %v95 = vld [vmem:[%s1 + $0x9c] sm:$0xf]
  %v96 = vld [vmem:[%s1 + $0xa0] sm:$0xf]
  %v97 = vld [vmem:[%s1 + $0xa4] sm:$0xf]
  %v98 = vld [vmem:[%s1 + $0xa8] sm:$0xf]
  %v99 = vld [vmem:[%s1 + $0xac] sm:$0xf]
  %v100 = vld [vmem:[%s1 + $0xb0] sm:$0xf]
  %v101 = vld [vmem:[%s1 + $0xb4] sm:$0xf]
  %v102 = vld [vmem:[%s1 + $0xb8] sm:$0xf]
  %v103 = vld [vmem:[%s1 + $0xbc] sm:$0xf]
  %v104 = vld [vmem:[%s1 + $0xc0] sm:$0xf]
  %v105 = vld [vmem:[%s1 + $0xc4] sm:$0xf]
  %v106 = vld [vmem:[%s1 + $0xc8] sm:$0xf]
  %v107 = vld [vmem:[%s1 + $0xcc] sm:$0xf]
  %v108 = vld [vmem:[%s1 + $0xd0] sm:$0xf]
  %v109 = vld [vmem:[%s1 + $0xd4] sm:$0xf]
  %v110 = vld [vmem:[%s1 + $0xd8] sm:$0xf]
  %v111 = vld [vmem:[%s1 + $0xdc] sm:$0xf]
  %v112 = vld [vmem:[%s1 + $0xe0] sm:$0xf]
  %v113 = vld [vmem:[%s1 + $0xe4] sm:$0xf]
  %v114 = vld [vmem:[%s1 + $0xe8] sm:$0xf]
  %v115 = vld [vmem:[%s1 + $0xec] sm:$0xf]
  %v116 = vld [vmem:[%s1 + $0xf0] sm:$0xf]
  %v117 = vld [vmem:[%s1 + $0xf4] sm:$0xf]
  %v118 = vld [vmem:[%s1 + $0xf8] sm:$0xf]
  %v119 = vld [vmem:[%s1 + $0xfc] sm:$0xf]
  %v120 = vld [vmem:[%s1 + $0x100] sm:$0xf]
  %v121 = vld [vmem:[%s1 + $0x104] sm:$0xf]
  %v122 = vld [vmem:[%s1 + $0x108] sm:$0xf]
  %v123 = vld [vmem:[%s1 + $0x10c] sm:$0xf]
  %v124 = vld [vmem:[%s1 + $0x110] sm:$0xf]
  %v125 = vld [vmem:[%s1 + $0x114] sm:$0xf]
  %v126 = vld [vmem:[%s1 + $0x118] sm:$0xf]
  %v127 = vld [vmem:[%s1 + $0x11c] sm:$0xf]
  %v128 = vld [vmem:[%s1 + $0x120] sm:$0xf]
  %v129 = vld [vmem:[%s1 + $0x124] sm:$0xf]
  %v130 = vld [vmem:[%s1 + $0x128] sm:$0xf]
  %v131 = vld [vmem:[%s1 + $0x12c] sm:$0xf]
  %v132 = vld [vmem:[%s1 + $0x130] sm:$0xf]
  %v133 = vld [vmem:[%s1 + $0x134] sm:$0xf]
  %v134 = vld [vmem:[%s1 + $0x138] sm:$0xf]
  %v135 = vld [vmem:[%s1 + $0x13c] sm:$0xf]
  %v136 = vld [vmem:[%s1 + $0x140] sm:$0xf]
  %v137 = vld [vmem:[%s1 + $0x144] sm:$0xf]
  %v138 = vld [vmem:[%s1 + $0x148] sm:$0xf]
  %v139 = vld [vmem:[%s1 + $0x14c] sm:$0xf]
  %v140 = vld [vmem:[%s1 + $0x150] sm:$0xf]
  %v141 = vld [vmem:[%s1 + $0x154] sm:$0xf]
  %v142 = vld [vmem:[%s1 + $0x158] sm:$0xf]
  %v143 = vld [vmem:[%s1 + $0x15c] sm:$0xf]
  %v144 = vld [vmem:[%s1 + $0x160] sm:$0xf]
  %v145 = vld [vmem:[%s1 + $0x164] sm:$0xf]
  %v146 = vld [vmem:[%s1 + $0x168] sm:$0xf]
  %v147 = vld [vmem:[%s1 + $0x16c] sm:$0xf]
  %v148 = vld [vmem:[%s1 + $0x170] sm:$0xf]
  %v149 = vld [vmem:[%s1 + $0x174] sm:$0xf]
  %v150 = vld [vmem:[%s1 + $0x178] sm:$0xf]
  %v151 = vld [vmem:[%s1 + $0x17c] sm:$0xf]
  %v152 = vld [vmem:[%s1 + $0x180] sm:$0xf]
  %v153 = vld [vmem:[%s1 + $0x184] sm:$0xf]
  %v154 = vld [vmem:[%s1 + $0x188] sm:$0xf]
  %v155 = vld [vmem:[%s1 + $0x18c] sm:$0xf]
  %v156 = vld [vmem:[%s1 + $0x190] sm:$0xf]
  %v157 = vld [vmem:[%s1 + $0x194] sm:$0xf]
  %v158 = vld [vmem:[%s1 + $0x198] sm:$0xf]
  %v159 = vld [vmem:[%s1 + $0x19c] sm:$0xf]
  %v160 = vld [vmem:[%s1 + $0x1a0] sm:$0xf]
  %v161 = vld [vmem:[%s1 + $0x1a4] sm:$0xf]
  %v162 = vld [vmem:[%s1 + $0x1a8] sm:$0xf]
  %v163 = vld [vmem:[%s1 + $0x1ac] sm:$0xf]
  %v164 = vld [vmem:[%s1 + $0x1b0] sm:$0xf]
  %v165 = vld [vmem:[%s1 + $0x1b4] sm:$0xf]
  %v166 = vld [vmem:[%s1 + $0x1b8] sm:$0xf]
  %v167 = vld [vmem:[%s1 + $0x1bc] sm:$0xf]
  %v168 = vld [vmem:[%s2] sm:$0x1]
  %v170 = vperm.slane %v168, 0
  %v284 = vunpack.c.l.b16 %v56
  %v285 = vunpack.c.l.b16 %v57
  %v286 = vunpack.c.l.b16 %v58
  %v287 = vunpack.c.l.b16 %v59
  %v288 = vunpack.c.l.b16 %v60
  %v289 = vunpack.c.l.b16 %v61
  %v290 = vunpack.c.l.b16 %v62
  %v291 = vunpack.c.l.b16 %v63
  %v292 = vunpack.c.l.b16 %v64
  %v293 = vunpack.c.l.b16 %v65
  %v294 = vunpack.c.l.b16 %v66
  %v295 = vunpack.c.l.b16 %v67
  %v296 = vunpack.c.l.b16 %v68
  %v297 = vunpack.c.l.b16 %v69
  %v298 = vunpack.c.l.b16 %v70
  %v299 = vunpack.c.l.b16 %v71
  %v300 = vunpack.c.l.b16 %v72
  %v301 = vunpack.c.l.b16 %v73
  %v302 = vunpack.c.l.b16 %v74
  %v303 = vunpack.c.l.b16 %v75
  %v304 = vunpack.c.l.b16 %v76
  %v305 = vunpack.c.l.b16 %v77
  %v306 = vunpack.c.l.b16 %v78
  %v307 = vunpack.c.l.b16 %v79
  %v308 = vunpack.c.l.b16 %v80
  %v309 = vunpack.c.l.b16 %v81
  %v310 = vunpack.c.l.b16 %v82
  %v311 = vunpack.c.l.b16 %v83
  %v312 = vunpack.c.l.b16 %v84
  %v313 = vunpack.c.l.b16 %v85
  %v314 = vunpack.c.l.b16 %v86
  %v315 = vunpack.c.l.b16 %v87
  %v316 = vunpack.c.l.b16 %v88
  %v317 = vunpack.c.l.b16 %v89
  %v318 = vunpack.c.l.b16 %v90
  %v319 = vunpack.c.l.b16 %v91
  %v320 = vunpack.c.l.b16 %v92
  %v321 = vunpack.c.l.b16 %v93
  %v322 = vunpack.c.l.b16 %v94
  %v323 = vunpack.c.l.b16 %v95
  %v324 = vunpack.c.l.b16 %v96
  %v325 = vunpack.c.l.b16 %v97
  %v326 = vunpack.c.l.b16 %v98
  %v327 = vunpack.c.l.b16 %v99
  %v328 = vunpack.c.l.b16 %v100
  %v329 = vunpack.c.l.b16 %v101
  %v330 = vunpack.c.l.b16 %v102
  %v331 = vunpack.c.l.b16 %v103
  %v332 = vunpack.c.l.b16 %v104
  %v333 = vunpack.c.l.b16 %v105
  %v334 = vunpack.c.l.b16 %v106
  %v335 = vunpack.c.l.b16 %v107
  %v336 = vunpack.c.l.b16 %v108
  %v337 = vunpack.c.l.b16 %v109
  %v338 = vunpack.c.l.b16 %v110
  %v339 = vunpack.c.l.b16 %v111
  %v340 = vunpack.c.l.b16 %v112
  %v341 = vunpack.c.l.b16 %v113
  %v342 = vunpack.c.l.b16 %v114
  %v343 = vunpack.c.l.b16 %v115
  %v344 = vunpack.c.l.b16 %v116
  %v345 = vunpack.c.l.b16 %v117
  %v346 = vunpack.c.l.b16 %v118
  %v347 = vunpack.c.l.b16 %v119
  %v348 = vunpack.c.l.b16 %v120
  %v349 = vunpack.c.l.b16 %v121
  %v350 = vunpack.c.l.b16 %v122
  %v351 = vunpack.c.l.b16 %v123
  %v352 = vunpack.c.l.b16 %v124
  %v353 = vunpack.c.l.b16 %v125
  %v354 = vunpack.c.l.b16 %v126
  %v355 = vunpack.c.l.b16 %v127
  %v356 = vunpack.c.l.b16 %v128
  %v357 = vunpack.c.l.b16 %v129
  %v358 = vunpack.c.l.b16 %v130
  %v359 = vunpack.c.l.b16 %v131
  %v360 = vunpack.c.l.b16 %v132
  %v361 = vunpack.c.l.b16 %v133
  %v362 = vunpack.c.l.b16 %v134
  %v363 = vunpack.c.l.b16 %v135
  %v364 = vunpack.c.l.b16 %v136
  %v365 = vunpack.c.l.b16 %v137
  %v366 = vunpack.c.l.b16 %v138
  %v367 = vunpack.c.l.b16 %v139
  %v368 = vunpack.c.l.b16 %v140
  %v369 = vunpack.c.l.b16 %v141
  %v370 = vunpack.c.l.b16 %v142
  %v371 = vunpack.c.l.b16 %v143
  %v372 = vunpack.c.l.b16 %v144
  %v373 = vunpack.c.l.b16 %v145
  %v374 = vunpack.c.l.b16 %v146
  %v375 = vunpack.c.l.b16 %v147
  %v376 = vunpack.c.l.b16 %v148
  %v377 = vunpack.c.l.b16 %v149
  %v378 = vunpack.c.l.b16 %v150
  %v379 = vunpack.c.l.b16 %v151
  %v380 = vunpack.c.l.b16 %v152
  %v381 = vunpack.c.l.b16 %v153
  %v382 = vunpack.c.l.b16 %v154
  %v383 = vunpack.c.l.b16 %v155
  %v384 = vunpack.c.l.b16 %v156
  %v385 = vunpack.c.l.b16 %v157
  %v386 = vunpack.c.l.b16 %v158
  %v387 = vunpack.c.l.b16 %v159
  %v388 = vunpack.c.l.b16 %v160
  %v389 = vunpack.c.l.b16 %v161
  %v390 = vunpack.c.l.b16 %v162
  %v391 = vunpack.c.l.b16 %v163
  %v392 = vunpack.c.l.b16 %v164
  %v393 = vunpack.c.l.b16 %v165
  %v394 = vunpack.c.l.b16 %v166
  %v395 = vunpack.c.l.b16 %v167
  %v396 = vpack.c.b16 %v285, %v284
  %v397 = vpack.c.b16 %v287, %v286
  %v398 = vpack.c.b16 %v289, %v288
  %v399 = vpack.c.b16 %v291, %v290
  %v400 = vpack.c.b16 %v293, %v292
  %v401 = vpack.c.b16 %v295, %v294
  %v402 = vpack.c.b16 %v297, %v296
  %v403 = vpack.c.b16 %v299, %v298
  %v404 = vpack.c.b16 %v301, %v300
  %v405 = vpack.c.b16 %v303, %v302
  %v406 = vpack.c.b16 %v305, %v304
  %v407 = vpack.c.b16 %v307, %v306
  %v408 = vpack.c.b16 %v309, %v308
  %v409 = vpack.c.b16 %v311, %v310
  %v410 = vpack.c.b16 %v313, %v312
  %v411 = vpack.c.b16 %v315, %v314
  %v412 = vpack.c.b16 %v317, %v316
  %v413 = vpack.c.b16 %v319, %v318
  %v414 = vpack.c.b16 %v321, %v320
  %v415 = vpack.c.b16 %v323, %v322
  %v416 = vpack.c.b16 %v325, %v324
  %v417 = vpack.c.b16 %v327, %v326
  %v418 = vpack.c.b16 %v329, %v328
  %v419 = vpack.c.b16 %v331, %v330
  %v420 = vpack.c.b16 %v333, %v332
  %v421 = vpack.c.b16 %v335, %v334
  %v422 = vpack.c.b16 %v337, %v336
  %v423 = vpack.c.b16 %v339, %v338
  %v424 = vpack.c.b16 %v341, %v340
  %v425 = vpack.c.b16 %v343, %v342
  %v426 = vpack.c.b16 %v345, %v344
  %v427 = vpack.c.b16 %v347, %v346
  %v428 = vpack.c.b16 %v349, %v348
  %v429 = vpack.c.b16 %v351, %v350
  %v430 = vpack.c.b16 %v353, %v352
  %v431 = vpack.c.b16 %v355, %v354
  %v432 = vpack.c.b16 %v357, %v356
  %v433 = vpack.c.b16 %v359, %v358
  %v434 = vpack.c.b16 %v361, %v360
  %v435 = vpack.c.b16 %v363, %v362
  %v436 = vpack.c.b16 %v365, %v364
  %v437 = vpack.c.b16 %v367, %v366
  %v438 = vpack.c.b16 %v369, %v368
  %v439 = vpack.c.b16 %v371, %v370
  %v440 = vpack.c.b16 %v373, %v372
  %v441 = vpack.c.b16 %v375, %v374
  %v442 = vpack.c.b16 %v377, %v376
  %v443 = vpack.c.b16 %v379, %v378
  %v444 = vpack.c.b16 %v381, %v380
  %v445 = vpack.c.b16 %v383, %v382
  %v446 = vpack.c.b16 %v385, %v384
  %v447 = vpack.c.b16 %v387, %v386
  %v448 = vpack.c.b16 %v389, %v388
  %v449 = vpack.c.b16 %v391, %v390
  %v450 = vpack.c.b16 %v393, %v392
  %v451 = vpack.c.b16 %v395, %v394
  %508 = vmatpush.bf16.msra.mxu0 %v403
  %509 = vmatpush.bf16.msra.mxu0 %v402
  %510 = vmatpush.bf16.msra.mxu0 %v401
  %511 = vmatpush.bf16.msra.mxu0 %v400
  %512 = vmatpush.bf16.msra.mxu0 %v399
  %513 = vmatpush.bf16.msra.mxu0 %v398
  %514 = vmatpush.bf16.msra.mxu0 %v397
  %515 = vmatpush.bf16.msra.mxu0 %v396
  %516 = vmatmul.bf16.gmra.mxu0 %v42
  %v517 = vpop.f32.mrf.mxu0
  %v518 = vadd.f32 %v170, %v517
  %v519 = vpop.f32.mrf.mxu0
  %v520 = vadd.f32 %v170, %v519
  %521 = vmatmul.bf16.gmra.mxu0 %v49
  %v522 = vpop.f32.mrf.mxu0
  %v523 = vadd.f32 %v170, %v522
  %v524 = vpop.f32.mrf.mxu0
  %v525 = vadd.f32 %v170, %v524
  %526 = vdwg.mxu0
  %527 = vmatpush.bf16.msra.mxu0 %v411
  %528 = vmatpush.bf16.msra.mxu0 %v410
  %529 = vmatpush.bf16.msra.mxu0 %v409
  %530 = vmatpush.bf16.msra.mxu0 %v408
  %531 = vmatpush.bf16.msra.mxu0 %v407
  %532 = vmatpush.bf16.msra.mxu0 %v406
  %533 = vmatpush.bf16.msra.mxu0 %v405
  %534 = vmatpush.bf16.msra.mxu0 %v404
  %535 = vmatmul.bf16.gmra.mxu0 %v43
  %v536 = vpop.f32.mrf.mxu0
  %v537 = vadd.f32 %v518, %v536
  %v538 = vpop.f32.mrf.mxu0
  %v539 = vadd.f32 %v520, %v538
  %540 = vmatmul.bf16.gmra.mxu0 %v50
  %v541 = vpop.f32.mrf.mxu0
  %v542 = vadd.f32 %v523, %v541
  %v543 = vpop.f32.mrf.mxu0
  %v544 = vadd.f32 %v525, %v543
  %545 = vdwg.mxu0
  %546 = vmatpush.bf16.msra.mxu0 %v419
  %547 = vmatpush.bf16.msra.mxu0 %v418
  %548 = vmatpush.bf16.msra.mxu0 %v417
  %549 = vmatpush.bf16.msra.mxu0 %v416
  %550 = vmatpush.bf16.msra.mxu0 %v415
  %551 = vmatpush.bf16.msra.mxu0 %v414
  %552 = vmatpush.bf16.msra.mxu0 %v413
  %553 = vmatpush.bf16.msra.mxu0 %v412
  %554 = vmatmul.bf16.gmra.mxu0 %v44
  %v555 = vpop.f32.mrf.mxu0
  %v556 = vadd.f32 %v537, %v555
  %v557 = vpop.f32.mrf.mxu0
  %v558 = vadd.f32 %v539, %v557
  %559 = vmatmul.bf16.gmra.mxu0 %v51
  %v560 = vpop.f32.mrf.mxu0
  %v561 = vadd.f32 %v542, %v560
  %v562 = vpop.f32.mrf.mxu0
  %v563 = vadd.f32 %v544, %v562
  %564 = vdwg.mxu0
  %565 = vmatpush.bf16.msra.mxu0 %v427
  %566 = vmatpush.bf16.msra.mxu0 %v426
  %567 = vmatpush.bf16.msra.mxu0 %v425
  %568 = vmatpush.bf16.msra.mxu0 %v424
  %569 = vmatpush.bf16.msra.mxu0 %v423
  %570 = vmatpush.bf16.msra.mxu0 %v422
  %571 = vmatpush.bf16.msra.mxu0 %v421
  %572 = vmatpush.bf16.msra.mxu0 %v420
  %573 = vmatmul.bf16.gmra.mxu0 %v45
  %v574 = vpop.f32.mrf.mxu0
  %v575 = vadd.f32 %v556, %v574
  %v576 = vpop.f32.mrf.mxu0
  %v577 = vadd.f32 %v558, %v576
  %578 = vmatmul.bf16.gmra.mxu0 %v52
  %v579 = vpop.f32.mrf.mxu0
  %v580 = vadd.f32 %v561, %v579
  %v581 = vpop.f32.mrf.mxu0
  %v582 = vadd.f32 %v563, %v581
  %583 = vdwg.mxu0
  %584 = vmatpush.bf16.msra.mxu0 %v435
  %585 = vmatpush.bf16.msra.mxu0 %v434
  %586 = vmatpush.bf16.msra.mxu0 %v433
  %587 = vmatpush.bf16.msra.mxu0 %v432
  %588 = vmatpush.bf16.msra.mxu0 %v431
  %589 = vmatpush.bf16.msra.mxu0 %v430
  %590 = vmatpush.bf16.msra.mxu0 %v429
  %591 = vmatpush.bf16.msra.mxu0 %v428
  %592 = vmatmul.bf16.gmra.mxu0 %v46
  %v593 = vpop.f32.mrf.mxu0
  %v594 = vadd.f32 %v575, %v593
  %v595 = vpop.f32.mrf.mxu0
  %v596 = vadd.f32 %v577, %v595
  %597 = vmatmul.bf16.gmra.mxu0 %v53
  %v598 = vpop.f32.mrf.mxu0
  %v599 = vadd.f32 %v580, %v598
  %v600 = vpop.f32.mrf.mxu0
  %v601 = vadd.f32 %v582, %v600
  %602 = vdwg.mxu0
  %603 = vmatpush.bf16.msra.mxu0 %v443
  %604 = vmatpush.bf16.msra.mxu0 %v442
  %605 = vmatpush.bf16.msra.mxu0 %v441
  %606 = vmatpush.bf16.msra.mxu0 %v440
  %607 = vmatpush.bf16.msra.mxu0 %v439
  %608 = vmatpush.bf16.msra.mxu0 %v438
  %609 = vmatpush.bf16.msra.mxu0 %v437
  %610 = vmatpush.bf16.msra.mxu0 %v436
  %611 = vmatmul.bf16.gmra.mxu0 %v47
  %v612 = vpop.f32.mrf.mxu0
  %v613 = vadd.f32 %v594, %v612
  %v614 = vpop.f32.mrf.mxu0
  %v615 = vadd.f32 %v596, %v614
  %616 = vmatmul.bf16.gmra.mxu0 %v54
  %v617 = vpop.f32.mrf.mxu0
  %v618 = vadd.f32 %v599, %v617
  %v619 = vpop.f32.mrf.mxu0
  %v620 = vadd.f32 %v601, %v619
  %621 = vdwg.mxu0
  %622 = vmatpush.bf16.msra.mxu0 %v451
  %623 = vmatpush.bf16.msra.mxu0 %v450
  %624 = vmatpush.bf16.msra.mxu0 %v449
  %625 = vmatpush.bf16.msra.mxu0 %v448
  %626 = vmatpush.bf16.msra.mxu0 %v447
  %627 = vmatpush.bf16.msra.mxu0 %v446
  %628 = vmatpush.bf16.msra.mxu0 %v445
  %629 = vmatpush.bf16.msra.mxu0 %v444
  %630 = vmatmul.bf16.gmra.mxu0 %v48
  %v631 = vpop.f32.mrf.mxu0
  %v632 = vadd.f32 %v613, %v631
  %v633 = vpop.f32.mrf.mxu0
  %v634 = vadd.f32 %v615, %v633
  %635 = vmatmul.bf16.gmra.mxu0 %v55
  %v636 = vpop.f32.mrf.mxu0
  %v637 = vadd.f32 %v618, %v636
  %v638 = vpop.f32.mrf.mxu0
  %v639 = vadd.f32 %v620, %v638
  %640 = vdwg.mxu0
  %641 = vst [vmem:[%s3] sm:$0xff] %v632
  %642 = vst [vmem:[%s3 + $0x8] sm:$0xff] %v634
  %643 = vst [vmem:[%s3 + $0x10] sm:$0xff] %v637
  %644 = vst [vmem:[%s3 + $0x18] sm:$0x3f] %v639
  // Predicated region
  $region14: #{conformer_forward.38} parent=0 // pred_check
    _
  $region15: #{conformer_forward.38} parent=0 // pred_check_branch
    %646 = sbr.rel (0) target = $region17
  $region16: #{conformer_forward.38} parent=0 // pred_region
    _
  $region17: #{conformer_forward.38} parent=0 // pred_fallthru
    _
  // Predicated region
  $region18: #{conformer_forward.38} parent=0 // pred_check
    _
  $region19: #{conformer_forward.38} parent=0 // pred_check_branch
    %648 = sbr.rel (0) target = $region21
  $region20: #{conformer_forward.38} parent=0 // pred_region
    _
  $region21: #{conformer_forward.38} parent=0 // pred_fallthru
    _

// kernel: conformer_forward.40
$region0: #{conformer_forward.40}
  #allocation0 [shape = 'u32[]', space=smem, size = 0x4, offset = 0x4, fixed_abs, tag = 'smem constant byte address 0x4 - core index']
  #allocation1 [shape = 'u32[72,128]{1,0:T(1,128)}', space=vmem, size = 0x9000, scoped, tag = 'internal scratch']
  %s0 = inlined_call_operand.vmem [shape: f32[30,128], index: 0, kind: input, shape index: {}]
  %s1 = inlined_call_operand.vmem [shape: bf16[128,256], index: 1, kind: input, shape index: {}]
  %s2 = inlined_call_operand.vmem [shape: f32[1,256], index: 2, kind: input, shape index: {}]
  %s3 = inlined_call_operand.vmem [shape: f32[30,256], index: 3, kind: output, shape index: {}]
  %s4 = sld [smem:[#allocation0]]
  $region22: #{conformer_forward.40} parent=0
    _
  %s6 = ssub.s32 1, %s4
  %s7 = scalar_select 0, %s6, %s4
  // Predicated region
  $region2: #{conformer_forward.40} parent=0 // pred_check
    _
  $region3: #{conformer_forward.40} parent=0 // pred_check_branch
    %9 = sbr.rel (0) target = $region5
  $region4: #{conformer_forward.40} parent=0 // pred_region
    _
  $region5: #{conformer_forward.40} parent=0 // pred_fallthru
    _
  // Predicated region
  $region6: #{conformer_forward.40} parent=0 // pred_check
    _
  $region7: #{conformer_forward.40} parent=0 // pred_check_branch
    %11 = sbr.rel (0) target = $region9
  $region8: #{conformer_forward.40} parent=0 // pred_region
    _
  $region9: #{conformer_forward.40} parent=0 // pred_fallthru
    _
  // Predicated region
  $region10: #{conformer_forward.40} parent=0 // pred_check
    _
  $region11: #{conformer_forward.40} parent=0 // pred_check_branch
    %13 = sbr.rel (0) target = $region13
  $region12: #{conformer_forward.40} parent=0 // pred_region
    _
  $region13: #{conformer_forward.40} parent=0 // pred_fallthru
    _
  %v14 = vld [vmem:[%s0] sm:$0xff]
  %v15 = vld [vmem:[%s0 + $0x8] sm:$0xff]
  %v16 = vld [vmem:[%s0 + $0x10] sm:$0xff]
  %v17 = vld [vmem:[%s0 + $0x18] sm:$0x3f]
  %v18 = vpack.c.bf16 %v15, %v14
  %v19 = vpack.c.bf16 %v17, %v16
  %v20 = vld [vmem:[%s1] sm:$0xff]
  %v21 = vld [vmem:[%s1 + $0x8] sm:$0xff]
  %v22 = vld [vmem:[%s1 + $0x10] sm:$0xff]
  %v23 = vld [vmem:[%s1 + $0x18] sm:$0xff]
  %v24 = vld [vmem:[%s1 + $0x20] sm:$0xff]
  %v25 = vld [vmem:[%s1 + $0x28] sm:$0xff]
  %v26 = vld [vmem:[%s1 + $0x30] sm:$0xff]
  %v27 = vld [vmem:[%s1 + $0x38] sm:$0xff]
  %v28 = vld [vmem:[%s1 + $0x40] sm:$0xff]
  %v29 = vld [vmem:[%s1 + $0x48] sm:$0xff]
  %v30 = vld [vmem:[%s1 + $0x50] sm:$0xff]
  %v31 = vld [vmem:[%s1 + $0x58] sm:$0xff]
  %v32 = vld [vmem:[%s1 + $0x60] sm:$0xff]
  %v33 = vld [vmem:[%s1 + $0x68] sm:$0xff]
  %v34 = vld [vmem:[%s1 + $0x70] sm:$0xff]
  %v35 = vld [vmem:[%s1 + $0x78] sm:$0xff]
  %v36 = vld [vmem:[%s2] sm:$0x3]
  %v38 = vperm.slane %v36, 0
  %v39 = vperm.slane %v36, 1
  %v58 = vunpack.c.l.b16 %v20
  %v59 = vunpack.c.h.b16 %v20
  %v60 = vunpack.c.l.b16 %v21
  %v61 = vunpack.c.h.b16 %v21
  %v62 = vunpack.c.l.b16 %v22
  %v63 = vunpack.c.h.b16 %v22
  %v64 = vunpack.c.l.b16 %v23
  %v65 = vunpack.c.h.b16 %v23
  %v66 = vunpack.c.l.b16 %v24
  %v67 = vunpack.c.h.b16 %v24
  %v68 = vunpack.c.l.b16 %v25
  %v69 = vunpack.c.h.b16 %v25
  %v70 = vunpack.c.l.b16 %v26
  %v71 = vunpack.c.h.b16 %v26
  %v72 = vunpack.c.l.b16 %v27
  %v73 = vunpack.c.h.b16 %v27
  %v74 = vunpack.c.l.b16 %v28
  %v75 = vunpack.c.h.b16 %v28
  %v76 = vunpack.c.l.b16 %v29
  %v77 = vunpack.c.h.b16 %v29
  %v78 = vunpack.c.l.b16 %v30
  %v79 = vunpack.c.h.b16 %v30
  %v80 = vunpack.c.l.b16 %v31
  %v81 = vunpack.c.h.b16 %v31
  %v82 = vunpack.c.l.b16 %v32
  %v83 = vunpack.c.h.b16 %v32
  %v84 = vunpack.c.l.b16 %v33
  %v85 = vunpack.c.h.b16 %v33
  %v86 = vunpack.c.l.b16 %v34
  %v87 = vunpack.c.h.b16 %v34
  %v88 = vunpack.c.l.b16 %v35
  %v89 = vunpack.c.h.b16 %v35
  %v90 = vpack.c.b16 %v60, %v58
  %v91 = vpack.c.b16 %v61, %v59
  %v92 = vpack.c.b16 %v64, %v62
  %v93 = vpack.c.b16 %v65, %v63
  %v94 = vpack.c.b16 %v68, %v66
  %v95 = vpack.c.b16 %v69, %v67
  %v96 = vpack.c.b16 %v72, %v70
  %v97 = vpack.c.b16 %v73, %v71
  %v98 = vpack.c.b16 %v76, %v74
  %v99 = vpack.c.b16 %v77, %v75
  %v100 = vpack.c.b16 %v80, %v78
  %v101 = vpack.c.b16 %v81, %v79
  %v102 = vpack.c.b16 %v84, %v82
  %v103 = vpack.c.b16 %v85, %v83
  %v104 = vpack.c.b16 %v88, %v86
  %v105 = vpack.c.b16 %v89, %v87
  %122 = vmatpush.bf16.msra.mxu0 %v104
  %123 = vmatpush.bf16.msra.mxu0 %v102
  %124 = vmatpush.bf16.msra.mxu0 %v100
  %125 = vmatpush.bf16.msra.mxu0 %v98
  %126 = vmatpush.bf16.msra.mxu0 %v96
  %127 = vmatpush.bf16.msra.mxu0 %v94
  %128 = vmatpush.bf16.msra.mxu0 %v92
  %129 = vmatpush.bf16.msra.mxu0 %v90
  %130 = vmatmul.bf16.gmra.mxu0 %v18
  %v131 = vpop.f32.mrf.mxu0
  %v132 = vadd.f32 %v38, %v131
  %v133 = vpop.f32.mrf.mxu0
  %v134 = vadd.f32 %v38, %v133
  %135 = vmatmul.bf16.gmra.mxu0 %v19
  %v136 = vpop.f32.mrf.mxu0
  %v137 = vadd.f32 %v38, %v136
  %v138 = vpop.f32.mrf.mxu0
  %v139 = vadd.f32 %v38, %v138
  %140 = vdwg.mxu0
  %141 = vmatpush.bf16.msra.mxu0 %v105
  %142 = vmatpush.bf16.msra.mxu0 %v103
  %143 = vmatpush.bf16.msra.mxu0 %v101
  %144 = vmatpush.bf16.msra.mxu0 %v99
  %145 = vmatpush.bf16.msra.mxu0 %v97
  %146 = vmatpush.bf16.msra.mxu0 %v95
  %147 = vmatpush.bf16.msra.mxu0 %v93
  %148 = vmatpush.bf16.msra.mxu0 %v91
  %149 = vmatmul.bf16.gmra.mxu0 %v18
  %v150 = vpop.f32.mrf.mxu0
  %v151 = vadd.f32 %v39, %v150
  %v152 = vpop.f32.mrf.mxu0
  %v153 = vadd.f32 %v39, %v152
  %154 = vmatmul.bf16.gmra.mxu0 %v19
  %v155 = vpop.f32.mrf.mxu0
  %v156 = vadd.f32 %v39, %v155
  %v157 = vpop.f32.mrf.mxu0
  %v158 = vadd.f32 %v39, %v157
  %159 = vdwg.mxu0
  %160 = vst [vmem:[%s3] sm:$0xff] %v132
  %161 = vst [vmem:[%s3 + $0x8] sm:$0xff] %v151
  %162 = vst [vmem:[%s3 + $0x10] sm:$0xff] %v134
  %163 = vst [vmem:[%s3 + $0x18] sm:$0xff] %v153
  %164 = vst [vmem:[%s3 + $0x20] sm:$0xff] %v137
  %165 = vst [vmem:[%s3 + $0x28] sm:$0xff] %v156
  %166 = vst [vmem:[%s3 + $0x30] sm:$0x3f] %v139
  %167 = vst [vmem:[%s3 + $0x38] sm:$0x3f] %v158
  // Predicated region
  $region14: #{conformer_forward.40} parent=0 // pred_check
    _
  $region15: #{conformer_forward.40} parent=0 // pred_check_branch
    %169 = sbr.rel (0) target = $region17
  $region16: #{conformer_forward.40} parent=0 // pred_region
    _
  $region17: #{conformer_forward.40} parent=0 // pred_fallthru
    _
  // Predicated region
  $region18: #{conformer_forward.40} parent=0 // pred_check
    _
  $region19: #{conformer_forward.40} parent=0 // pred_check_branch
    %171 = sbr.rel (0) target = $region21
  $region20: #{conformer_forward.40} parent=0 // pred_region
    _
  $region21: #{conformer_forward.40} parent=0 // pred_fallthru
    _

// kernel: conformer_forward.41
$region0: #{conformer_forward.41}
  #allocation0 [shape = 'u32[]', space=smem, size = 0x4, offset = 0x4, fixed_abs, tag = 'smem constant byte address 0x4 - core index']
  #allocation1 [shape = 'u32[72,128]{1,0:T(1,128)}', space=vmem, size = 0x9000, scoped, tag = 'internal scratch']
  %s0 = inlined_call_operand.vmem [shape: f32[30,256], index: 0, kind: input, shape index: {}]
  %s1 = inlined_call_operand.vmem [shape: bf16[256,128], index: 1, kind: input, shape index: {}]
  %s2 = inlined_call_operand.vmem [shape: f32[1,128], index: 2, kind: input, shape index: {}]
  %s3 = inlined_call_operand.vmem [shape: f32[30,128], index: 3, kind: output, shape index: {}]
  %s4 = sld [smem:[#allocation0]]
  $region22: #{conformer_forward.41} parent=0
    _
  %s6 = ssub.s32 1, %s4
  %s7 = scalar_select 0, %s6, %s4
  // Predicated region
  $region2: #{conformer_forward.41} parent=0 // pred_check
    _
  $region3: #{conformer_forward.41} parent=0 // pred_check_branch
    %9 = sbr.rel (0) target = $region5
  $region4: #{conformer_forward.41} parent=0 // pred_region
    _
  $region5: #{conformer_forward.41} parent=0 // pred_fallthru
    _
  // Predicated region
  $region6: #{conformer_forward.41} parent=0 // pred_check
    _
  $region7: #{conformer_forward.41} parent=0 // pred_check_branch
    %11 = sbr.rel (0) target = $region9
  $region8: #{conformer_forward.41} parent=0 // pred_region
    _
  $region9: #{conformer_forward.41} parent=0 // pred_fallthru
    _
  // Predicated region
  $region10: #{conformer_forward.41} parent=0 // pred_check
    _
  $region11: #{conformer_forward.41} parent=0 // pred_check_branch
    %13 = sbr.rel (0) target = $region13
  $region12: #{conformer_forward.41} parent=0 // pred_region
    _
  $region13: #{conformer_forward.41} parent=0 // pred_fallthru
    _
  %v14 = vld [vmem:[%s0] sm:$0xff]
  %v15 = vld [vmem:[%s0 + $0x8] sm:$0xff]
  %v16 = vld [vmem:[%s0 + $0x10] sm:$0xff]
  %v17 = vld [vmem:[%s0 + $0x18] sm:$0xff]
  %v18 = vld [vmem:[%s0 + $0x20] sm:$0xff]
  %v19 = vld [vmem:[%s0 + $0x28] sm:$0xff]
  %v20 = vld [vmem:[%s0 + $0x30] sm:$0x3f]
  %v21 = vld [vmem:[%s0 + $0x38] sm:$0x3f]
  %v22 = vpack.c.bf16 %v16, %v14
  %v23 = vpack.c.bf16 %v17, %v15
  %v24 = vpack.c.bf16 %v20, %v18
  %v25 = vpack.c.bf16 %v21, %v19
  %v26 = vld [vmem:[%s1] sm:$0xf]
  %v27 = vld [vmem:[%s1 + $0x4] sm:$0xf]
  %v28 = vld [vmem:[%s1 + $0x8] sm:$0xf]
  %v29 = vld [vmem:[%s1 + $0xc] sm:$0xf]
  %v30 = vld [vmem:[%s1 + $0x10] sm:$0xf]
  %v31 = vld [vmem:[%s1 + $0x14] sm:$0xf]
  %v32 = vld [vmem:[%s1 + $0x18] sm:$0xf]
  %v33 = vld [vmem:[%s1 + $0x1c] sm:$0xf]
  %v34 = vld [vmem:[%s1 + $0x20] sm:$0xf]
  %v35 = vld [vmem:[%s1 + $0x24] sm:$0xf]
  %v36 = vld [vmem:[%s1 + $0x28] sm:$0xf]
  %v37 = vld [vmem:[%s1 + $0x2c] sm:$0xf]
  %v38 = vld [vmem:[%s1 + $0x30] sm:$0xf]
  %v39 = vld [vmem:[%s1 + $0x34] sm:$0xf]
  %v40 = vld [vmem:[%s1 + $0x38] sm:$0xf]
  %v41 = vld [vmem:[%s1 + $0x3c] sm:$0xf]
  %v42 = vld [vmem:[%s1 + $0x40] sm:$0xf]
  %v43 = vld [vmem:[%s1 + $0x44] sm:$0xf]
  %v44 = vld [vmem:[%s1 + $0x48] sm:$0xf]
  %v45 = vld [vmem:[%s1 + $0x4c] sm:$0xf]
  %v46 = vld [vmem:[%s1 + $0x50] sm:$0xf]
  %v47 = vld [vmem:[%s1 + $0x54] sm:$0xf]
  %v48 = vld [vmem:[%s1 + $0x58] sm:$0xf]
  %v49 = vld [vmem:[%s1 + $0x5c] sm:$0xf]
  %v50 = vld [vmem:[%s1 + $0x60] sm:$0xf]
  %v51 = vld [vmem:[%s1 + $0x64] sm:$0xf]
  %v52 = vld [vmem:[%s1 + $0x68] sm:$0xf]
  %v53 = vld [vmem:[%s1 + $0x6c] sm:$0xf]
  %v54 = vld [vmem:[%s1 + $0x70] sm:$0xf]
  %v55 = vld [vmem:[%s1 + $0x74] sm:$0xf]
  %v56 = vld [vmem:[%s1 + $0x78] sm:$0xf]
  %v57 = vld [vmem:[%s1 + $0x7c] sm:$0xf]
  %v58 = vld [vmem:[%s2] sm:$0x1]
  %v60 = vperm.slane %v58, 0
  %v94 = vunpack.c.l.b16 %v26
  %v95 = vunpack.c.l.b16 %v27
  %v96 = vunpack.c.l.b16 %v28
  %v97 = vunpack.c.l.b16 %v29
  %v98 = vunpack.c.l.b16 %v30
  %v99 = vunpack.c.l.b16 %v31
  %v100 = vunpack.c.l.b16 %v32
  %v101 = vunpack.c.l.b16 %v33
  %v102 = vunpack.c.l.b16 %v34
  %v103 = vunpack.c.l.b16 %v35
  %v104 = vunpack.c.l.b16 %v36
  %v105 = vunpack.c.l.b16 %v37
  %v106 = vunpack.c.l.b16 %v38
  %v107 = vunpack.c.l.b16 %v39
  %v108 = vunpack.c.l.b16 %v40
  %v109 = vunpack.c.l.b16 %v41
  %v110 = vunpack.c.l.b16 %v42
  %v111 = vunpack.c.l.b16 %v43
  %v112 = vunpack.c.l.b16 %v44
  %v113 = vunpack.c.l.b16 %v45
  %v114 = vunpack.c.l.b16 %v46
  %v115 = vunpack.c.l.b16 %v47
  %v116 = vunpack.c.l.b16 %v48
  %v117 = vunpack.c.l.b16 %v49
  %v118 = vunpack.c.l.b16 %v50
  %v119 = vunpack.c.l.b16 %v51
  %v120 = vunpack.c.l.b16 %v52
  %v121 = vunpack.c.l.b16 %v53
  %v122 = vunpack.c.l.b16 %v54
  %v123 = vunpack.c.l.b16 %v55
  %v124 = vunpack.c.l.b16 %v56
  %v125 = vunpack.c.l.b16 %v57
  %v126 = vpack.c.b16 %v95, %v94
  %v127 = vpack.c.b16 %v97, %v96
  %v128 = vpack.c.b16 %v99, %v98
  %v129 = vpack.c.b16 %v101, %v100
  %v130 = vpack.c.b16 %v103, %v102
  %v131 = vpack.c.b16 %v105, %v104
  %v132 = vpack.c.b16 %v107, %v106
  %v133 = vpack.c.b16 %v109, %v108
  %v134 = vpack.c.b16 %v111, %v110
  %v135 = vpack.c.b16 %v113, %v112
  %v136 = vpack.c.b16 %v115, %v114
  %v137 = vpack.c.b16 %v117, %v116
  %v138 = vpack.c.b16 %v119, %v118
  %v139 = vpack.c.b16 %v121, %v120
  %v140 = vpack.c.b16 %v123, %v122
  %v141 = vpack.c.b16 %v125, %v124
  %158 = vmatpush.bf16.msra.mxu0 %v133
  %159 = vmatpush.bf16.msra.mxu0 %v132
  %160 = vmatpush.bf16.msra.mxu0 %v131
  %161 = vmatpush.bf16.msra.mxu0 %v130
  %162 = vmatpush.bf16.msra.mxu0 %v129
  %163 = vmatpush.bf16.msra.mxu0 %v128
  %164 = vmatpush.bf16.msra.mxu0 %v127
  %165 = vmatpush.bf16.msra.mxu0 %v126
  %166 = vmatmul.bf16.gmra.mxu0 %v22
  %v167 = vpop.f32.mrf.mxu0
  %v168 = vadd.f32 %v60, %v167
  %v169 = vpop.f32.mrf.mxu0
  %v170 = vadd.f32 %v60, %v169
  %171 = vmatmul.bf16.gmra.mxu0 %v24
  %v172 = vpop.f32.mrf.mxu0
  %v173 = vadd.f32 %v60, %v172
  %v174 = vpop.f32.mrf.mxu0
  %v175 = vadd.f32 %v60, %v174
  %176 = vdwg.mxu0
  %177 = vmatpush.bf16.msra.mxu0 %v141
  %178 = vmatpush.bf16.msra.mxu0 %v140
  %179 = vmatpush.bf16.msra.mxu0 %v139
  %180 = vmatpush.bf16.msra.mxu0 %v138
  %181 = vmatpush.bf16.msra.mxu0 %v137
  %182 = vmatpush.bf16.msra.mxu0 %v136
  %183 = vmatpush.bf16.msra.mxu0 %v135
  %184 = vmatpush.bf16.msra.mxu0 %v134
  %185 = vmatmul.bf16.gmra.mxu0 %v23
  %v186 = vpop.f32.mrf.mxu0
  %v187 = vadd.f32 %v168, %v186
  %v188 = vpop.f32.mrf.mxu0
  %v189 = vadd.f32 %v170, %v188
  %190 = vmatmul.bf16.gmra.mxu0 %v25
  %v191 = vpop.f32.mrf.mxu0
  %v192 = vadd.f32 %v173, %v191
  %v193 = vpop.f32.mrf.mxu0
  %v194 = vadd.f32 %v175, %v193
  %195 = vdwg.mxu0
  %196 = vst [vmem:[%s3] sm:$0xff] %v187
  %197 = vst [vmem:[%s3 + $0x8] sm:$0xff] %v189
  %198 = vst [vmem:[%s3 + $0x10] sm:$0xff] %v192
  %199 = vst [vmem:[%s3 + $0x18] sm:$0x3f] %v194
  // Predicated region
  $region14: #{conformer_forward.41} parent=0 // pred_check
    _
  $region15: #{conformer_forward.41} parent=0 // pred_check_branch
    %201 = sbr.rel (0) target = $region17
  $region16: #{conformer_forward.41} parent=0 // pred_region
    _
  $region17: #{conformer_forward.41} parent=0 // pred_fallthru
    _
  // Predicated region
  $region18: #{conformer_forward.41} parent=0 // pred_check
    _
  $region19: #{conformer_forward.41} parent=0 // pred_check_branch
    %203 = sbr.rel (0) target = $region21
  $region20: #{conformer_forward.41} parent=0 // pred_region
    _
  $region21: #{conformer_forward.41} parent=0 // pred_fallthru
    _

// kernel: conformer_forward.43
$region0: #{conformer_forward.43}
  #allocation0 [shape = 'u32[]', space=smem, size = 0x4, offset = 0x4, fixed_abs, tag = 'smem constant byte address 0x4 - core index']
  #allocation1 [shape = 'u32[72,128]{1,0:T(1,128)}', space=vmem, size = 0x9000, scoped, tag = 'internal scratch']
  %s0 = inlined_call_operand.vmem [shape: f32[30,128], index: 0, kind: input, shape index: {}]
  %s1 = inlined_call_operand.vmem [shape: bf16[128,384], index: 1, kind: input, shape index: {}]
  %s2 = inlined_call_operand.vmem [shape: f32[1,384], index: 2, kind: input, shape index: {}]
  %s3 = inlined_call_operand.vmem [shape: f32[30,384], index: 3, kind: output, shape index: {}]
  %s4 = sld [smem:[#allocation0]]
  $region22: #{conformer_forward.43} parent=0
    _
  %s6 = ssub.s32 1, %s4
  %s7 = scalar_select 0, %s6, %s4
  // Predicated region
  $region2: #{conformer_forward.43} parent=0 // pred_check
    _
  $region3: #{conformer_forward.43} parent=0 // pred_check_branch
    %9 = sbr.rel (0) target = $region5
  $region4: #{conformer_forward.43} parent=0 // pred_region
    _
  $region5: #{conformer_forward.43} parent=0 // pred_fallthru
    _
  // Predicated region
  $region6: #{conformer_forward.43} parent=0 // pred_check
    _
  $region7: #{conformer_forward.43} parent=0 // pred_check_branch
    %11 = sbr.rel (0) target = $region9
  $region8: #{conformer_forward.43} parent=0 // pred_region
    _
  $region9: #{conformer_forward.43} parent=0 // pred_fallthru
    _
  // Predicated region
  $region10: #{conformer_forward.43} parent=0 // pred_check
    _
  $region11: #{conformer_forward.43} parent=0 // pred_check_branch
    %13 = sbr.rel (0) target = $region13
  $region12: #{conformer_forward.43} parent=0 // pred_region
    _
  $region13: #{conformer_forward.43} parent=0 // pred_fallthru
    _
  %v14 = vld [vmem:[%s0] sm:$0xff]
  %v15 = vld [vmem:[%s0 + $0x8] sm:$0xff]
  %v16 = vld [vmem:[%s0 + $0x10] sm:$0xff]
  %v17 = vld [vmem:[%s0 + $0x18] sm:$0x3f]
  %v18 = vpack.c.bf16 %v15, %v14
  %v19 = vpack.c.bf16 %v17, %v16
  %v20 = vld [vmem:[%s1] sm:$0xff]
  %v21 = vld [vmem:[%s1 + $0x8] sm:$0xf]
  %v22 = vld [vmem:[%s1 + $0xc] sm:$0xff]
  %v23 = vld [vmem:[%s1 + $0x14] sm:$0xf]
  %v24 = vld [vmem:[%s1 + $0x18] sm:$0xff]
  %v25 = vld [vmem:[%s1 + $0x20] sm:$0xf]
  %v26 = vld [vmem:[%s1 + $0x24] sm:$0xff]
  %v27 = vld [vmem:[%s1 + $0x2c] sm:$0xf]
  %v28 = vld [vmem:[%s1 + $0x30] sm:$0xff]
  %v29 = vld [vmem:[%s1 + $0x38] sm:$0xf]
  %v30 = vld [vmem:[%s1 + $0x3c] sm:$0xff]
  %v31 = vld [vmem:[%s1 + $0x44] sm:$0xf]
  %v32 = vld [vmem:[%s1 + $0x48] sm:$0xff]
  %v33 = vld [vmem:[%s1 + $0x50] sm:$0xf]
  %v34 = vld [vmem:[%s1 + $0x54] sm:$0xff]
  %v35 = vld [vmem:[%s1 + $0x5c] sm:$0xf]
  %v36 = vld [vmem:[%s1 + $0x60] sm:$0xff]
  %v37 = vld [vmem:[%s1 + $0x68] sm:$0xf]
  %v38 = vld [vmem:[%s1 + $0x6c] sm:$0xff]
  %v39 = vld [vmem:[%s1 + $0x74] sm:$0xf]
  %v40 = vld [vmem:[%s1 + $0x78] sm:$0xff]
  %v41 = vld [vmem:[%s1 + $0x80] sm:$0xf]
  %v42 = vld [vmem:[%s1 + $0x84] sm:$0xff]
  %v43 = vld [vmem:[%s1 + $0x8c] sm:$0xf]
  %v44 = vld [vmem:[%s1 + $0x90] sm:$0xff]
  %v45 = vld [vmem:[%s1 + $0x98] sm:$0xf]
  %v46 = vld [vmem:[%s1 + $0x9c] sm:$0xff]
  %v47 = vld [vmem:[%s1 + $0xa4] sm:$0xf]
  %v48 = vld [vmem:[%s1 + $0xa8] sm:$0xff]
  %v49 = vld [vmem:[%s1 + $0xb0] sm:$0xf]
  %v50 = vld [vmem:[%s1 + $0xb4] sm:$0xff]
  %v51 = vld [vmem:[%s1 + $0xbc] sm:$0xf]
  %v52 = vld [vmem:[%s2] sm:$0x7]
  %v54 = vperm.slane %v52, 0
  %v55 = vperm.slane %v52, 1
  %v56 = vperm.slane %v52, 2
  %v92 = vunpack.c.l.b16 %v20
  %v93 = vunpack.c.h.b16 %v20
  %v94 = vunpack.c.l.b16 %v21
  %v95 = vunpack.c.l.b16 %v22
  %v96 = vunpack.c.h.b16 %v22
  %v97 = vunpack.c.l.b16 %v23
  %v98 = vunpack.c.l.b16 %v24
  %v99 = vunpack.c.h.b16 %v24
  %v100 = vunpack.c.l.b16 %v25
  %v101 = vunpack.c.l.b16 %v26
  %v102 = vunpack.c.h.b16 %v26
  %v103 = vunpack.c.l.b16 %v27
  %v104 = vunpack.c.l.b16 %v28
  %v105 = vunpack.c.h.b16 %v28
  %v106 = vunpack.c.l.b16 %v29
  %v107 = vunpack.c.l.b16 %v30
  %v108 = vunpack.c.h.b16 %v30
  %v109 = vunpack.c.l.b16 %v31
  %v110 = vunpack.c.l.b16 %v32
  %v111 = vunpack.c.h.b16 %v32
  %v112 = vunpack.c.l.b16 %v33
  %v113 = vunpack.c.l.b16 %v34
  %v114 = vunpack.c.h.b16 %v34
  %v115 = vunpack.c.l.b16 %v35
  %v116 = vunpack.c.l.b16 %v36
  %v117 = vunpack.c.h.b16 %v36
  %v118 = vunpack.c.l.b16 %v37
  %v119 = vunpack.c.l.b16 %v38
  %v120 = vunpack.c.h.b16 %v38
  %v121 = vunpack.c.l.b16 %v39
  %v122 = vunpack.c.l.b16 %v40
  %v123 = vunpack.c.h.b16 %v40
  %v124 = vunpack.c.l.b16 %v41
  %v125 = vunpack.c.l.b16 %v42
  %v126 = vunpack.c.h.b16 %v42
  %v127 = vunpack.c.l.b16 %v43
  %v128 = vunpack.c.l.b16 %v44
  %v129 = vunpack.c.h.b16 %v44
  %v130 = vunpack.c.l.b16 %v45
  %v131 = vunpack.c.l.b16 %v46
  %v132 = vunpack.c.h.b16 %v46
  %v133 = vunpack.c.l.b16 %v47
  %v134 = vunpack.c.l.b16 %v48
  %v135 = vunpack.c.h.b16 %v48
  %v136 = vunpack.c.l.b16 %v49
  %v137 = vunpack.c.l.b16 %v50
  %v138 = vunpack.c.h.b16 %v50
  %v139 = vunpack.c.l.b16 %v51
  %v140 = vpack.c.b16 %v95, %v92
  %v141 = vpack.c.b16 %v96, %v93
  %v142 = vpack.c.b16 %v97, %v94
  %v143 = vpack.c.b16 %v101, %v98
  %v144 = vpack.c.b16 %v102, %v99
  %v145 = vpack.c.b16 %v103, %v100
  %v146 = vpack.c.b16 %v107, %v104
  %v147 = vpack.c.b16 %v108, %v105
  %v148 = vpack.c.b16 %v109, %v106
  %v149 = vpack.c.b16 %v113, %v110
  %v150 = vpack.c.b16 %v114, %v111
  %v151 = vpack.c.b16 %v115, %v112
  %v152 = vpack.c.b16 %v119, %v116
  %v153 = vpack.c.b16 %v120, %v117
  %v154 = vpack.c.b16 %v121, %v118
  %v155 = vpack.c.b16 %v125, %v122
  %v156 = vpack.c.b16 %v126, %v123
  %v157 = vpack.c.b16 %v127, %v124
  %v158 = vpack.c.b16 %v131, %v128
  %v159 = vpack.c.b16 %v132, %v129
  %v160 = vpack.c.b16 %v133, %v130
  %v161 = vpack.c.b16 %v137, %v134
  %v162 = vpack.c.b16 %v138, %v135
  %v163 = vpack.c.b16 %v139, %v136
  %188 = vmatpush.bf16.msra.mxu0 %v161
  %189 = vmatpush.bf16.msra.mxu0 %v158
  %190 = vmatpush.bf16.msra.mxu0 %v155
  %191 = vmatpush.bf16.msra.mxu0 %v152
  %192 = vmatpush.bf16.msra.mxu0 %v149
  %193 = vmatpush.bf16.msra.mxu0 %v146
  %194 = vmatpush.bf16.msra.mxu0 %v143
  %195 = vmatpush.bf16.msra.mxu0 %v140
  %196 = vmatmul.bf16.gmra.mxu0 %v18
  %v197 = vpop.f32.mrf.mxu0
  %v198 = vadd.f32 %v54, %v197
  %v199 = vpop.f32.mrf.mxu0
  %v200 = vadd.f32 %v54, %v199
  %201 = vmatmul.bf16.gmra.mxu0 %v19
  %v202 = vpop.f32.mrf.mxu0
  %v203 = vadd.f32 %v54, %v202
  %v204 = vpop.f32.mrf.mxu0
  %v205 = vadd.f32 %v54, %v204
  %206 = vdwg.mxu0
  %207 = vmatpush.bf16.msra.mxu0 %v162
  %208 = vmatpush.bf16.msra.mxu0 %v159
  %209 = vmatpush.bf16.msra.mxu0 %v156
  %210 = vmatpush.bf16.msra.mxu0 %v153
  %211 = vmatpush.bf16.msra.mxu0 %v150
  %212 = vmatpush.bf16.msra.mxu0 %v147
  %213 = vmatpush.bf16.msra.mxu0 %v144
  %214 = vmatpush.bf16.msra.mxu0 %v141
  %215 = vmatmul.bf16.gmra.mxu0 %v18
  %v216 = vpop.f32.mrf.mxu0
  %v217 = vadd.f32 %v55, %v216
  %v218 = vpop.f32.mrf.mxu0
  %v219 = vadd.f32 %v55, %v218
  %220 = vmatmul.bf16.gmra.mxu0 %v19
  %v221 = vpop.f32.mrf.mxu0
  %v222 = vadd.f32 %v55, %v221
  %v223 = vpop.f32.mrf.mxu0
  %v224 = vadd.f32 %v55, %v223
  %225 = vdwg.mxu0
  %226 = vmatpush.bf16.msra.mxu0 %v163
  %227 = vmatpush.bf16.msra.mxu0 %v160
  %228 = vmatpush.bf16.msra.mxu0 %v157
  %229 = vmatpush.bf16.msra.mxu0 %v154
  %230 = vmatpush.bf16.msra.mxu0 %v151
  %231 = vmatpush.bf16.msra.mxu0 %v148
  %232 = vmatpush.bf16.msra.mxu0 %v145
  %233 = vmatpush.bf16.msra.mxu0 %v142
  %234 = vmatmul.bf16.gmra.mxu0 %v18
  %v235 = vpop.f32.mrf.mxu0
  %v236 = vadd.f32 %v56, %v235
  %v237 = vpop.f32.mrf.mxu0
  %v238 = vadd.f32 %v56, %v237
  %239 = vmatmul.bf16.gmra.mxu0 %v19
  %v240 = vpop.f32.mrf.mxu0
  %v241 = vadd.f32 %v56, %v240
  %v242 = vpop.f32.mrf.mxu0
  %v243 = vadd.f32 %v56, %v242
  %244 = vdwg.mxu0
  %245 = vst [vmem:[%s3] sm:$0xff] %v198
  %246 = vst [vmem:[%s3 + $0x8] sm:$0xff] %v217
  %247 = vst [vmem:[%s3 + $0x10] sm:$0xff] %v236
  %248 = vst [vmem:[%s3 + $0x18] sm:$0xff] %v200
  %249 = vst [vmem:[%s3 + $0x20] sm:$0xff] %v219
  %250 = vst [vmem:[%s3 + $0x28] sm:$0xff] %v238
  %251 = vst [vmem:[%s3 + $0x30] sm:$0xff] %v203
  %252 = vst [vmem:[%s3 + $0x38] sm:$0xff] %v222
  %253 = vst [vmem:[%s3 + $0x40] sm:$0xff] %v241
  %254 = vst [vmem:[%s3 + $0x48] sm:$0x3f] %v205
  %255 = vst [vmem:[%s3 + $0x50] sm:$0x3f] %v224
  %256 = vst [vmem:[%s3 + $0x58] sm:$0x3f] %v243
  // Predicated region
  $region14: #{conformer_forward.43} parent=0 // pred_check
    _
  $region15: #{conformer_forward.43} parent=0 // pred_check_branch
    %258 = sbr.rel (0) target = $region17
  $region16: #{conformer_forward.43} parent=0 // pred_region
    _
  $region17: #{conformer_forward.43} parent=0 // pred_fallthru
    _
  // Predicated region
  $region18: #{conformer_forward.43} parent=0 // pred_check
    _
  $region19: #{conformer_forward.43} parent=0 // pred_check_branch
    %260 = sbr.rel (0) target = $region21
  $region20: #{conformer_forward.43} parent=0 // pred_region
    _
  $region21: #{conformer_forward.43} parent=0 // pred_fallthru
    _

// kernel: conformer_forward.44
$region0: #{conformer_forward.44}
  #allocation0 [shape = 'u32[]', space=smem, size = 0x4, offset = 0x4, fixed_abs, tag = 'smem constant byte address 0x4 - core index']
  #allocation1 [shape = 'u32[72,128]{1,0:T(1,128)}', space=vmem, size = 0x9000, scoped, tag = 'internal scratch']
  %s0 = inlined_call_operand.vmem [shape: f32[15,128], index: 0, kind: input, shape index: {}]
  %s1 = inlined_call_operand.vmem [shape: bf16[128,128], index: 1, kind: input, shape index: {}]
  %s2 = inlined_call_operand.vmem [shape: f32[1,128], index: 2, kind: input, shape index: {}]
  %s3 = inlined_call_operand.vmem [shape: f32[15,128], index: 3, kind: output, shape index: {}]
  %s4 = sld [smem:[#allocation0]]
  $region22: #{conformer_forward.44} parent=0
    _
  %s6 = ssub.s32 1, %s4
  %s7 = scalar_select 0, %s6, %s4
  // Predicated region
  $region2: #{conformer_forward.44} parent=0 // pred_check
    _
  $region3: #{conformer_forward.44} parent=0 // pred_check_branch
    %9 = sbr.rel (0) target = $region5
  $region4: #{conformer_forward.44} parent=0 // pred_region
    _
  $region5: #{conformer_forward.44} parent=0 // pred_fallthru
    _
  // Predicated region
  $region6: #{conformer_forward.44} parent=0 // pred_check
    _
  $region7: #{conformer_forward.44} parent=0 // pred_check_branch
    %11 = sbr.rel (0) target = $region9
  $region8: #{conformer_forward.44} parent=0 // pred_region
    _
  $region9: #{conformer_forward.44} parent=0 // pred_fallthru
    _
  // Predicated region
  $region10: #{conformer_forward.44} parent=0 // pred_check
    _
  $region11: #{conformer_forward.44} parent=0 // pred_check_branch
    %13 = sbr.rel (0) target = $region13
  $region12: #{conformer_forward.44} parent=0 // pred_region
    _
  $region13: #{conformer_forward.44} parent=0 // pred_fallthru
    _
  %v14 = vld [vmem:[%s0] sm:$0xff]
  %v15 = vld [vmem:[%s0 + $0x8] sm:$0x7f]
  %v16 = vpack.c.bf16 %v15, %v14
  %v17 = vld [vmem:[%s1] sm:$0xf]
  %v18 = vld [vmem:[%s1 + $0x4] sm:$0xf]
  %v19 = vld [vmem:[%s1 + $0x8] sm:$0xf]
  %v20 = vld [vmem:[%s1 + $0xc] sm:$0xf]
  %v21 = vld [vmem:[%s1 + $0x10] sm:$0xf]
  %v22 = vld [vmem:[%s1 + $0x14] sm:$0xf]
  %v23 = vld [vmem:[%s1 + $0x18] sm:$0xf]
  %v24 = vld [vmem:[%s1 + $0x1c] sm:$0xf]
  %v25 = vld [vmem:[%s1 + $0x20] sm:$0xf]
  %v26 = vld [vmem:[%s1 + $0x24] sm:$0xf]
  %v27 = vld [vmem:[%s1 + $0x28] sm:$0xf]
  %v28 = vld [vmem:[%s1 + $0x2c] sm:$0xf]
  %v29 = vld [vmem:[%s1 + $0x30] sm:$0xf]
  %v30 = vld [vmem:[%s1 + $0x34] sm:$0xf]
  %v31 = vld [vmem:[%s1 + $0x38] sm:$0xf]
  %v32 = vld [vmem:[%s1 + $0x3c] sm:$0xf]
  %v33 = vld [vmem:[%s2] sm:$0x1]
  %v35 = vperm.slane %v33, 0
  %v53 = vunpack.c.l.b16 %v17
  %v54 = vunpack.c.l.b16 %v18
  %v55 = vunpack.c.l.b16 %v19
  %v56 = vunpack.c.l.b16 %v20
  %v57 = vunpack.c.l.b16 %v21
  %v58 = vunpack.c.l.b16 %v22
  %v59 = vunpack.c.l.b16 %v23
  %v60 = vunpack.c.l.b16 %v24
  %v61 = vunpack.c.l.b16 %v25
  %v62 = vunpack.c.l.b16 %v26
  %v63 = vunpack.c.l.b16 %v27
  %v64 = vunpack.c.l.b16 %v28
  %v65 = vunpack.c.l.b16 %v29
  %v66 = vunpack.c.l.b16 %v30
  %v67 = vunpack.c.l.b16 %v31
  %v68 = vunpack.c.l.b16 %v32
  %v69 = vpack.c.b16 %v54, %v53
  %v70 = vpack.c.b16 %v56, %v55
  %v71 = vpack.c.b16 %v58, %v57
  %v72 = vpack.c.b16 %v60, %v59
  %v73 = vpack.c.b16 %v62, %v61
  %v74 = vpack.c.b16 %v64, %v63
  %v75 = vpack.c.b16 %v66, %v65
  %v76 = vpack.c.b16 %v68, %v67
  %85 = vmatpush.bf16.msra.mxu0 %v76
  %86 = vmatpush.bf16.msra.mxu0 %v75
  %87 = vmatpush.bf16.msra.mxu0 %v74
  %88 = vmatpush.bf16.msra.mxu0 %v73
  %89 = vmatpush.bf16.msra.mxu0 %v72
  %90 = vmatpush.bf16.msra.mxu0 %v71
  %91 = vmatpush.bf16.msra.mxu0 %v70
  %92 = vmatpush.bf16.msra.mxu0 %v69
  %93 = vmatmul.bf16.gmra.mxu0 %v16
  %v94 = vpop.f32.mrf.mxu0
  %v95 = vadd.f32 %v35, %v94
  %v96 = vpop.f32.mrf.mxu0
  %v97 = vadd.f32 %v35, %v96
  %98 = vdwg.mxu0
  %99 = vst [vmem:[%s3] sm:$0xff] %v95
  %100 = vst [vmem:[%s3 + $0x8] sm:$0x7f] %v97
  // Predicated region
  $region14: #{conformer_forward.44} parent=0 // pred_check
    _
  $region15: #{conformer_forward.44} parent=0 // pred_check_branch
    %102 = sbr.rel (0) target = $region17
  $region16: #{conformer_forward.44} parent=0 // pred_region
    _
  $region17: #{conformer_forward.44} parent=0 // pred_fallthru
    _
  // Predicated region
  $region18: #{conformer_forward.44} parent=0 // pred_check
    _
  $region19: #{conformer_forward.44} parent=0 // pred_check_branch
    %104 = sbr.rel (0) target = $region21
  $region20: #{conformer_forward.44} parent=0 // pred_region
    _
  $region21: #{conformer_forward.44} parent=0 // pred_fallthru
    _

// kernel: conformer_forward.46
$region0: #{conformer_forward.46}
  #allocation0 [shape = 'u32[]', space=smem, size = 0x4, offset = 0x4, fixed_abs, tag = 'smem constant byte address 0x4 - core index']
  #allocation1 [shape = 'u32[72,128]{1,0:T(1,128)}', space=vmem, size = 0x9000, scoped, tag = 'internal scratch']
  %s0 = inlined_call_operand.vmem [shape: f32[30,128], index: 0, kind: input, shape index: {}]
  %s1 = inlined_call_operand.vmem [shape: bf16[128,128], index: 1, kind: input, shape index: {}]
  %s2 = inlined_call_operand.vmem [shape: f32[1,128], index: 2, kind: input, shape index: {}]
  %s3 = inlined_call_operand.vmem [shape: f32[30,128], index: 3, kind: output, shape index: {}]
  %s4 = sld [smem:[#allocation0]]
  $region22: #{conformer_forward.46} parent=0
    _
  %s6 = ssub.s32 1, %s4
  %s7 = scalar_select 0, %s6, %s4
  // Predicated region
  $region2: #{conformer_forward.46} parent=0 // pred_check
    _
  $region3: #{conformer_forward.46} parent=0 // pred_check_branch
    %9 = sbr.rel (0) target = $region5
  $region4: #{conformer_forward.46} parent=0 // pred_region
    _
  $region5: #{conformer_forward.46} parent=0 // pred_fallthru
    _
  // Predicated region
  $region6: #{conformer_forward.46} parent=0 // pred_check
    _
  $region7: #{conformer_forward.46} parent=0 // pred_check_branch
    %11 = sbr.rel (0) target = $region9
  $region8: #{conformer_forward.46} parent=0 // pred_region
    _
  $region9: #{conformer_forward.46} parent=0 // pred_fallthru
    _
  // Predicated region
  $region10: #{conformer_forward.46} parent=0 // pred_check
    _
  $region11: #{conformer_forward.46} parent=0 // pred_check_branch
    %13 = sbr.rel (0) target = $region13
  $region12: #{conformer_forward.46} parent=0 // pred_region
    _
  $region13: #{conformer_forward.46} parent=0 // pred_fallthru
    _
  %v14 = vld [vmem:[%s0] sm:$0xff]
  %v15 = vld [vmem:[%s0 + $0x8] sm:$0xff]
  %v16 = vld [vmem:[%s0 + $0x10] sm:$0xff]
  %v17 = vld [vmem:[%s0 + $0x18] sm:$0x3f]
  %v18 = vpack.c.bf16 %v15, %v14
  %v19 = vpack.c.bf16 %v17, %v16
  %v20 = vld [vmem:[%s1] sm:$0xf]
  %v21 = vld [vmem:[%s1 + $0x4] sm:$0xf]
  %v22 = vld [vmem:[%s1 + $0x8] sm:$0xf]
  %v23 = vld [vmem:[%s1 + $0xc] sm:$0xf]
  %v24 = vld [vmem:[%s1 + $0x10] sm:$0xf]
  %v25 = vld [vmem:[%s1 + $0x14] sm:$0xf]
  %v26 = vld [vmem:[%s1 + $0x18] sm:$0xf]
  %v27 = vld [vmem:[%s1 + $0x1c] sm:$0xf]
  %v28 = vld [vmem:[%s1 + $0x20] sm:$0xf]
  %v29 = vld [vmem:[%s1 + $0x24] sm:$0xf]
  %v30 = vld [vmem:[%s1 + $0x28] sm:$0xf]
  %v31 = vld [vmem:[%s1 + $0x2c] sm:$0xf]
  %v32 = vld [vmem:[%s1 + $0x30] sm:$0xf]
  %v33 = vld [vmem:[%s1 + $0x34] sm:$0xf]
  %v34 = vld [vmem:[%s1 + $0x38] sm:$0xf]
  %v35 = vld [vmem:[%s1 + $0x3c] sm:$0xf]
  %v36 = vld [vmem:[%s2] sm:$0x1]
  %v38 = vperm.slane %v36, 0
  %v56 = vunpack.c.l.b16 %v20
  %v57 = vunpack.c.l.b16 %v21
  %v58 = vunpack.c.l.b16 %v22
  %v59 = vunpack.c.l.b16 %v23
  %v60 = vunpack.c.l.b16 %v24
  %v61 = vunpack.c.l.b16 %v25
  %v62 = vunpack.c.l.b16 %v26
  %v63 = vunpack.c.l.b16 %v27
  %v64 = vunpack.c.l.b16 %v28
  %v65 = vunpack.c.l.b16 %v29
  %v66 = vunpack.c.l.b16 %v30
  %v67 = vunpack.c.l.b16 %v31
  %v68 = vunpack.c.l.b16 %v32
  %v69 = vunpack.c.l.b16 %v33
  %v70 = vunpack.c.l.b16 %v34
  %v71 = vunpack.c.l.b16 %v35
  %v72 = vpack.c.b16 %v57, %v56
  %v73 = vpack.c.b16 %v59, %v58
  %v74 = vpack.c.b16 %v61, %v60
  %v75 = vpack.c.b16 %v63, %v62
  %v76 = vpack.c.b16 %v65, %v64
  %v77 = vpack.c.b16 %v67, %v66
  %v78 = vpack.c.b16 %v69, %v68
  %v79 = vpack.c.b16 %v71, %v70
  %88 = vmatpush.bf16.msra.mxu0 %v79
  %89 = vmatpush.bf16.msra.mxu0 %v78
  %90 = vmatpush.bf16.msra.mxu0 %v77
  %91 = vmatpush.bf16.msra.mxu0 %v76
  %92 = vmatpush.bf16.msra.mxu0 %v75
  %93 = vmatpush.bf16.msra.mxu0 %v74
  %94 = vmatpush.bf16.msra.mxu0 %v73
  %95 = vmatpush.bf16.msra.mxu0 %v72
  %96 = vmatmul.bf16.gmra.mxu0 %v18
  %v97 = vpop.f32.mrf.mxu0
  %v98 = vadd.f32 %v38, %v97
  %v99 = vpop.f32.mrf.mxu0
  %v100 = vadd.f32 %v38, %v99
  %101 = vmatmul.bf16.gmra.mxu0 %v19
  %v102 = vpop.f32.mrf.mxu0
  %v103 = vadd.f32 %v38, %v102
  %v104 = vpop.f32.mrf.mxu0
  %v105 = vadd.f32 %v38, %v104
  %106 = vdwg.mxu0
  %107 = vst [vmem:[%s3] sm:$0xff] %v98
  %108 = vst [vmem:[%s3 + $0x8] sm:$0xff] %v100
  %109 = vst [vmem:[%s3 + $0x10] sm:$0xff] %v103
  %110 = vst [vmem:[%s3 + $0x18] sm:$0x3f] %v105
  // Predicated region
  $region14: #{conformer_forward.46} parent=0 // pred_check
    _
  $region15: #{conformer_forward.46} parent=0 // pred_check_branch
    %112 = sbr.rel (0) target = $region17
  $region16: #{conformer_forward.46} parent=0 // pred_region
    _
  $region17: #{conformer_forward.46} parent=0 // pred_fallthru
    _
  // Predicated region
  $region18: #{conformer_forward.46} parent=0 // pred_check
    _
  $region19: #{conformer_forward.46} parent=0 // pred_check_branch
    %114 = sbr.rel (0) target = $region21
  $region20: #{conformer_forward.46} parent=0 // pred_region
    _
  $region21: #{conformer_forward.46} parent=0 // pred_fallthru
    _

// kernel: conformer_forward.45
$region0: #{conformer_forward.45}
  #allocation0 [shape = 'u32[]', space=smem, size = 0x4, offset = 0x4, fixed_abs, tag = 'smem constant byte address 0x4 - core index']
  #allocation1 [shape = 'u32[72,128]{1,0:T(1,128)}', space=vmem, size = 0x9000, scoped, tag = 'internal scratch']
  %s0 = inlined_call_operand.vmem [shape: f32[2,15,384], index: 0, kind: input, shape index: {}]
  %s1 = inlined_call_operand.vmem [shape: f32[15,128], index: 1, kind: input, shape index: {}]
  %s2 = inlined_call_operand.vmem [shape: f32[1,128], index: 2, kind: input, shape index: {}]
  %s3 = inlined_call_operand.vmem [shape: f32[1,128], index: 3, kind: input, shape index: {}]
  %s4 = inlined_call_operand.vmem [shape: f32[2,1,15], index: 4, kind: input, shape index: {}]
  %s5 = inlined_call_operand.vmem [shape: f32[2,15,128], index: 5, kind: output, shape index: {}]
  %s6 = sld [smem:[#allocation0]]
  $region53: #{conformer_forward.45} parent=0
    _
  %s8 = ssub.s32 1, %s6
  %s9 = scalar_select 0, %s8, %s6
  loop: start=0, step=1, limit=4
  $region2: #{conformer_forward.45} parent=0 // loop_pre_header
    _
  $region3: #{conformer_forward.45} parent=0 // loop_header
    %s11 = sphi 0, %s15
    %p12 = scmp.ge.s32.totalorder %s11, 4
    %s21 = sphi 0, %s23
    %s24 = sphi 0, %s21
    %s25 = sphi 0, %s24
    %s41 = sphi 0, %s25
    %s45 = sphi 0, %s45
    %s47 = sphi 0, %s45
    %s48 = sphi 0, %s47
    %s62 = sphi 0, %s48
    %s66 = sphi 0, %s66
    %s68 = sphi 0, %s66
    %s69 = sphi 0, %s68
    %s83 = sphi 0, %s69
    %s87 = sphi 0, %s87
    %s89 = sphi 0, %s87
    %s90 = sphi 0, %s89
    %s104 = sphi 0, %s90
    %s110 = sphi 0, %s112
    %s113 = sphi 0, %s110
    %s114 = sphi 0, %s113
    %s130 = sphi 0, %s114
    %s136 = sphi 0, %s138
    %s139 = sphi 0, %s136
    %s140 = sphi 0, %s139
    %s156 = sphi 0, %s140
  $region4: #{conformer_forward.45} parent=0 // loop_header_branch
    %14 = sbr.rel (%p12) target = $region8
  $region5: #{conformer_forward.45} parent=0 // loop_body
    %s16 = ssub.s32 %s11, 1
    %s17 = ssub.s32 %s11, 2
    %s18 = sadd.s32 %s11, 1
    %s19 = ssub.s32 %s11, %s18
    %p20 = scmp.eq.s32.totalorder %s19, 0
    %s22 = sadd.s32 %s21, 1
    %s23 = scalar_select %p20, %s21, %s22
    %p26 = pneg %p20
    %p27 = scmp.eq.s32.totalorder %s11, 1
    %p28 = por %p26, %p27
    %p29 = scmp.ne.s32.totalorder %s21, %s24
    %p30 = scmp.eq.s32.totalorder %s11, 0
    %p31 = por %p29, %p30
    %p32 = scmp.ne.s32.totalorder %s21, %s24
    %p33 = scmp.eq.s32.totalorder %s16, 1
    %p34 = por %p32, %p33
    %p35 = scmp.ne.s32.totalorder %s24, %s25
    %p36 = scmp.eq.s32.totalorder %s16, 0
    %p37 = por %p35, %p36
    %p38 = scmp.ne.s32.totalorder %s24, %s25
    %p39 = scmp.eq.s32.totalorder %s17, 1
    %p40 = por %p38, %p39
    %p42 = scmp.ne.s32.totalorder %s25, %s41
    %p43 = scmp.eq.s32.totalorder %s17, 0
    %p44 = por %p42, %p43
    %s46 = sadd.s32 %s45, 1
    %p49 = scmp.eq.s32.totalorder %s11, 1
    %p50 = scmp.ne.s32.totalorder %s45, %s47
    %p51 = scmp.eq.s32.totalorder %s11, 0
    %p52 = por %p50, %p51
    %p53 = scmp.ne.s32.totalorder %s45, %s47
    %p54 = scmp.eq.s32.totalorder %s16, 1
    %p55 = por %p53, %p54
    %p56 = scmp.ne.s32.totalorder %s47, %s48
    %p57 = scmp.eq.s32.totalorder %s16, 0
    %p58 = por %p56, %p57
    %p59 = scmp.ne.s32.totalorder %s47, %s48
    %p60 = scmp.eq.s32.totalorder %s17, 1
    %p61 = por %p59, %p60
    %p63 = scmp.ne.s32.totalorder %s48, %s62
    %p64 = scmp.eq.s32.totalorder %s17, 0
    %p65 = por %p63, %p64
    %s67 = sadd.s32 %s66, 1
    %p70 = scmp.eq.s32.totalorder %s11, 1
    %p71 = scmp.ne.s32.totalorder %s66, %s68
    %p72 = scmp.eq.s32.totalorder %s11, 0
    %p73 = por %p71, %p72
    %p74 = scmp.ne.s32.totalorder %s66, %s68
    %p75 = scmp.eq.s32.totalorder %s16, 1
    %p76 = por %p74, %p75
    %p77 = scmp.ne.s32.totalorder %s68, %s69
    %p78 = scmp.eq.s32.totalorder %s16, 0
    %p79 = por %p77, %p78
    %p80 = scmp.ne.s32.totalorder %s68, %s69
    %p81 = scmp.eq.s32.totalorder %s17, 1
    %p82 = por %p80, %p81
    %p84 = scmp.ne.s32.totalorder %s69, %s83
    %p85 = scmp.eq.s32.totalorder %s17, 0
    %p86 = por %p84, %p85
    %s88 = sadd.s32 %s87, 1
    %p91 = scmp.eq.s32.totalorder %s11, 1
    %p92 = scmp.ne.s32.totalorder %s87, %s89
    %p93 = scmp.eq.s32.totalorder %s11, 0
    %p94 = por %p92, %p93
    %p95 = scmp.ne.s32.totalorder %s87, %s89
    %p96 = scmp.eq.s32.totalorder %s16, 1
    %p97 = por %p95, %p96
    %p98 = scmp.ne.s32.totalorder %s89, %s90
    %p99 = scmp.eq.s32.totalorder %s16, 0
    %p100 = por %p98, %p99
    %p101 = scmp.ne.s32.totalorder %s89, %s90
    %p102 = scmp.eq.s32.totalorder %s17, 1
    %p103 = por %p101, %p102
    %p105 = scmp.ne.s32.totalorder %s90, %s104
    %p106 = scmp.eq.s32.totalorder %s17, 0
    %p107 = por %p105, %p106
    %s108 = ssub.s32 %s11, %s18
    %p109 = scmp.eq.s32.totalorder %s108, 0
    %s111 = sadd.s32 %s110, 1
    %s112 = scalar_select %p109, %s110, %s111
    %p115 = pneg %p109
    %p116 = scmp.eq.s32.totalorder %s11, 1
    %p117 = por %p115, %p116
    %p118 = scmp.ne.s32.totalorder %s110, %s113
    %p119 = scmp.eq.s32.totalorder %s11, 0
    %p120 = por %p118, %p119
    %p121 = scmp.ne.s32.totalorder %s110, %s113
    %p122 = scmp.eq.s32.totalorder %s16, 1
    %p123 = por %p121, %p122
    %p124 = scmp.ne.s32.totalorder %s113, %s114
    %p125 = scmp.eq.s32.totalorder %s16, 0
    %p126 = por %p124, %p125
    %p127 = scmp.ne.s32.totalorder %s113, %s114
    %p128 = scmp.eq.s32.totalorder %s17, 1
    %p129 = por %p127, %p128
    %p131 = scmp.ne.s32.totalorder %s114, %s130
    %p132 = scmp.eq.s32.totalorder %s17, 0
    %p133 = por %p131, %p132
    %s134 = ssub.s32 %s11, %s18
    %p135 = scmp.eq.s32.totalorder %s134, 0
    %s137 = sadd.s32 %s136, 1
    %s138 = scalar_select %p135, %s136, %s137
    %p141 = pneg %p135
    %p142 = scmp.eq.s32.totalorder %s11, 1
    %p143 = por %p141, %p142
    %p144 = scmp.ne.s32.totalorder %s136, %s139
    %p145 = scmp.eq.s32.totalorder %s11, 0
    %p146 = por %p144, %p145
    %p147 = scmp.ne.s32.totalorder %s136, %s139
    %p148 = scmp.eq.s32.totalorder %s16, 1
    %p149 = por %p147, %p148
    %p150 = scmp.ne.s32.totalorder %s139, %s140
    %p151 = scmp.eq.s32.totalorder %s16, 0
    %p152 = por %p150, %p151
    %p153 = scmp.ne.s32.totalorder %s139, %s140
    %p154 = scmp.eq.s32.totalorder %s17, 1
    %p155 = por %p153, %p154
    %p157 = scmp.ne.s32.totalorder %s140, %s156
    %p158 = scmp.eq.s32.totalorder %s17, 0
    %p159 = por %p157, %p158
    %p160 = scmp.le.s32.totalorder 1, %s11
    %p161 = scmp.lt.s32.totalorder %s11, 3
    %p162 = pnand %p160, %p161
    %p163 = pneg %p162
    // Predicated region
    $region9: #{conformer_forward.45} parent=5 // pred_check
      _
    $region10: #{conformer_forward.45} parent=5 // pred_check_branch
      %165 = sbr.rel (%p162) target = $region12
    $region11: #{conformer_forward.45} parent=5 // pred_region
      %s166 = ssub.s32 %s11, 1
      // Predicated region
      $region13: #{conformer_forward.45} parent=11 // pred_check
        %p167 = pneg %p58
      $region14: #{conformer_forward.45} parent=11 // pred_check_branch
        %169 = sbr.rel (%p167) target = $region16
      $region15: #{conformer_forward.45} parent=11 // pred_region
        _
      $region16: #{conformer_forward.45} parent=11 // pred_fallthru
        _
      // Predicated region
      $region17: #{conformer_forward.45} parent=11 // pred_check
        %p170 = pneg %p79
      $region18: #{conformer_forward.45} parent=11 // pred_check_branch
        %172 = sbr.rel (%p170) target = $region20
      $region19: #{conformer_forward.45} parent=11 // pred_region
        _
      $region20: #{conformer_forward.45} parent=11 // pred_fallthru
        _
      // Predicated region
      $region21: #{conformer_forward.45} parent=11 // pred_check
        %p173 = pneg %p100
      $region22: #{conformer_forward.45} parent=11 // pred_check_branch
        %175 = sbr.rel (%p173) target = $region24
      $region23: #{conformer_forward.45} parent=11 // pred_region
        _
      $region24: #{conformer_forward.45} parent=11 // pred_fallthru
        _
    $region12: #{conformer_forward.45} parent=5 // pred_fallthru
      _
    %p176 = scmp.lt.s32.totalorder %s11, 2
    // Predicated region
    $region25: #{conformer_forward.45} parent=5 // pred_check
      %p177 = pneg %p176
    $region26: #{conformer_forward.45} parent=5 // pred_check_branch
      %179 = sbr.rel (%p177) target = $region28
    $region27: #{conformer_forward.45} parent=5 // pred_region
      // Predicated region
      $region29: #{conformer_forward.45} parent=27 // pred_check
        %p180 = pneg %p31
      $region30: #{conformer_forward.45} parent=27 // pred_check_branch
        %182 = sbr.rel (%p180) target = $region32
      $region31: #{conformer_forward.45} parent=27 // pred_region
        %p183 = scmp.lt.s32.totalorder %s11, 1
        %s184 = scalar_select %p183, %s11, 1
        %s185 = smul.addr %s184, 6
        %s186 = smul.addr %s185, 8
        %s187 = scalar_lea.vmem %s0, %s186
      $region32: #{conformer_forward.45} parent=27 // pred_fallthru
        _
      // Predicated region
      $region33: #{conformer_forward.45} parent=27 // pred_check
        %p188 = pneg %p120
      $region34: #{conformer_forward.45} parent=27 // pred_check_branch
        %190 = sbr.rel (%p188) target = $region36
      $region35: #{conformer_forward.45} parent=27 // pred_region
        %p191 = scmp.lt.s32.totalorder %s11, 1
        %s192 = scalar_select %p191, %s11, 1
        %s193 = scalar_lea.vmem %s4, %s192
      $region36: #{conformer_forward.45} parent=27 // pred_fallthru
        _
    $region28: #{conformer_forward.45} parent=5 // pred_fallthru
      _
    %p194 = scmp.le.s32.totalorder 1, %s11
    %p195 = scmp.lt.s32.totalorder %s11, 3
    %p196 = pnand %p194, %p195
    %p197 = pneg %p196
    // Predicated region
    $region37: #{conformer_forward.45} parent=5 // pred_check
      _
    $region38: #{conformer_forward.45} parent=5 // pred_check_branch
      %199 = sbr.rel (%p196) target = $region40
    $region39: #{conformer_forward.45} parent=5 // pred_region
      %s200 = ssub.s32 %s11, 1
      %p201 = scmp.lt.s32.totalorder %s16, 1
      %s202 = scalar_select %p201, %s16, 1
      %s203 = smul.addr %s202, 6
      %s204 = smul.addr %s203, 8
      %s205 = scalar_lea.vmem %s0, %s204
      %p206 = pneg %p37
      %p207 = pneg %p34
      %p208 = pneg %p58
      %p209 = pneg %p55
      %p210 = pneg %p79
      %p211 = pneg %p76
      %p212 = pneg %p100
      %p213 = pneg %p97
      %p214 = scmp.lt.s32.totalorder %s16, 1
      %s215 = scalar_select %p214, %s16, 1
      %s216 = scalar_lea.vmem %s4, %s215
      %p217 = pneg %p126
      %p218 = pneg %p123
      %p219 = pneg %p152
      %p220 = pneg %p149
      %p221 = scmp.lt.s32.totalorder %s16, 1
      %s222 = scalar_select %p221, %s16, 1
      %s223 = smul.addr %s222, 2
      %s224 = smul.addr %s223, 8
      %s225 = scalar_lea.vmem %s5, %s224
      %p226 = scmp.lt.s32.totalorder %s16, 1
      %s227 = scalar_select %p226, %s16, 1
      %s228 = smul.addr %s227, 6
      %s229 = smul.addr %s228, 8
      %s230 = scalar_lea.vmem %s0, %s229
      %p231 = scmp.lt.s32.totalorder %s16, 1
      %s232 = scalar_select %p231, %s16, 1
      %s233 = scalar_lea.vmem %s4, %s232
      %p234 = scmp.lt.s32.totalorder %s16, 1
      %s235 = scalar_select %p234, %s16, 1
      %s236 = smul.addr %s235, 2
      %s237 = smul.addr %s236, 8
      %s238 = scalar_lea.vmem %s5, %s237
      %v240 = vld [vmem:[%s230] sm:$0xff]
      %v241 = vld [vmem:[%s230 + $0x8] sm:$0xff]
      %v242 = vld [vmem:[%s230 + $0x10] sm:$0xff]
      %v243 = vld [vmem:[%s230 + $0x18] sm:$0x7f]
      %v244 = vld [vmem:[%s230 + $0x20] sm:$0x7f]
      %v245 = vld [vmem:[%s230 + $0x28] sm:$0x7f]
      %v246 = vld [vmem:[%s1] sm:$0xff]
      %v247 = vld [vmem:[%s1 + $0x8] sm:$0x7f]
      %v248 = vld [vmem:[%s2] sm:$0x1]
      %v250 = vperm.slane %v248, 0
      %v252 = vadd.f32 %v240, %v250
      %v253 = vadd.f32 %v243, %v250
      %v254 = vld [vmem:[%s3] sm:$0x1]
      %v256 = vperm.slane %v254, 0
      %v258 = vadd.f32 %v240, %v256
      %v259 = vadd.f32 %v243, %v256
      %v260 = vld [vmem:[%s233] sm:$0x1]
      %263 = vrot.lane.b32.xlu0 %v258, 32
      %v264 = vpop.permute.xlu0 %263
      %265 = vrot.lane.b32.xlu0 %v259, 32
      %v266 = vpop.permute.xlu0 %265
      %vm269 = vcmask 261120
      %v270 = vsel %vm269, %v252, %v264
      %v271 = vsel %vm269, %v253, %v266
      %v272 = vpack.c.bf16 %v271, %v270
      %275 = vrot.lane.b32.xlu0 %v246, 32
      %v276 = vpop.permute.xlu0 %275
      %277 = vrot.lane.b32.xlu0 %v247, 32
      %v278 = vpop.permute.xlu0 %277
      %v281 = vsel %vm269, %v241, %v276
      %v282 = vsel %vm269, %v244, %v278
      %v283 = vpack.c.bf16 %v282, %v281
      %vm284 = vcmask 523264
      %v286 = vsel %vm284, %v272, 0
      %v289 = vsel %vm284, %v283, 0
      %291 = vmatpush.bf16.xpose.msra.mxu0 0
      %292 = vmatpush.bf16.xpose.msra.mxu0 0
      %293 = vmatpush.bf16.xpose.msra.mxu0 0
      %294 = vmatpush.bf16.xpose.msra.mxu0 0
      %295 = vmatpush.bf16.xpose.msra.mxu0 0
      %296 = vmatpush.bf16.xpose.msra.mxu0 0
      %297 = vmatpush.bf16.xpose.msra.mxu0 0
      %298 = vmatpush.bf16.xpose.msra.mxu0 %v289
      %299 = vmatmul.bf16.gmra.mxu0 %v286
      %v300 = vpop.f32.mrf.mxu0
      %v301 = vadd.f32 0.0, %v300
      %v302 = vpop.f32.mrf.mxu0
      %v303 = vadd.f32 0.0, %v302
      %304 = vdwg.mxu0
      %v305 = vmul.f32 %v301, 0.17677669
      %v306 = vmul.f32 %v303, 0.17677669
      %v308 = vperm.slane %v260, 0
      %v310 = vadd.f32 %v305, %v308
      %v311 = vadd.f32 %v306, %v308
      %vm312 = vcmask 121856
      %v313 = vsel %vm312, %v310, -inf
      %314 = vmax.xlane.f32.xlu0 %v313
      %v315 = vpop.xlane.xlu0 %314
      %vm316 = vcmask 120832
      %v317 = vsel %vm316, %v311, -inf
      %318 = vmax.xlane.f32.xlu0 %v317
      %v319 = vpop.xlane.xlu0 %318
      %v320 = vsub.f32 %v310, %v315
      %v321 = vsub.f32 %v311, %v319
      %v322 = vmul.f32 %v320, 1.442695
      %v323 = vpow.pop %v322
      %v324 = vmul.f32 %v321, 1.442695
      %v325 = vpow.pop %v324
      %v326 = vsel %vm312, %v323, 0.0
      %327 = vadd.xlane.f32.xlu0 %v326
      %v328 = vpop.xlane.xlu0 %327
      %v329 = vsel %vm316, %v325, 0.0
      %330 = vadd.xlane.f32.xlu0 %v329
      %v331 = vpop.xlane.xlu0 %330
      %v332 = vrcp.pop %v328
      %v333 = vrcp.pop %v331
      %v334 = vmul.f32 %v323, %v332
      %v335 = vmul.f32 %v325, %v333
      %v336 = vpack.c.bf16 %v335, %v334
      %v337 = vpack.c.bf16 %v245, %v242
      %v339 = vsel %vm312, %v336, 0
      %vm341 = vcmask 1046528
      %vm342 = vcmask 1047552
      %v343 = vsel %vm341, 4294967295, 65535
      %v344 = vsel %vm342, %v343, 0
      %v346 = vand.u32 %v337, %v344
      %348 = vmatpush.bf16.msra.mxu0 0
      %349 = vmatpush.bf16.msra.mxu0 0
      %350 = vmatpush.bf16.msra.mxu0 0
      %351 = vmatpush.bf16.msra.mxu0 0
      %352 = vmatpush.bf16.msra.mxu0 0
      %353 = vmatpush.bf16.msra.mxu0 0
      %354 = vmatpush.bf16.msra.mxu0 0
      %355 = vmatpush.bf16.msra.mxu0 %v346
      %356 = vmatmul.bf16.gmra.mxu0 %v339
      %v357 = vpop.f32.mrf.mxu0
      %v358 = vadd.f32 0.0, %v357
      %v359 = vpop.f32.mrf.mxu0
      %v360 = vadd.f32 0.0, %v359
      %361 = vdwg.mxu0
      %364 = vrot.lane.b32.xlu0 %v252, 96
      %v365 = vpop.permute.xlu0 %364
      %366 = vrot.lane.b32.xlu0 %v253, 96
      %v367 = vpop.permute.xlu0 %366
      %v370 = vsel %vm269, %v365, %v258
      %v371 = vsel %vm269, %v367, %v259
      %v372 = vpack.c.bf16 %v371, %v370
      %375 = vrot.lane.b32.xlu0 %v241, 96
      %v376 = vpop.permute.xlu0 %375
      %377 = vrot.lane.b32.xlu0 %v244, 96
      %v378 = vpop.permute.xlu0 %377
      %v381 = vsel %vm269, %v376, %v246
      %v382 = vsel %vm269, %v378, %v247
      %v383 = vpack.c.bf16 %v382, %v381
      %v385 = vsel %vm284, %v372, 0
      %v388 = vsel %vm284, %v383, 0
      %390 = vmatpush.bf16.xpose.msra.mxu0 0
      %391 = vmatpush.bf16.xpose.msra.mxu0 0
      %392 = vmatpush.bf16.xpose.msra.mxu0 0
      %393 = vmatpush.bf16.xpose.msra.mxu0 0
      %394 = vmatpush.bf16.xpose.msra.mxu0 0
      %395 = vmatpush.bf16.xpose.msra.mxu0 0
      %396 = vmatpush.bf16.xpose.msra.mxu0 0
      %397 = vmatpush.bf16.xpose.msra.mxu0 %v388
      %398 = vmatmul.bf16.gmra.mxu0 %v385
      %v399 = vpop.f32.mrf.mxu0
      %v400 = vadd.f32 0.0, %v399
      %v401 = vpop.f32.mrf.mxu0
      %v402 = vadd.f32 0.0, %v401
      %403 = vdwg.mxu0
      %v404 = vmul.f32 %v400, 0.17677669
      %v405 = vmul.f32 %v402, 0.17677669
      %v406 = vadd.f32 %v404, %v308
      %v407 = vadd.f32 %v405, %v308
      %v408 = vsel %vm312, %v406, -inf
      %409 = vmax.xlane.f32.xlu0 %v408
      %v410 = vpop.xlane.xlu0 %409
      %v411 = vsel %vm316, %v407, -inf
      %412 = vmax.xlane.f32.xlu0 %v411
      %v413 = vpop.xlane.xlu0 %412
      %v414 = vsub.f32 %v406, %v410
      %v415 = vsub.f32 %v407, %v413
      %v416 = vmul.f32 %v414, 1.442695
      %v417 = vpow.pop %v416
      %v418 = vmul.f32 %v415, 1.442695
      %v419 = vpow.pop %v418
      %v420 = vsel %vm312, %v417, 0.0
      %421 = vadd.xlane.f32.xlu0 %v420
      %v422 = vpop.xlane.xlu0 %421
      %v423 = vsel %vm316, %v419, 0.0
      %424 = vadd.xlane.f32.xlu0 %v423
      %v425 = vpop.xlane.xlu0 %424
      %v426 = vrcp.pop %v422
      %v427 = vrcp.pop %v425
      %v428 = vmul.f32 %v417, %v426
      %v429 = vmul.f32 %v419, %v427
      %v430 = vpack.c.bf16 %v429, %v428
      %432 = vrot.lane.b32.xlu0 %v337, 96
      %v433 = vpop.permute.xlu0 %432
      %v435 = vsel %vm312, %v430, 0
      %v438 = vand.u32 %v433, %v344
      %440 = vmatpush.bf16.msra.mxu0 0
      %441 = vmatpush.bf16.msra.mxu0 0
      %442 = vmatpush.bf16.msra.mxu0 0
      %443 = vmatpush.bf16.msra.mxu0 0
      %444 = vmatpush.bf16.msra.mxu0 0
      %445 = vmatpush.bf16.msra.mxu0 0
      %446 = vmatpush.bf16.msra.mxu0 0
      %447 = vmatpush.bf16.msra.mxu0 %v438
      %448 = vmatmul.bf16.gmra.mxu0 %v435
      %v449 = vpop.f32.mrf.mxu0
      %v450 = vadd.f32 0.0, %v449
      %v451 = vpop.f32.mrf.mxu0
      %v452 = vadd.f32 0.0, %v451
      %453 = vdwg.mxu0
      %454 = vrot.lane.b32.xlu0 %v252, 64
      %v455 = vpop.permute.xlu0 %454
      %456 = vrot.lane.b32.xlu0 %v253, 64
      %v457 = vpop.permute.xlu0 %456
      %460 = vrot.lane.b32.xlu0 %v258, 96
      %v461 = vpop.permute.xlu0 %460
      %462 = vrot.lane.b32.xlu0 %v259, 96
      %v463 = vpop.permute.xlu0 %462
      %v466 = vsel %vm269, %v455, %v461
      %v467 = vsel %vm269, %v457, %v463
      %v468 = vpack.c.bf16 %v467, %v466
      %469 = vrot.lane.b32.xlu0 %v241, 64
      %v470 = vpop.permute.xlu0 %469
      %471 = vrot.lane.b32.xlu0 %v244, 64
      %v472 = vpop.permute.xlu0 %471
      %475 = vrot.lane.b32.xlu0 %v246, 96
      %v476 = vpop.permute.xlu0 %475
      %477 = vrot.lane.b32.xlu0 %v247, 96
      %v478 = vpop.permute.xlu0 %477
      %v481 = vsel %vm269, %v470, %v476
      %v482 = vsel %vm269, %v472, %v478
      %v483 = vpack.c.bf16 %v482, %v481
      %v485 = vsel %vm284, %v468, 0
      %v488 = vsel %vm284, %v483, 0
      %490 = vmatpush.bf16.xpose.msra.mxu0 0
      %491 = vmatpush.bf16.xpose.msra.mxu0 0
      %492 = vmatpush.bf16.xpose.msra.mxu0 0
      %493 = vmatpush.bf16.xpose.msra.mxu0 0
      %494 = vmatpush.bf16.xpose.msra.mxu0 0
      %495 = vmatpush.bf16.xpose.msra.mxu0 0
      %496 = vmatpush.bf16.xpose.msra.mxu0 0
      %497 = vmatpush.bf16.xpose.msra.mxu0 %v488
      %498 = vmatmul.bf16.gmra.mxu0 %v485
      %v499 = vpop.f32.mrf.mxu0
      %v500 = vadd.f32 0.0, %v499
      %v501 = vpop.f32.mrf.mxu0
      %v502 = vadd.f32 0.0, %v501
      %503 = vdwg.mxu0
      %v504 = vmul.f32 %v500, 0.17677669
      %v505 = vmul.f32 %v502, 0.17677669
      %v506 = vadd.f32 %v504, %v308
      %v507 = vadd.f32 %v505, %v308
      %v508 = vsel %vm312, %v506, -inf
      %509 = vmax.xlane.f32.xlu0 %v508
      %v510 = vpop.xlane.xlu0 %509
      %v511 = vsel %vm316, %v507, -inf
      %512 = vmax.xlane.f32.xlu0 %v511
      %v513 = vpop.xlane.xlu0 %512
      %v514 = vsub.f32 %v506, %v510
      %v515 = vsub.f32 %v507, %v513
      %v516 = vmul.f32 %v514, 1.442695
      %v517 = vpow.pop %v516
      %v518 = vmul.f32 %v515, 1.442695
      %v519 = vpow.pop %v518
      %v520 = vsel %vm312, %v517, 0.0
      %521 = vadd.xlane.f32.xlu0 %v520
      %v522 = vpop.xlane.xlu0 %521
      %v523 = vsel %vm316, %v519, 0.0
      %524 = vadd.xlane.f32.xlu0 %v523
      %v525 = vpop.xlane.xlu0 %524
      %v526 = vrcp.pop %v522
      %v527 = vrcp.pop %v525
      %v528 = vmul.f32 %v517, %v526
      %v529 = vmul.f32 %v519, %v527
      %v530 = vpack.c.bf16 %v529, %v528
      %531 = vrot.lane.b32.xlu0 %v337, 64
      %v532 = vpop.permute.xlu0 %531
      %v534 = vsel %vm312, %v530, 0
      %v537 = vand.u32 %v532, %v344
      %539 = vmatpush.bf16.msra.mxu0 0
      %540 = vmatpush.bf16.msra.mxu0 0
      %541 = vmatpush.bf16.msra.mxu0 0
      %542 = vmatpush.bf16.msra.mxu0 0
      %543 = vmatpush.bf16.msra.mxu0 0
      %544 = vmatpush.bf16.msra.mxu0 0
      %545 = vmatpush.bf16.msra.mxu0 0
      %546 = vmatpush.bf16.msra.mxu0 %v537
      %547 = vmatmul.bf16.gmra.mxu0 %v534
      %v548 = vpop.f32.mrf.mxu0
      %v549 = vadd.f32 0.0, %v548
      %v550 = vpop.f32.mrf.mxu0
      %v551 = vadd.f32 0.0, %v550
      %552 = vdwg.mxu0
      %553 = vrot.lane.b32.xlu0 %v252, 32
      %v554 = vpop.permute.xlu0 %553
      %555 = vrot.lane.b32.xlu0 %v253, 32
      %v556 = vpop.permute.xlu0 %555
      %559 = vrot.lane.b32.xlu0 %v258, 64
      %v560 = vpop.permute.xlu0 %559
      %561 = vrot.lane.b32.xlu0 %v259, 64
      %v562 = vpop.permute.xlu0 %561
      %v565 = vsel %vm269, %v554, %v560
      %v566 = vsel %vm269, %v556, %v562
      %v567 = vpack.c.bf16 %v566, %v565
      %568 = vrot.lane.b32.xlu0 %v241, 32
      %v569 = vpop.permute.xlu0 %568
      %570 = vrot.lane.b32.xlu0 %v244, 32
      %v571 = vpop.permute.xlu0 %570
      %574 = vrot.lane.b32.xlu0 %v246, 64
      %v575 = vpop.permute.xlu0 %574
      %576 = vrot.lane.b32.xlu0 %v247, 64
      %v577 = vpop.permute.xlu0 %576
      %v580 = vsel %vm269, %v569, %v575
      %v581 = vsel %vm269, %v571, %v577
      %v582 = vpack.c.bf16 %v581, %v580
      %v584 = vsel %vm284, %v567, 0
      %v587 = vsel %vm284, %v582, 0
      %589 = vmatpush.bf16.xpose.msra.mxu0 0
      %590 = vmatpush.bf16.xpose.msra.mxu0 0
      %591 = vmatpush.bf16.xpose.msra.mxu0 0
      %592 = vmatpush.bf16.xpose.msra.mxu0 0
      %593 = vmatpush.bf16.xpose.msra.mxu0 0
      %594 = vmatpush.bf16.xpose.msra.mxu0 0
      %595 = vmatpush.bf16.xpose.msra.mxu0 0
      %596 = vmatpush.bf16.xpose.msra.mxu0 %v587
      %597 = vmatmul.bf16.gmra.mxu0 %v584
      %v598 = vpop.f32.mrf.mxu0
      %v599 = vadd.f32 0.0, %v598
      %v600 = vpop.f32.mrf.mxu0
      %v601 = vadd.f32 0.0, %v600
      %602 = vdwg.mxu0
      %v603 = vmul.f32 %v599, 0.17677669
      %v604 = vmul.f32 %v601, 0.17677669
      %v605 = vadd.f32 %v603, %v308
      %v606 = vadd.f32 %v604, %v308
      %v607 = vsel %vm312, %v605, -inf
      %608 = vmax.xlane.f32.xlu0 %v607
      %v609 = vpop.xlane.xlu0 %608
      %v610 = vsel %vm316, %v606, -inf
      %611 = vmax.xlane.f32.xlu0 %v610
      %v612 = vpop.xlane.xlu0 %611
      %v613 = vsub.f32 %v605, %v609
      %v614 = vsub.f32 %v606, %v612
      %v615 = vmul.f32 %v613, 1.442695
      %v616 = vpow.pop %v615
      %v617 = vmul.f32 %v614, 1.442695
      %v618 = vpow.pop %v617
      %v619 = vsel %vm312, %v616, 0.0
      %620 = vadd.xlane.f32.xlu0 %v619
      %v621 = vpop.xlane.xlu0 %620
      %v622 = vsel %vm316, %v618, 0.0
      %623 = vadd.xlane.f32.xlu0 %v622
      %v624 = vpop.xlane.xlu0 %623
      %v625 = vrcp.pop %v621
      %v626 = vrcp.pop %v624
      %v627 = vmul.f32 %v616, %v625
      %v628 = vmul.f32 %v618, %v626
      %v629 = vpack.c.bf16 %v628, %v627
      %630 = vrot.lane.b32.xlu0 %v337, 32
      %v631 = vpop.permute.xlu0 %630
      %v633 = vsel %vm312, %v629, 0
      %v636 = vand.u32 %v631, %v344
      %638 = vmatpush.bf16.msra.mxu0 0
      %639 = vmatpush.bf16.msra.mxu0 0
      %640 = vmatpush.bf16.msra.mxu0 0
      %641 = vmatpush.bf16.msra.mxu0 0
      %642 = vmatpush.bf16.msra.mxu0 0
      %643 = vmatpush.bf16.msra.mxu0 0
      %644 = vmatpush.bf16.msra.mxu0 0
      %645 = vmatpush.bf16.msra.mxu0 %v636
      %646 = vmatmul.bf16.gmra.mxu0 %v633
      %v647 = vpop.f32.mrf.mxu0
      %v648 = vadd.f32 0.0, %v647
      %v649 = vpop.f32.mrf.mxu0
      %v650 = vadd.f32 0.0, %v649
      %651 = vdwg.mxu0
      %654 = vrot.lane.b32.xlu0 %v450, 32
      %v655 = vpop.permute.xlu0 %654
      %656 = vrot.lane.b32.xlu0 %v452, 32
      %v657 = vpop.permute.xlu0 %656
      %662 = vrot.lane.b32.xlu0 %v549, 64
      %v663 = vpop.permute.xlu0 %662
      %664 = vrot.lane.b32.xlu0 %v551, 64
      %v665 = vpop.permute.xlu0 %664
      %670 = vrot.lane.b32.xlu0 %v648, 96
      %v671 = vpop.permute.xlu0 %670
      %672 = vrot.lane.b32.xlu0 %v650, 96
      %v673 = vpop.permute.xlu0 %672
      %v676 = vsel %vm269, %v358, %v655
      %v677 = vsel %vm269, %v360, %v657
      %v678 = vsel %vm284, %v676, %v663
      %v679 = vsel %vm284, %v677, %v665
      %vm680 = vcmask 785408
      %v681 = vsel %vm680, %v678, %v671
      %v682 = vsel %vm680, %v679, %v673
      %683 = vst [vmem:[%s238] sm:$0xff] %v681
      %684 = vst [vmem:[%s238 + $0x8] sm:$0x7f] %v682
      %p685 = scmp.lt.s32.totalorder %s16, 1
      %s686 = scalar_select %p685, %s16, 1
      %s687 = smul.addr %s686, 2
      %s688 = smul.addr %s687, 8
      %s689 = scalar_lea.vmem %s5, %s688
      // Predicated region
      $region41: #{conformer_forward.45} parent=39 // pred_check
        %p690 = pneg %p149
      $region42: #{conformer_forward.45} parent=39 // pred_check_branch
        %692 = sbr.rel (%p690) target = $region44
      $region43: #{conformer_forward.45} parent=39 // pred_region
        _
      $region44: #{conformer_forward.45} parent=39 // pred_fallthru
        _
    $region40: #{conformer_forward.45} parent=5 // pred_fallthru
      _
    %p693 = scmp.le.s32.totalorder 2, %s11
    // Predicated region
    $region45: #{conformer_forward.45} parent=5 // pred_check
      %p694 = pneg %p693
    $region46: #{conformer_forward.45} parent=5 // pred_check_branch
      %696 = sbr.rel (%p694) target = $region48
    $region47: #{conformer_forward.45} parent=5 // pred_region
      %s697 = ssub.s32 %s11, 2
      // Predicated region
      $region49: #{conformer_forward.45} parent=47 // pred_check
        %p698 = pneg %p155
      $region50: #{conformer_forward.45} parent=47 // pred_check_branch
        %700 = sbr.rel (%p698) target = $region52
      $region51: #{conformer_forward.45} parent=47 // pred_region
        %p701 = scmp.lt.s32.totalorder %s17, 1
        %s702 = scalar_select %p701, %s17, 1
        %s703 = smul.addr %s702, 2
        %s704 = smul.addr %s703, 8
        %s705 = scalar_lea.vmem %s5, %s704
      $region52: #{conformer_forward.45} parent=47 // pred_fallthru
        _
    $region48: #{conformer_forward.45} parent=5 // pred_fallthru
      _
  $region6: #{conformer_forward.45} parent=0 // loop_footer
    %s15 = sadd.s32 1, %s11
  $region7: #{conformer_forward.45} parent=0 // loop_footer_branch
    %10 = sbr.rel target = $region3
  $region8: #{conformer_forward.45} parent=0 // loop_exit
    _

// kernel: conformer_forward.49
$region0: #{conformer_forward.49}
  #allocation0 [shape = 'u32[]', space=smem, size = 0x4, offset = 0x4, fixed_abs, tag = 'smem constant byte address 0x4 - core index']
  #allocation1 [shape = 'u32[72,128]{1,0:T(1,128)}', space=vmem, size = 0x9000, scoped, tag = 'internal scratch']
  %s0 = inlined_call_operand.vmem [shape: f32[2,29,128], index: 0, kind: input, shape index: {}]
  %s1 = inlined_call_operand.vmem [shape: f32[15,128], index: 1, kind: input, shape index: {}]
  %s2 = inlined_call_operand.vmem [shape: f32[1,128], index: 2, kind: input, shape index: {}]
  %s3 = inlined_call_operand.vmem [shape: f32[2,15,128], index: 3, kind: output, shape index: {}]
  %s4 = sld [smem:[#allocation0]]
  $region45: #{conformer_forward.49} parent=0
    _
  %s6 = ssub.s32 1, %s4
  %s7 = scalar_select 0, %s6, %s4
  loop: start=0, step=1, limit=4
  $region2: #{conformer_forward.49} parent=0 // loop_pre_header
    _
  $region3: #{conformer_forward.49} parent=0 // loop_header
    %s9 = sphi 0, %s13
    %p10 = scmp.ge.s32.totalorder %s9, 4
    %s19 = sphi 0, %s21
    %s22 = sphi 0, %s19
    %s23 = sphi 0, %s22
    %s39 = sphi 0, %s23
    %s43 = sphi 0, %s43
    %s45 = sphi 0, %s43
    %s46 = sphi 0, %s45
    %s60 = sphi 0, %s46
    %s64 = sphi 0, %s64
    %s66 = sphi 0, %s64
    %s67 = sphi 0, %s66
    %s81 = sphi 0, %s67
    %s87 = sphi 0, %s89
    %s90 = sphi 0, %s87
    %s91 = sphi 0, %s90
    %s107 = sphi 0, %s91
  $region4: #{conformer_forward.49} parent=0 // loop_header_branch
    %12 = sbr.rel (%p10) target = $region8
  $region5: #{conformer_forward.49} parent=0 // loop_body
    %s14 = ssub.s32 %s9, 1
    %s15 = ssub.s32 %s9, 2
    %s16 = sadd.s32 %s9, 1
    %s17 = ssub.s32 %s9, %s16
    %p18 = scmp.eq.s32.totalorder %s17, 0
    %s20 = sadd.s32 %s19, 1
    %s21 = scalar_select %p18, %s19, %s20
    %p24 = pneg %p18
    %p25 = scmp.eq.s32.totalorder %s9, 1
    %p26 = por %p24, %p25
    %p27 = scmp.ne.s32.totalorder %s19, %s22
    %p28 = scmp.eq.s32.totalorder %s9, 0
    %p29 = por %p27, %p28
    %p30 = scmp.ne.s32.totalorder %s19, %s22
    %p31 = scmp.eq.s32.totalorder %s14, 1
    %p32 = por %p30, %p31
    %p33 = scmp.ne.s32.totalorder %s22, %s23
    %p34 = scmp.eq.s32.totalorder %s14, 0
    %p35 = por %p33, %p34
    %p36 = scmp.ne.s32.totalorder %s22, %s23
    %p37 = scmp.eq.s32.totalorder %s15, 1
    %p38 = por %p36, %p37
    %p40 = scmp.ne.s32.totalorder %s23, %s39
    %p41 = scmp.eq.s32.totalorder %s15, 0
    %p42 = por %p40, %p41
    %s44 = sadd.s32 %s43, 1
    %p47 = scmp.eq.s32.totalorder %s9, 1
    %p48 = scmp.ne.s32.totalorder %s43, %s45
    %p49 = scmp.eq.s32.totalorder %s9, 0
    %p50 = por %p48, %p49
    %p51 = scmp.ne.s32.totalorder %s43, %s45
    %p52 = scmp.eq.s32.totalorder %s14, 1
    %p53 = por %p51, %p52
    %p54 = scmp.ne.s32.totalorder %s45, %s46
    %p55 = scmp.eq.s32.totalorder %s14, 0
    %p56 = por %p54, %p55
    %p57 = scmp.ne.s32.totalorder %s45, %s46
    %p58 = scmp.eq.s32.totalorder %s15, 1
    %p59 = por %p57, %p58
    %p61 = scmp.ne.s32.totalorder %s46, %s60
    %p62 = scmp.eq.s32.totalorder %s15, 0
    %p63 = por %p61, %p62
    %s65 = sadd.s32 %s64, 1
    %p68 = scmp.eq.s32.totalorder %s9, 1
    %p69 = scmp.ne.s32.totalorder %s64, %s66
    %p70 = scmp.eq.s32.totalorder %s9, 0
    %p71 = por %p69, %p70
    %p72 = scmp.ne.s32.totalorder %s64, %s66
    %p73 = scmp.eq.s32.totalorder %s14, 1
    %p74 = por %p72, %p73
    %p75 = scmp.ne.s32.totalorder %s66, %s67
    %p76 = scmp.eq.s32.totalorder %s14, 0
    %p77 = por %p75, %p76
    %p78 = scmp.ne.s32.totalorder %s66, %s67
    %p79 = scmp.eq.s32.totalorder %s15, 1
    %p80 = por %p78, %p79
    %p82 = scmp.ne.s32.totalorder %s67, %s81
    %p83 = scmp.eq.s32.totalorder %s15, 0
    %p84 = por %p82, %p83
    %s85 = ssub.s32 %s9, %s16
    %p86 = scmp.eq.s32.totalorder %s85, 0
    %s88 = sadd.s32 %s87, 1
    %s89 = scalar_select %p86, %s87, %s88
    %p92 = pneg %p86
    %p93 = scmp.eq.s32.totalorder %s9, 1
    %p94 = por %p92, %p93
    %p95 = scmp.ne.s32.totalorder %s87, %s90
    %p96 = scmp.eq.s32.totalorder %s9, 0
    %p97 = por %p95, %p96
    %p98 = scmp.ne.s32.totalorder %s87, %s90
    %p99 = scmp.eq.s32.totalorder %s14, 1
    %p100 = por %p98, %p99
    %p101 = scmp.ne.s32.totalorder %s90, %s91
    %p102 = scmp.eq.s32.totalorder %s14, 0
    %p103 = por %p101, %p102
    %p104 = scmp.ne.s32.totalorder %s90, %s91
    %p105 = scmp.eq.s32.totalorder %s15, 1
    %p106 = por %p104, %p105
    %p108 = scmp.ne.s32.totalorder %s91, %s107
    %p109 = scmp.eq.s32.totalorder %s15, 0
    %p110 = por %p108, %p109
    %p111 = scmp.le.s32.totalorder 1, %s9
    %p112 = scmp.lt.s32.totalorder %s9, 3
    %p113 = pnand %p111, %p112
    %p114 = pneg %p113
    // Predicated region
    $region9: #{conformer_forward.49} parent=5 // pred_check
      _
    $region10: #{conformer_forward.49} parent=5 // pred_check_branch
      %116 = sbr.rel (%p113) target = $region12
    $region11: #{conformer_forward.49} parent=5 // pred_region
      %s117 = ssub.s32 %s9, 1
      // Predicated region
      $region13: #{conformer_forward.49} parent=11 // pred_check
        %p118 = pneg %p56
      $region14: #{conformer_forward.49} parent=11 // pred_check_branch
        %120 = sbr.rel (%p118) target = $region16
      $region15: #{conformer_forward.49} parent=11 // pred_region
        _
      $region16: #{conformer_forward.49} parent=11 // pred_fallthru
        _
      // Predicated region
      $region17: #{conformer_forward.49} parent=11 // pred_check
        %p121 = pneg %p77
      $region18: #{conformer_forward.49} parent=11 // pred_check_branch
        %123 = sbr.rel (%p121) target = $region20
      $region19: #{conformer_forward.49} parent=11 // pred_region
        _
      $region20: #{conformer_forward.49} parent=11 // pred_fallthru
        _
    $region12: #{conformer_forward.49} parent=5 // pred_fallthru
      _
    %p124 = scmp.lt.s32.totalorder %s9, 2
    // Predicated region
    $region21: #{conformer_forward.49} parent=5 // pred_check
      %p125 = pneg %p124
    $region22: #{conformer_forward.49} parent=5 // pred_check_branch
      %127 = sbr.rel (%p125) target = $region24
    $region23: #{conformer_forward.49} parent=5 // pred_region
      // Predicated region
      $region25: #{conformer_forward.49} parent=23 // pred_check
        %p128 = pneg %p29
      $region26: #{conformer_forward.49} parent=23 // pred_check_branch
        %130 = sbr.rel (%p128) target = $region28
      $region27: #{conformer_forward.49} parent=23 // pred_region
        %p131 = scmp.lt.s32.totalorder %s9, 1
        %s132 = scalar_select %p131, %s9, 1
        %s133 = smul.addr %s132, 4
        %s134 = smul.addr %s133, 8
        %s135 = scalar_lea.vmem %s0, %s134
      $region28: #{conformer_forward.49} parent=23 // pred_fallthru
        _
    $region24: #{conformer_forward.49} parent=5 // pred_fallthru
      _
    %p136 = scmp.le.s32.totalorder 1, %s9
    %p137 = scmp.lt.s32.totalorder %s9, 3
    %p138 = pnand %p136, %p137
    %p139 = pneg %p138
    // Predicated region
    $region29: #{conformer_forward.49} parent=5 // pred_check
      _
    $region30: #{conformer_forward.49} parent=5 // pred_check_branch
      %141 = sbr.rel (%p138) target = $region32
    $region31: #{conformer_forward.49} parent=5 // pred_region
      %s142 = ssub.s32 %s9, 1
      %p143 = scmp.lt.s32.totalorder %s14, 1
      %s144 = scalar_select %p143, %s14, 1
      %s145 = smul.addr %s144, 4
      %s146 = smul.addr %s145, 8
      %s147 = scalar_lea.vmem %s0, %s146
      %p148 = pneg %p35
      %p149 = pneg %p32
      %p150 = pneg %p56
      %p151 = pneg %p53
      %p152 = pneg %p77
      %p153 = pneg %p74
      %p154 = pneg %p103
      %p155 = pneg %p100
      %p156 = scmp.lt.s32.totalorder %s14, 1
      %s157 = scalar_select %p156, %s14, 1
      %s158 = smul.addr %s157, 2
      %s159 = smul.addr %s158, 8
      %s160 = scalar_lea.vmem %s3, %s159
      %p161 = scmp.lt.s32.totalorder %s14, 1
      %s162 = scalar_select %p161, %s14, 1
      %s163 = smul.addr %s162, 4
      %s164 = smul.addr %s163, 8
      %s165 = scalar_lea.vmem %s0, %s164
      %p166 = scmp.lt.s32.totalorder %s14, 1
      %s167 = scalar_select %p166, %s14, 1
      %s168 = smul.addr %s167, 2
      %s169 = smul.addr %s168, 8
      %s170 = scalar_lea.vmem %s3, %s169
      %v171 = vld [vmem:[%s165] sm:$0xff]
      %v172 = vld [vmem:[%s165 + $0x8] sm:$0xff]
      %v173 = vld [vmem:[%s165 + $0x10] sm:$0xff]
      %v174 = vld [vmem:[%s165 + $0x18] sm:$0x1f]
      %v175 = vld [vmem:[%s1] sm:$0xff]
      %v176 = vld [vmem:[%s1 + $0x8] sm:$0x7f]
      %v177 = vperm.slane %v175, 0
      %v178 = vmul.f32 %v171, %v177
      %v179 = vmul.f32 %v172, %v177
      %v180 = vld [vmem:[%s2] sm:$0x1]
      %v182 = vperm.slane %v180, 0
      %v184 = vadd.f32 %v178, %v182
      %v185 = vadd.f32 %v179, %v182
      %v186 = vperm.slane %v175, 1
      %v187 = vmul.f32 %v171, %v186
      %v188 = vmul.f32 %v172, %v186
      %vm191 = vcmask 1046528
      %v192 = vrot.slane %v187, 1
      %v193 = vrot.slane %v188, 1
      %v194 = vsel %vm191, %v192, %v193
      %v197 = vadd.f32 %v184, %v194
      %v198 = vadd.f32 %v185, %v193
      %v199 = vperm.slane %v175, 2
      %v200 = vmul.f32 %v171, %v199
      %v201 = vmul.f32 %v172, %v199
      %v202 = vmul.f32 %v173, %v199
      %vm206 = vcmask 1045504
      %v207 = vrot.slane %v200, 2
      %v208 = vrot.slane %v201, 2
      %v209 = vsel %vm206, %v207, %v208
      %v210 = vrot.slane %v202, 2
      %v211 = vsel %vm206, %v208, %v210
      %v214 = vadd.f32 %v197, %v209
      %v215 = vadd.f32 %v198, %v211
      %v216 = vperm.slane %v175, 3
      %v217 = vmul.f32 %v171, %v216
      %v218 = vmul.f32 %v172, %v216
      %v219 = vmul.f32 %v173, %v216
      %vm223 = vcmask 1044480
      %v224 = vrot.slane %v217, 3
      %v225 = vrot.slane %v218, 3
      %v226 = vsel %vm223, %v224, %v225
      %v227 = vrot.slane %v219, 3
      %v228 = vsel %vm223, %v225, %v227
      %v231 = vadd.f32 %v214, %v226
      %v232 = vadd.f32 %v215, %v228
      %v233 = vperm.slane %v175, 4
      %v234 = vmul.f32 %v171, %v233
      %v235 = vmul.f32 %v172, %v233
      %v236 = vmul.f32 %v173, %v233
      %vm240 = vcmask 1043456
      %v241 = vrot.slane %v234, 4
      %v242 = vrot.slane %v235, 4
      %v243 = vsel %vm240, %v241, %v242
      %v244 = vrot.slane %v236, 4
      %v245 = vsel %vm240, %v242, %v244
      %v248 = vadd.f32 %v231, %v243
      %v249 = vadd.f32 %v232, %v245
      %v250 = vperm.slane %v175, 5
      %v251 = vmul.f32 %v171, %v250
      %v252 = vmul.f32 %v172, %v250
      %v253 = vmul.f32 %v173, %v250
      %vm257 = vcmask 1042432
      %v258 = vrot.slane %v251, 5
      %v259 = vrot.slane %v252, 5
      %v260 = vsel %vm257, %v258, %v259
      %v261 = vrot.slane %v253, 5
      %v262 = vsel %vm257, %v259, %v261
      %v265 = vadd.f32 %v248, %v260
      %v266 = vadd.f32 %v249, %v262
      %v267 = vperm.slane %v175, 6
      %v268 = vmul.f32 %v171, %v267
      %v269 = vmul.f32 %v172, %v267
      %v270 = vmul.f32 %v173, %v267
      %vm274 = vcmask 1041408
      %v275 = vrot.slane %v268, 6
      %v276 = vrot.slane %v269, 6
      %v277 = vsel %vm274, %v275, %v276
      %v278 = vrot.slane %v270, 6
      %v279 = vsel %vm274, %v276, %v278
      %v282 = vadd.f32 %v265, %v277
      %v283 = vadd.f32 %v266, %v279
      %v284 = vperm.slane %v175, 7
      %v285 = vmul.f32 %v171, %v284
      %v286 = vmul.f32 %v172, %v284
      %v287 = vmul.f32 %v173, %v284
      %vm291 = vcmask 1040384
      %v292 = vrot.slane %v285, 7
      %v293 = vrot.slane %v286, 7
      %v294 = vsel %vm291, %v292, %v293
      %v295 = vrot.slane %v287, 7
      %v296 = vsel %vm291, %v293, %v295
      %v299 = vadd.f32 %v282, %v294
      %v300 = vadd.f32 %v283, %v296
      %v301 = vperm.slane %v176, 0
      %v302 = vmul.f32 %v172, %v301
      %v303 = vmul.f32 %v173, %v301
      %v304 = vadd.f32 %v299, %v302
      %v305 = vadd.f32 %v300, %v303
      %v306 = vperm.slane %v176, 1
      %v307 = vmul.f32 %v172, %v306
      %v308 = vmul.f32 %v173, %v306
      %v311 = vrot.slane %v307, 1
      %v312 = vrot.slane %v308, 1
      %v313 = vsel %vm191, %v311, %v312
      %v316 = vadd.f32 %v304, %v313
      %v317 = vadd.f32 %v305, %v312
      %v318 = vperm.slane %v176, 2
      %v319 = vmul.f32 %v172, %v318
      %v320 = vmul.f32 %v173, %v318
      %v321 = vmul.f32 %v174, %v318
      %v325 = vrot.slane %v319, 2
      %v326 = vrot.slane %v320, 2
      %v327 = vsel %vm206, %v325, %v326
      %v328 = vrot.slane %v321, 2
      %v329 = vsel %vm206, %v326, %v328
      %v332 = vadd.f32 %v316, %v327
      %v333 = vadd.f32 %v317, %v329
      %v334 = vperm.slane %v176, 3
      %v335 = vmul.f32 %v172, %v334
      %v336 = vmul.f32 %v173, %v334
      %v337 = vmul.f32 %v174, %v334
      %v341 = vrot.slane %v335, 3
      %v342 = vrot.slane %v336, 3
      %v343 = vsel %vm223, %v341, %v342
      %v344 = vrot.slane %v337, 3
      %v345 = vsel %vm223, %v342, %v344
      %v348 = vadd.f32 %v332, %v343
      %v349 = vadd.f32 %v333, %v345
      %v350 = vperm.slane %v176, 4
      %v351 = vmul.f32 %v172, %v350
      %v352 = vmul.f32 %v173, %v350
      %v353 = vmul.f32 %v174, %v350
      %v357 = vrot.slane %v351, 4
      %v358 = vrot.slane %v352, 4
      %v359 = vsel %vm240, %v357, %v358
      %v360 = vrot.slane %v353, 4
      %v361 = vsel %vm240, %v358, %v360
      %v364 = vadd.f32 %v348, %v359
      %v365 = vadd.f32 %v349, %v361
      %v366 = vperm.slane %v176, 5
      %v367 = vmul.f32 %v172, %v366
      %v368 = vmul.f32 %v173, %v366
      %v369 = vmul.f32 %v174, %v366
      %v373 = vrot.slane %v367, 5
      %v374 = vrot.slane %v368, 5
      %v375 = vsel %vm257, %v373, %v374
      %v376 = vrot.slane %v369, 5
      %v377 = vsel %vm257, %v374, %v376
      %v380 = vadd.f32 %v364, %v375
      %v381 = vadd.f32 %v365, %v377
      %v382 = vperm.slane %v176, 6
      %v383 = vmul.f32 %v172, %v382
      %v384 = vmul.f32 %v173, %v382
      %v385 = vmul.f32 %v174, %v382
      %v389 = vrot.slane %v383, 6
      %v390 = vrot.slane %v384, 6
      %v391 = vsel %vm274, %v389, %v390
      %v392 = vrot.slane %v385, 6
      %v393 = vsel %vm274, %v390, %v392
      %v396 = vadd.f32 %v380, %v391
      %v397 = vadd.f32 %v381, %v393
      %398 = vst [vmem:[%s170] sm:$0xff] %v396
      %399 = vst [vmem:[%s170 + $0x8] sm:$0x7f] %v397
      %p400 = scmp.lt.s32.totalorder %s14, 1
      %s401 = scalar_select %p400, %s14, 1
      %s402 = smul.addr %s401, 2
      %s403 = smul.addr %s402, 8
      %s404 = scalar_lea.vmem %s3, %s403
      // Predicated region
      $region33: #{conformer_forward.49} parent=31 // pred_check
        %p405 = pneg %p100
      $region34: #{conformer_forward.49} parent=31 // pred_check_branch
        %407 = sbr.rel (%p405) target = $region36
      $region35: #{conformer_forward.49} parent=31 // pred_region
        _
      $region36: #{conformer_forward.49} parent=31 // pred_fallthru
        _
    $region32: #{conformer_forward.49} parent=5 // pred_fallthru
      _
    %p408 = scmp.le.s32.totalorder 2, %s9
    // Predicated region
    $region37: #{conformer_forward.49} parent=5 // pred_check
      %p409 = pneg %p408
    $region38: #{conformer_forward.49} parent=5 // pred_check_branch
      %411 = sbr.rel (%p409) target = $region40
    $region39: #{conformer_forward.49} parent=5 // pred_region
      %s412 = ssub.s32 %s9, 2
      // Predicated region
      $region41: #{conformer_forward.49} parent=39 // pred_check
        %p413 = pneg %p106
      $region42: #{conformer_forward.49} parent=39 // pred_check_branch
        %415 = sbr.rel (%p413) target = $region44
      $region43: #{conformer_forward.49} parent=39 // pred_region
        %p416 = scmp.lt.s32.totalorder %s15, 1
        %s417 = scalar_select %p416, %s15, 1
        %s418 = smul.addr %s417, 2
        %s419 = smul.addr %s418, 8
        %s420 = scalar_lea.vmem %s3, %s419
      $region44: #{conformer_forward.49} parent=39 // pred_fallthru
        _
    $region40: #{conformer_forward.49} parent=5 // pred_fallthru
      _
  $region6: #{conformer_forward.49} parent=0 // loop_footer
    %s13 = sadd.s32 1, %s9
  $region7: #{conformer_forward.49} parent=0 // loop_footer_branch
    %8 = sbr.rel target = $region3
  $region8: #{conformer_forward.49} parent=0 // loop_exit
    _

// kernel: conformer_forward.71
$region0: #{conformer_forward.71}
  #allocation0 [shape = 'u32[]', space=smem, size = 0x4, offset = 0x4, fixed_abs, tag = 'smem constant byte address 0x4 - core index']
  #allocation1 [shape = 'u32[72,128]{1,0:T(1,128)}', space=vmem, size = 0x9000, scoped, tag = 'internal scratch']
  %s0 = inlined_call_operand.vmem [shape: f32[30,768], index: 0, kind: input, shape index: {}]
  %s1 = inlined_call_operand.vmem [shape: bf16[768,128], index: 1, kind: input, shape index: {}]
  %s2 = inlined_call_operand.vmem [shape: f32[1,128], index: 2, kind: input, shape index: {}]
  %s3 = inlined_call_operand.vmem [shape: f32[30,128], index: 3, kind: output, shape index: {}]
  %s4 = sld [smem:[#allocation0]]
  $region22: #{conformer_forward.71} parent=0
    _
  %s6 = ssub.s32 1, %s4
  %s7 = scalar_select 0, %s6, %s4
  // Predicated region
  $region2: #{conformer_forward.71} parent=0 // pred_check
    _
  $region3: #{conformer_forward.71} parent=0 // pred_check_branch
    %9 = sbr.rel (0) target = $region5
  $region4: #{conformer_forward.71} parent=0 // pred_region
    _
  $region5: #{conformer_forward.71} parent=0 // pred_fallthru
    _
  // Predicated region
  $region6: #{conformer_forward.71} parent=0 // pred_check
    _
  $region7: #{conformer_forward.71} parent=0 // pred_check_branch
    %11 = sbr.rel (0) target = $region9
  $region8: #{conformer_forward.71} parent=0 // pred_region
    _
  $region9: #{conformer_forward.71} parent=0 // pred_fallthru
    _
  // Predicated region
  $region10: #{conformer_forward.71} parent=0 // pred_check
    _
  $region11: #{conformer_forward.71} parent=0 // pred_check_branch
    %13 = sbr.rel (0) target = $region13
  $region12: #{conformer_forward.71} parent=0 // pred_region
    _
  $region13: #{conformer_forward.71} parent=0 // pred_fallthru
    _
  %v14 = vld [vmem:[%s0] sm:$0xff]
  %v15 = vld [vmem:[%s0 + $0x8] sm:$0xff]
  %v16 = vld [vmem:[%s0 + $0x10] sm:$0xff]
  %v17 = vld [vmem:[%s0 + $0x18] sm:$0xff]
  %v18 = vld [vmem:[%s0 + $0x20] sm:$0xff]
  %v19 = vld [vmem:[%s0 + $0x28] sm:$0xff]
  %v20 = vld [vmem:[%s0 + $0x30] sm:$0xff]
  %v21 = vld [vmem:[%s0 + $0x38] sm:$0xff]
  %v22 = vld [vmem:[%s0 + $0x40] sm:$0xff]
  %v23 = vld [vmem:[%s0 + $0x48] sm:$0xff]
  %v24 = vld [vmem:[%s0 + $0x50] sm:$0xff]
  %v25 = vld [vmem:[%s0 + $0x58] sm:$0xff]
  %v26 = vld [vmem:[%s0 + $0x60] sm:$0xff]
  %v27 = vld [vmem:[%s0 + $0x68] sm:$0xff]
  %v28 = vld [vmem:[%s0 + $0x70] sm:$0xff]
  %v29 = vld [vmem:[%s0 + $0x78] sm:$0xff]
  %v30 = vld [vmem:[%s0 + $0x80] sm:$0xff]
  %v31 = vld [vmem:[%s0 + $0x88] sm:$0xff]
  %v32 = vld [vmem:[%s0 + $0x90] sm:$0x3f]
  %v33 = vld [vmem:[%s0 + $0x98] sm:$0x3f]
  %v34 = vld [vmem:[%s0 + $0xa0] sm:$0x3f]
  %v35 = vld [vmem:[%s0 + $0xa8] sm:$0x3f]
  %v36 = vld [vmem:[%s0 + $0xb0] sm:$0x3f]
  %v37 = vld [vmem:[%s0 + $0xb8] sm:$0x3f]
  %v38 = vpack.c.bf16 %v20, %v14
  %v39 = vpack.c.bf16 %v21, %v15
  %v40 = vpack.c.bf16 %v22, %v16
  %v41 = vpack.c.bf16 %v23, %v17
  %v42 = vpack.c.bf16 %v24, %v18
  %v43 = vpack.c.bf16 %v25, %v19
  %v44 = vpack.c.bf16 %v32, %v26
  %v45 = vpack.c.bf16 %v33, %v27
  %v46 = vpack.c.bf16 %v34, %v28
  %v47 = vpack.c.bf16 %v35, %v29
  %v48 = vpack.c.bf16 %v36, %v30
  %v49 = vpack.c.bf16 %v37, %v31
  %v50 = vld [vmem:[%s1] sm:$0xf]
  %v51 = vld [vmem:[%s1 + $0x4] sm:$0xf]
  %v52 = vld [vmem:[%s1 + $0x8] sm:$0xf]
  %v53 = vld [vmem:[%s1 + $0xc] sm:$0xf]
  %v54 = vld [vmem:[%s1 + $0x10] sm:$0xf]
  %v55 = vld [vmem:[%s1 + $0x14] sm:$0xf]
  %v56 = vld [vmem:[%s1 + $0x18] sm:$0xf]
  %v57 = vld [vmem:[%s1 + $0x1c] sm:$0xf]
  %v58 = vld [vmem:[%s1 + $0x20] sm:$0xf]
  %v59 = vld [vmem:[%s1 + $0x24] sm:$0xf]
  %v60 = vld [vmem:[%s1 + $0x28] sm:$0xf]
  %v61 = vld [vmem:[%s1 + $0x2c] sm:$0xf]
  %v62 = vld [vmem:[%s1 + $0x30] sm:$0xf]
  %v63 = vld [vmem:[%s1 + $0x34] sm:$0xf]
  %v64 = vld [vmem:[%s1 + $0x38] sm:$0xf]
  %v65 = vld [vmem:[%s1 + $0x3c] sm:$0xf]
  %v66 = vld [vmem:[%s1 + $0x40] sm:$0xf]
  %v67 = vld [vmem:[%s1 + $0x44] sm:$0xf]
  %v68 = vld [vmem:[%s1 + $0x48] sm:$0xf]
  %v69 = vld [vmem:[%s1 + $0x4c] sm:$0xf]
  %v70 = vld [vmem:[%s1 + $0x50] sm:$0xf]
  %v71 = vld [vmem:[%s1 + $0x54] sm:$0xf]
  %v72 = vld [vmem:[%s1 + $0x58] sm:$0xf]
  %v73 = vld [vmem:[%s1 + $0x5c] sm:$0xf]
  %v74 = vld [vmem:[%s1 + $0x60] sm:$0xf]
  %v75 = vld [vmem:[%s1 + $0x64] sm:$0xf]
  %v76 = vld [vmem:[%s1 + $0x68] sm:$0xf]
  %v77 = vld [vmem:[%s1 + $0x6c] sm:$0xf]
  %v78 = vld [vmem:[%s1 + $0x70] sm:$0xf]
  %v79 = vld [vmem:[%s1 + $0x74] sm:$0xf]
  %v80 = vld [vmem:[%s1 + $0x78] sm:$0xf]
  %v81 = vld [vmem:[%s1 + $0x7c] sm:$0xf]
  %v82 = vld [vmem:[%s1 + $0x80] sm:$0xf]
  %v83 = vld [vmem:[%s1 + $0x84] sm:$0xf]
  %v84 = vld [vmem:[%s1 + $0x88] sm:$0xf]
  %v85 = vld [vmem:[%s1 + $0x8c] sm:$0xf]
  %v86 = vld [vmem:[%s1 + $0x90] sm:$0xf]
  %v87 = vld [vmem:[%s1 + $0x94] sm:$0xf]
  %v88 = vld [vmem:[%s1 + $0x98] sm:$0xf]
  %v89 = vld [vmem:[%s1 + $0x9c] sm:$0xf]
  %v90 = vld [vmem:[%s1 + $0xa0] sm:$0xf]
  %v91 = vld [vmem:[%s1 + $0xa4] sm:$0xf]
  %v92 = vld [vmem:[%s1 + $0xa8] sm:$0xf]
  %v93 = vld [vmem:[%s1 + $0xac] sm:$0xf]
  %v94 = vld [vmem:[%s1 + $0xb0] sm:$0xf]
  %v95 = vld [vmem:[%s1 + $0xb4] sm:$0xf]
  %v96 = vld [vmem:[%s1 + $0xb8] sm:$0xf]
  %v97 = vld [vmem:[%s1 + $0xbc] sm:$0xf]
  %v98 = vld [vmem:[%s1 + $0xc0] sm:$0xf]
  %v99 = vld [vmem:[%s1 + $0xc4] sm:$0xf]
  %v100 = vld [vmem:[%s1 + $0xc8] sm:$0xf]
  %v101 = vld [vmem:[%s1 + $0xcc] sm:$0xf]
  %v102 = vld [vmem:[%s1 + $0xd0] sm:$0xf]
  %v103 = vld [vmem:[%s1 + $0xd4] sm:$0xf]
  %v104 = vld [vmem:[%s1 + $0xd8] sm:$0xf]
  %v105 = vld [vmem:[%s1 + $0xdc] sm:$0xf]
  %v106 = vld [vmem:[%s1 + $0xe0] sm:$0xf]
  %v107 = vld [vmem:[%s1 + $0xe4] sm:$0xf]
  %v108 = vld [vmem:[%s1 + $0xe8] sm:$0xf]
  %v109 = vld [vmem:[%s1 + $0xec] sm:$0xf]
  %v110 = vld [vmem:[%s1 + $0xf0] sm:$0xf]
  %v111 = vld [vmem:[%s1 + $0xf4] sm:$0xf]
  %v112 = vld [vmem:[%s1 + $0xf8] sm:$0xf]
  %v113 = vld [vmem:[%s1 + $0xfc] sm:$0xf]
  %v114 = vld [vmem:[%s1 + $0x100] sm:$0xf]
  %v115 = vld [vmem:[%s1 + $0x104] sm:$0xf]
  %v116 = vld [vmem:[%s1 + $0x108] sm:$0xf]
  %v117 = vld [vmem:[%s1 + $0x10c] sm:$0xf]
  %v118 = vld [vmem:[%s1 + $0x110] sm:$0xf]
  %v119 = vld [vmem:[%s1 + $0x114] sm:$0xf]
  %v120 = vld [vmem:[%s1 + $0x118] sm:$0xf]
  %v121 = vld [vmem:[%s1 + $0x11c] sm:$0xf]
  %v122 = vld [vmem:[%s1 + $0x120] sm:$0xf]
  %v123 = vld [vmem:[%s1 + $0x124] sm:$0xf]
  %v124 = vld [vmem:[%s1 + $0x128] sm:$0xf]
  %v125 = vld [vmem:[%s1 + $0x12c] sm:$0xf]
  %v126 = vld [vmem:[%s1 + $0x130] sm:$0xf]
  %v127 = vld [vmem:[%s1 + $0x134] sm:$0xf]
  %v128 = vld [vmem:[%s1 + $0x138] sm:$0xf]
  %v129 = vld [vmem:[%s1 + $0x13c] sm:$0xf]
  %v130 = vld [vmem:[%s1 + $0x140] sm:$0xf]
  %v131 = vld [vmem:[%s1 + $0x144] sm:$0xf]
  %v132 = vld [vmem:[%s1 + $0x148] sm:$0xf]
  %v133 = vld [vmem:[%s1 + $0x14c] sm:$0xf]
  %v134 = vld [vmem:[%s1 + $0x150] sm:$0xf]
  %v135 = vld [vmem:[%s1 + $0x154] sm:$0xf]
  %v136 = vld [vmem:[%s1 + $0x158] sm:$0xf]
  %v137 = vld [vmem:[%s1 + $0x15c] sm:$0xf]
  %v138 = vld [vmem:[%s1 + $0x160] sm:$0xf]
  %v139 = vld [vmem:[%s1 + $0x164] sm:$0xf]
  %v140 = vld [vmem:[%s1 + $0x168] sm:$0xf]
  %v141 = vld [vmem:[%s1 + $0x16c] sm:$0xf]
  %v142 = vld [vmem:[%s1 + $0x170] sm:$0xf]
  %v143 = vld [vmem:[%s1 + $0x174] sm:$0xf]
  %v144 = vld [vmem:[%s1 + $0x178] sm:$0xf]
  %v145 = vld [vmem:[%s1 + $0x17c] sm:$0xf]
  %v146 = vld [vmem:[%s2] sm:$0x1]
  %v148 = vperm.slane %v146, 0
  %v246 = vunpack.c.l.b16 %v50
  %v247 = vunpack.c.l.b16 %v51
  %v248 = vunpack.c.l.b16 %v52
  %v249 = vunpack.c.l.b16 %v53
  %v250 = vunpack.c.l.b16 %v54
  %v251 = vunpack.c.l.b16 %v55
  %v252 = vunpack.c.l.b16 %v56
  %v253 = vunpack.c.l.b16 %v57
  %v254 = vunpack.c.l.b16 %v58
  %v255 = vunpack.c.l.b16 %v59
  %v256 = vunpack.c.l.b16 %v60
  %v257 = vunpack.c.l.b16 %v61
  %v258 = vunpack.c.l.b16 %v62
  %v259 = vunpack.c.l.b16 %v63
  %v260 = vunpack.c.l.b16 %v64
  %v261 = vunpack.c.l.b16 %v65
  %v262 = vunpack.c.l.b16 %v66
  %v263 = vunpack.c.l.b16 %v67
  %v264 = vunpack.c.l.b16 %v68
  %v265 = vunpack.c.l.b16 %v69
  %v266 = vunpack.c.l.b16 %v70
  %v267 = vunpack.c.l.b16 %v71
  %v268 = vunpack.c.l.b16 %v72
  %v269 = vunpack.c.l.b16 %v73
  %v270 = vunpack.c.l.b16 %v74
  %v271 = vunpack.c.l.b16 %v75
  %v272 = vunpack.c.l.b16 %v76
  %v273 = vunpack.c.l.b16 %v77
  %v274 = vunpack.c.l.b16 %v78
  %v275 = vunpack.c.l.b16 %v79
  %v276 = vunpack.c.l.b16 %v80
  %v277 = vunpack.c.l.b16 %v81
  %v278 = vunpack.c.l.b16 %v82
  %v279 = vunpack.c.l.b16 %v83
  %v280 = vunpack.c.l.b16 %v84
  %v281 = vunpack.c.l.b16 %v85
  %v282 = vunpack.c.l.b16 %v86
  %v283 = vunpack.c.l.b16 %v87
  %v284 = vunpack.c.l.b16 %v88
  %v285 = vunpack.c.l.b16 %v89
  %v286 = vunpack.c.l.b16 %v90
  %v287 = vunpack.c.l.b16 %v91
  %v288 = vunpack.c.l.b16 %v92
  %v289 = vunpack.c.l.b16 %v93
  %v290 = vunpack.c.l.b16 %v94
  %v291 = vunpack.c.l.b16 %v95
  %v292 = vunpack.c.l.b16 %v96
  %v293 = vunpack.c.l.b16 %v97
  %v294 = vunpack.c.l.b16 %v98
  %v295 = vunpack.c.l.b16 %v99
  %v296 = vunpack.c.l.b16 %v100
  %v297 = vunpack.c.l.b16 %v101
  %v298 = vunpack.c.l.b16 %v102
  %v299 = vunpack.c.l.b16 %v103
  %v300 = vunpack.c.l.b16 %v104
  %v301 = vunpack.c.l.b16 %v105
  %v302 = vunpack.c.l.b16 %v106
  %v303 = vunpack.c.l.b16 %v107
  %v304 = vunpack.c.l.b16 %v108
  %v305 = vunpack.c.l.b16 %v109
  %v306 = vunpack.c.l.b16 %v110
  %v307 = vunpack.c.l.b16 %v111
  %v308 = vunpack.c.l.b16 %v112
  %v309 = vunpack.c.l.b16 %v113
  %v310 = vunpack.c.l.b16 %v114
  %v311 = vunpack.c.l.b16 %v115
  %v312 = vunpack.c.l.b16 %v116
  %v313 = vunpack.c.l.b16 %v117
  %v314 = vunpack.c.l.b16 %v118
  %v315 = vunpack.c.l.b16 %v119
  %v316 = vunpack.c.l.b16 %v120
  %v317 = vunpack.c.l.b16 %v121
  %v318 = vunpack.c.l.b16 %v122
  %v319 = vunpack.c.l.b16 %v123
  %v320 = vunpack.c.l.b16 %v124
  %v321 = vunpack.c.l.b16 %v125
  %v322 = vunpack.c.l.b16 %v126
  %v323 = vunpack.c.l.b16 %v127
  %v324 = vunpack.c.l.b16 %v128
  %v325 = vunpack.c.l.b16 %v129
  %v326 = vunpack.c.l.b16 %v130
  %v327 = vunpack.c.l.b16 %v131
  %v328 = vunpack.c.l.b16 %v132
  %v329 = vunpack.c.l.b16 %v133
  %v330 = vunpack.c.l.b16 %v134
  %v331 = vunpack.c.l.b16 %v135
  %v332 = vunpack.c.l.b16 %v136
  %v333 = vunpack.c.l.b16 %v137
  %v334 = vunpack.c.l.b16 %v138
  %v335 = vunpack.c.l.b16 %v139
  %v336 = vunpack.c.l.b16 %v140
  %v337 = vunpack.c.l.b16 %v141
  %v338 = vunpack.c.l.b16 %v142
  %v339 = vunpack.c.l.b16 %v143
  %v340 = vunpack.c.l.b16 %v144
  %v341 = vunpack.c.l.b16 %v145
  %v342 = vpack.c.b16 %v247, %v246
  %v343 = vpack.c.b16 %v249, %v248
  %v344 = vpack.c.b16 %v251, %v250
  %v345 = vpack.c.b16 %v253, %v252
  %v346 = vpack.c.b16 %v255, %v254
  %v347 = vpack.c.b16 %v257, %v256
  %v348 = vpack.c.b16 %v259, %v258
  %v349 = vpack.c.b16 %v261, %v260
  %v350 = vpack.c.b16 %v263, %v262
  %v351 = vpack.c.b16 %v265, %v264
  %v352 = vpack.c.b16 %v267, %v266
  %v353 = vpack.c.b16 %v269, %v268
  %v354 = vpack.c.b16 %v271, %v270
  %v355 = vpack.c.b16 %v273, %v272
  %v356 = vpack.c.b16 %v275, %v274
  %v357 = vpack.c.b16 %v277, %v276
  %v358 = vpack.c.b16 %v279, %v278
  %v359 = vpack.c.b16 %v281, %v280
  %v360 = vpack.c.b16 %v283, %v282
  %v361 = vpack.c.b16 %v285, %v284
  %v362 = vpack.c.b16 %v287, %v286
  %v363 = vpack.c.b16 %v289, %v288
  %v364 = vpack.c.b16 %v291, %v290
  %v365 = vpack.c.b16 %v293, %v292
  %v366 = vpack.c.b16 %v295, %v294
  %v367 = vpack.c.b16 %v297, %v296
  %v368 = vpack.c.b16 %v299, %v298
  %v369 = vpack.c.b16 %v301, %v300
  %v370 = vpack.c.b16 %v303, %v302
  %v371 = vpack.c.b16 %v305, %v304
  %v372 = vpack.c.b16 %v307, %v306
  %v373 = vpack.c.b16 %v309, %v308
  %v374 = vpack.c.b16 %v311, %v310
  %v375 = vpack.c.b16 %v313, %v312
  %v376 = vpack.c.b16 %v315, %v314
  %v377 = vpack.c.b16 %v317, %v316
  %v378 = vpack.c.b16 %v319, %v318
  %v379 = vpack.c.b16 %v321, %v320
  %v380 = vpack.c.b16 %v323, %v322
  %v381 = vpack.c.b16 %v325, %v324
  %v382 = vpack.c.b16 %v327, %v326
  %v383 = vpack.c.b16 %v329, %v328
  %v384 = vpack.c.b16 %v331, %v330
  %v385 = vpack.c.b16 %v333, %v332
  %v386 = vpack.c.b16 %v335, %v334
  %v387 = vpack.c.b16 %v337, %v336
  %v388 = vpack.c.b16 %v339, %v338
  %v389 = vpack.c.b16 %v341, %v340
  %438 = vmatpush.bf16.msra.mxu0 %v349
  %439 = vmatpush.bf16.msra.mxu0 %v348
  %440 = vmatpush.bf16.msra.mxu0 %v347
  %441 = vmatpush.bf16.msra.mxu0 %v346
  %442 = vmatpush.bf16.msra.mxu0 %v345
  %443 = vmatpush.bf16.msra.mxu0 %v344
  %444 = vmatpush.bf16.msra.mxu0 %v343
  %445 = vmatpush.bf16.msra.mxu0 %v342
  %446 = vmatmul.bf16.gmra.mxu0 %v38
  %v447 = vpop.f32.mrf.mxu0
  %v448 = vadd.f32 %v148, %v447
  %v449 = vpop.f32.mrf.mxu0
  %v450 = vadd.f32 %v148, %v449
  %451 = vmatmul.bf16.gmra.mxu0 %v44
  %v452 = vpop.f32.mrf.mxu0
  %v453 = vadd.f32 %v148, %v452
  %v454 = vpop.f32.mrf.mxu0
  %v455 = vadd.f32 %v148, %v454
  %456 = vdwg.mxu0
  %457 = vmatpush.bf16.msra.mxu0 %v357
  %458 = vmatpush.bf16.msra.mxu0 %v356
  %459 = vmatpush.bf16.msra.mxu0 %v355
  %460 = vmatpush.bf16.msra.mxu0 %v354
  %461 = vmatpush.bf16.msra.mxu0 %v353
  %462 = vmatpush.bf16.msra.mxu0 %v352
  %463 = vmatpush.bf16.msra.mxu0 %v351
  %464 = vmatpush.bf16.msra.mxu0 %v350
  %465 = vmatmul.bf16.gmra.mxu0 %v39
  %v466 = vpop.f32.mrf.mxu0
  %v467 = vadd.f32 %v448, %v466
  %v468 = vpop.f32.mrf.mxu0
  %v469 = vadd.f32 %v450, %v468
  %470 = vmatmul.bf16.gmra.mxu0 %v45
  %v471 = vpop.f32.mrf.mxu0
  %v472 = vadd.f32 %v453, %v471
  %v473 = vpop.f32.mrf.mxu0
  %v474 = vadd.f32 %v455, %v473
  %475 = vdwg.mxu0
  %476 = vmatpush.bf16.msra.mxu0 %v365
  %477 = vmatpush.bf16.msra.mxu0 %v364
  %478 = vmatpush.bf16.msra.mxu0 %v363
  %479 = vmatpush.bf16.msra.mxu0 %v362
  %480 = vmatpush.bf16.msra.mxu0 %v361
  %481 = vmatpush.bf16.msra.mxu0 %v360
  %482 = vmatpush.bf16.msra.mxu0 %v359
  %483 = vmatpush.bf16.msra.mxu0 %v358
  %484 = vmatmul.bf16.gmra.mxu0 %v40
  %v485 = vpop.f32.mrf.mxu0
  %v486 = vadd.f32 %v467, %v485
  %v487 = vpop.f32.mrf.mxu0
  %v488 = vadd.f32 %v469, %v487
  %489 = vmatmul.bf16.gmra.mxu0 %v46
  %v490 = vpop.f32.mrf.mxu0
  %v491 = vadd.f32 %v472, %v490
  %v492 = vpop.f32.mrf.mxu0
  %v493 = vadd.f32 %v474, %v492
  %494 = vdwg.mxu0
  %495 = vmatpush.bf16.msra.mxu0 %v373
  %496 = vmatpush.bf16.msra.mxu0 %v372
  %497 = vmatpush.bf16.msra.mxu0 %v371
  %498 = vmatpush.bf16.msra.mxu0 %v370
  %499 = vmatpush.bf16.msra.mxu0 %v369
  %500 = vmatpush.bf16.msra.mxu0 %v368
  %501 = vmatpush.bf16.msra.mxu0 %v367
  %502 = vmatpush.bf16.msra.mxu0 %v366
  %503 = vmatmul.bf16.gmra.mxu0 %v41
  %v504 = vpop.f32.mrf.mxu0
  %v505 = vadd.f32 %v486, %v504
  %v506 = vpop.f32.mrf.mxu0
  %v507 = vadd.f32 %v488, %v506
  %508 = vmatmul.bf16.gmra.mxu0 %v47
  %v509 = vpop.f32.mrf.mxu0
  %v510 = vadd.f32 %v491, %v509
  %v511 = vpop.f32.mrf.mxu0
  %v512 = vadd.f32 %v493, %v511
  %513 = vdwg.mxu0
  %514 = vmatpush.bf16.msra.mxu0 %v381
  %515 = vmatpush.bf16.msra.mxu0 %v380
  %516 = vmatpush.bf16.msra.mxu0 %v379
  %517 = vmatpush.bf16.msra.mxu0 %v378
  %518 = vmatpush.bf16.msra.mxu0 %v377
  %519 = vmatpush.bf16.msra.mxu0 %v376
  %520 = vmatpush.bf16.msra.mxu0 %v375
  %521 = vmatpush.bf16.msra.mxu0 %v374
  %522 = vmatmul.bf16.gmra.mxu0 %v42
  %v523 = vpop.f32.mrf.mxu0
  %v524 = vadd.f32 %v505, %v523
  %v525 = vpop.f32.mrf.mxu0
  %v526 = vadd.f32 %v507, %v525
  %527 = vmatmul.bf16.gmra.mxu0 %v48
  %v528 = vpop.f32.mrf.mxu0
  %v529 = vadd.f32 %v510, %v528
  %v530 = vpop.f32.mrf.mxu0
  %v531 = vadd.f32 %v512, %v530
  %532 = vdwg.mxu0
  %533 = vmatpush.bf16.msra.mxu0 %v389
  %534 = vmatpush.bf16.msra.mxu0 %v388
  %535 = vmatpush.bf16.msra.mxu0 %v387
  %536 = vmatpush.bf16.msra.mxu0 %v386
  %537 = vmatpush.bf16.msra.mxu0 %v385
  %538 = vmatpush.bf16.msra.mxu0 %v384
  %539 = vmatpush.bf16.msra.mxu0 %v383
  %540 = vmatpush.bf16.msra.mxu0 %v382
  %541 = vmatmul.bf16.gmra.mxu0 %v43
  %v542 = vpop.f32.mrf.mxu0
  %v543 = vadd.f32 %v524, %v542
  %v544 = vpop.f32.mrf.mxu0
  %v545 = vadd.f32 %v526, %v544
  %546 = vmatmul.bf16.gmra.mxu0 %v49
  %v547 = vpop.f32.mrf.mxu0
  %v548 = vadd.f32 %v529, %v547
  %v549 = vpop.f32.mrf.mxu0
  %v550 = vadd.f32 %v531, %v549
  %551 = vdwg.mxu0
  %552 = vst [vmem:[%s3] sm:$0xff] %v543
  %553 = vst [vmem:[%s3 + $0x8] sm:$0xff] %v545
  %554 = vst [vmem:[%s3 + $0x10] sm:$0xff] %v548
  %555 = vst [vmem:[%s3 + $0x18] sm:$0x3f] %v550
  // Predicated region
  $region14: #{conformer_forward.71} parent=0 // pred_check
    _
  $region15: #{conformer_forward.71} parent=0 // pred_check_branch
    %557 = sbr.rel (0) target = $region17
  $region16: #{conformer_forward.71} parent=0 // pred_region
    _
  $region17: #{conformer_forward.71} parent=0 // pred_fallthru
    _
  // Predicated region
  $region18: #{conformer_forward.71} parent=0 // pred_check
    _
  $region19: #{conformer_forward.71} parent=0 // pred_check_branch
    %559 = sbr.rel (0) target = $region21
  $region20: #{conformer_forward.71} parent=0 // pred_region
    _
  $region21: #{conformer_forward.71} parent=0 // pred_fallthru
    _

// kernel: conformer_forward.73
$region0: #{conformer_forward.73}
  #allocation0 [shape = 'u32[]', space=smem, size = 0x4, offset = 0x4, fixed_abs, tag = 'smem constant byte address 0x4 - core index']
  #allocation1 [shape = 'u32[72,128]{1,0:T(1,128)}', space=vmem, size = 0x9000, scoped, tag = 'internal scratch']
  %s0 = inlined_call_operand.vmem [shape: f32[2,512], index: 0, kind: input, shape index: {}]
  %s1 = inlined_call_operand.vmem [shape: bf16[512,128], index: 1, kind: input, shape index: {}]
  %s2 = inlined_call_operand.vmem [shape: f32[1,128], index: 2, kind: input, shape index: {}]
  %s3 = inlined_call_operand.hbm [shape: f32[2,128], index: 3, kind: output, shape index: {}]
  %s4 = sld [smem:[#allocation0]]
  $region22: #{conformer_forward.73} parent=0
    _
  %s6 = ssub.s32 1, %s4
  %s7 = scalar_select 0, %s6, %s4
  $region1: #{conformer_forward.73} parent=0
    #allocation2 [shape = 'u8[1024]{0}', space=vmem, size = 0x400, scoped, tag = 'output window, operand 0, single buffered']
    #allocation3 [shape = 's32[1]{0}', space=sflag, size = 0x4, scoped, tag = 'scoped memory for conformer_forward.73']
    %8 = vsyncpa [#allocation3], 0
    // Predicated region
    $region2: #{conformer_forward.73} parent=1 // pred_check
      _
    $region3: #{conformer_forward.73} parent=1 // pred_check_branch
      %10 = sbr.rel (0) target = $region5
    $region4: #{conformer_forward.73} parent=1 // pred_region
      _
    $region5: #{conformer_forward.73} parent=1 // pred_fallthru
      _
    // Predicated region
    $region6: #{conformer_forward.73} parent=1 // pred_check
      _
    $region7: #{conformer_forward.73} parent=1 // pred_check_branch
      %12 = sbr.rel (0) target = $region9
    $region8: #{conformer_forward.73} parent=1 // pred_region
      _
    $region9: #{conformer_forward.73} parent=1 // pred_fallthru
      _
    // Predicated region
    $region10: #{conformer_forward.73} parent=1 // pred_check
      _
    $region11: #{conformer_forward.73} parent=1 // pred_check_branch
      %14 = sbr.rel (0) target = $region13
    $region12: #{conformer_forward.73} parent=1 // pred_region
      _
    $region13: #{conformer_forward.73} parent=1 // pred_fallthru
      _
    %v15 = vld [vmem:[%s0] sm:$0xff]
    %17 = vst [vmem:[#allocation1] ss:$4 sm:$0xff] %v15
    %v18 = vld.sshfl [vmem:[#allocation1] sm:$0xff pattern:$0x73625140]
    %v19 = vld.sshfl [vmem:[#allocation1 + $0x8] sm:$0xff pattern:$0x73625140]
    %v20 = vld.sshfl [vmem:[#allocation1 + $0x10] sm:$0xff pattern:$0x73625140]
    %v21 = vld.sshfl [vmem:[#allocation1 + $0x18] sm:$0xff pattern:$0x73625140]
    %v26 = vpack.c.bf16 %v18, %v18
    %v27 = vpack.c.bf16 %v19, %v19
    %v28 = vpack.c.bf16 %v20, %v20
    %v29 = vpack.c.bf16 %v21, %v21
    %v30 = vld [vmem:[%s1] sm:$0xf]
    %v31 = vld [vmem:[%s1 + $0x4] sm:$0xf]
    %v32 = vld [vmem:[%s1 + $0x8] sm:$0xf]
    %v33 = vld [vmem:[%s1 + $0xc] sm:$0xf]
    %v34 = vld [vmem:[%s1 + $0x10] sm:$0xf]
    %v35 = vld [vmem:[%s1 + $0x14] sm:$0xf]
    %v36 = vld [vmem:[%s1 + $0x18] sm:$0xf]
    %v37 = vld [vmem:[%s1 + $0x1c] sm:$0xf]
    %v38 = vld [vmem:[%s1 + $0x20] sm:$0xf]
    %v39 = vld [vmem:[%s1 + $0x24] sm:$0xf]
    %v40 = vld [vmem:[%s1 + $0x28] sm:$0xf]
    %v41 = vld [vmem:[%s1 + $0x2c] sm:$0xf]
    %v42 = vld [vmem:[%s1 + $0x30] sm:$0xf]
    %v43 = vld [vmem:[%s1 + $0x34] sm:$0xf]
    %v44 = vld [vmem:[%s1 + $0x38] sm:$0xf]
    %v45 = vld [vmem:[%s1 + $0x3c] sm:$0xf]
    %v46 = vld [vmem:[%s1 + $0x40] sm:$0xf]
    %v47 = vld [vmem:[%s1 + $0x44] sm:$0xf]
    %v48 = vld [vmem:[%s1 + $0x48] sm:$0xf]
    %v49 = vld [vmem:[%s1 + $0x4c] sm:$0xf]
    %v50 = vld [vmem:[%s1 + $0x50] sm:$0xf]
    %v51 = vld [vmem:[%s1 + $0x54] sm:$0xf]
    %v52 = vld [vmem:[%s1 + $0x58] sm:$0xf]
    %v53 = vld [vmem:[%s1 + $0x5c] sm:$0xf]
    %v54 = vld [vmem:[%s1 + $0x60] sm:$0xf]
    %v55 = vld [vmem:[%s1 + $0x64] sm:$0xf]
    %v56 = vld [vmem:[%s1 + $0x68] sm:$0xf]
    %v57 = vld [vmem:[%s1 + $0x6c] sm:$0xf]
    %v58 = vld [vmem:[%s1 + $0x70] sm:$0xf]
    %v59 = vld [vmem:[%s1 + $0x74] sm:$0xf]
    %v60 = vld [vmem:[%s1 + $0x78] sm:$0xf]
    %v61 = vld [vmem:[%s1 + $0x7c] sm:$0xf]
    %v62 = vld [vmem:[%s1 + $0x80] sm:$0xf]
    %v63 = vld [vmem:[%s1 + $0x84] sm:$0xf]
    %v64 = vld [vmem:[%s1 + $0x88] sm:$0xf]
    %v65 = vld [vmem:[%s1 + $0x8c] sm:$0xf]
    %v66 = vld [vmem:[%s1 + $0x90] sm:$0xf]
    %v67 = vld [vmem:[%s1 + $0x94] sm:$0xf]
    %v68 = vld [vmem:[%s1 + $0x98] sm:$0xf]
    %v69 = vld [vmem:[%s1 + $0x9c] sm:$0xf]
    %v70 = vld [vmem:[%s1 + $0xa0] sm:$0xf]
    %v71 = vld [vmem:[%s1 + $0xa4] sm:$0xf]
    %v72 = vld [vmem:[%s1 + $0xa8] sm:$0xf]
    %v73 = vld [vmem:[%s1 + $0xac] sm:$0xf]
    %v74 = vld [vmem:[%s1 + $0xb0] sm:$0xf]
    %v75 = vld [vmem:[%s1 + $0xb4] sm:$0xf]
    %v76 = vld [vmem:[%s1 + $0xb8] sm:$0xf]
    %v77 = vld [vmem:[%s1 + $0xbc] sm:$0xf]
    %v78 = vld [vmem:[%s1 + $0xc0] sm:$0xf]
    %v79 = vld [vmem:[%s1 + $0xc4] sm:$0xf]
    %v80 = vld [vmem:[%s1 + $0xc8] sm:$0xf]
    %v81 = vld [vmem:[%s1 + $0xcc] sm:$0xf]
    %v82 = vld [vmem:[%s1 + $0xd0] sm:$0xf]
    %v83 = vld [vmem:[%s1 + $0xd4] sm:$0xf]
    %v84 = vld [vmem:[%s1 + $0xd8] sm:$0xf]
    %v85 = vld [vmem:[%s1 + $0xdc] sm:$0xf]
    %v86 = vld [vmem:[%s1 + $0xe0] sm:$0xf]
    %v87 = vld [vmem:[%s1 + $0xe4] sm:$0xf]
    %v88 = vld [vmem:[%s1 + $0xe8] sm:$0xf]
    %v89 = vld [vmem:[%s1 + $0xec] sm:$0xf]
    %v90 = vld [vmem:[%s1 + $0xf0] sm:$0xf]
    %v91 = vld [vmem:[%s1 + $0xf4] sm:$0xf]
    %v92 = vld [vmem:[%s1 + $0xf8] sm:$0xf]
    %v93 = vld [vmem:[%s1 + $0xfc] sm:$0xf]
    %v94 = vld [vmem:[%s2] sm:$0x1]
    %v96 = vperm.slane %v94, 0
    %v162 = vunpack.c.l.b16 %v30
    %v163 = vunpack.c.l.b16 %v31
    %v164 = vunpack.c.l.b16 %v32
    %v165 = vunpack.c.l.b16 %v33
    %v166 = vunpack.c.l.b16 %v34
    %v167 = vunpack.c.l.b16 %v35
    %v168 = vunpack.c.l.b16 %v36
    %v169 = vunpack.c.l.b16 %v37
    %v170 = vunpack.c.l.b16 %v38
    %v171 = vunpack.c.l.b16 %v39
    %v172 = vunpack.c.l.b16 %v40
    %v173 = vunpack.c.l.b16 %v41
    %v174 = vunpack.c.l.b16 %v42
    %v175 = vunpack.c.l.b16 %v43
    %v176 = vunpack.c.l.b16 %v44
    %v177 = vunpack.c.l.b16 %v45
    %v178 = vunpack.c.l.b16 %v46
    %v179 = vunpack.c.l.b16 %v47
    %v180 = vunpack.c.l.b16 %v48
    %v181 = vunpack.c.l.b16 %v49
    %v182 = vunpack.c.l.b16 %v50
    %v183 = vunpack.c.l.b16 %v51
    %v184 = vunpack.c.l.b16 %v52
    %v185 = vunpack.c.l.b16 %v53
    %v186 = vunpack.c.l.b16 %v54
    %v187 = vunpack.c.l.b16 %v55
    %v188 = vunpack.c.l.b16 %v56
    %v189 = vunpack.c.l.b16 %v57
    %v190 = vunpack.c.l.b16 %v58
    %v191 = vunpack.c.l.b16 %v59
    %v192 = vunpack.c.l.b16 %v60
    %v193 = vunpack.c.l.b16 %v61
    %v194 = vunpack.c.l.b16 %v62
    %v195 = vunpack.c.l.b16 %v63
    %v196 = vunpack.c.l.b16 %v64
    %v197 = vunpack.c.l.b16 %v65
    %v198 = vunpack.c.l.b16 %v66
    %v199 = vunpack.c.l.b16 %v67
    %v200 = vunpack.c.l.b16 %v68
    %v201 = vunpack.c.l.b16 %v69
    %v202 = vunpack.c.l.b16 %v70
    %v203 = vunpack.c.l.b16 %v71
    %v204 = vunpack.c.l.b16 %v72
    %v205 = vunpack.c.l.b16 %v73
    %v206 = vunpack.c.l.b16 %v74
    %v207 = vunpack.c.l.b16 %v75
    %v208 = vunpack.c.l.b16 %v76
    %v209 = vunpack.c.l.b16 %v77
    %v210 = vunpack.c.l.b16 %v78
    %v211 = vunpack.c.l.b16 %v79
    %v212 = vunpack.c.l.b16 %v80
    %v213 = vunpack.c.l.b16 %v81
    %v214 = vunpack.c.l.b16 %v82
    %v215 = vunpack.c.l.b16 %v83
    %v216 = vunpack.c.l.b16 %v84
    %v217 = vunpack.c.l.b16 %v85
    %v218 = vunpack.c.l.b16 %v86
    %v219 = vunpack.c.l.b16 %v87
    %v220 = vunpack.c.l.b16 %v88
    %v221 = vunpack.c.l.b16 %v89
    %v222 = vunpack.c.l.b16 %v90
    %v223 = vunpack.c.l.b16 %v91
    %v224 = vunpack.c.l.b16 %v92
    %v225 = vunpack.c.l.b16 %v93
    %v226 = vpack.c.b16 %v163, %v162
    %v227 = vpack.c.b16 %v165, %v164
    %v228 = vpack.c.b16 %v167, %v166
    %v229 = vpack.c.b16 %v169, %v168
    %v230 = vpack.c.b16 %v171, %v170
    %v231 = vpack.c.b16 %v173, %v172
    %v232 = vpack.c.b16 %v175, %v174
    %v233 = vpack.c.b16 %v177, %v176
    %v234 = vpack.c.b16 %v179, %v178
    %v235 = vpack.c.b16 %v181, %v180
    %v236 = vpack.c.b16 %v183, %v182
    %v237 = vpack.c.b16 %v185, %v184
    %v238 = vpack.c.b16 %v187, %v186
    %v239 = vpack.c.b16 %v189, %v188
    %v240 = vpack.c.b16 %v191, %v190
    %v241 = vpack.c.b16 %v193, %v192
    %v242 = vpack.c.b16 %v195, %v194
    %v243 = vpack.c.b16 %v197, %v196
    %v244 = vpack.c.b16 %v199, %v198
    %v245 = vpack.c.b16 %v201, %v200
    %v246 = vpack.c.b16 %v203, %v202
    %v247 = vpack.c.b16 %v205, %v204
    %v248 = vpack.c.b16 %v207, %v206
    %v249 = vpack.c.b16 %v209, %v208
    %v250 = vpack.c.b16 %v211, %v210
    %v251 = vpack.c.b16 %v213, %v212
    %v252 = vpack.c.b16 %v215, %v214
    %v253 = vpack.c.b16 %v217, %v216
    %v254 = vpack.c.b16 %v219, %v218
    %v255 = vpack.c.b16 %v221, %v220
    %v256 = vpack.c.b16 %v223, %v222
    %v257 = vpack.c.b16 %v225, %v224
    %290 = vmatpush.bf16.msra.mxu0 %v233
    %291 = vmatpush.bf16.msra.mxu0 %v232
    %292 = vmatpush.bf16.msra.mxu0 %v231
    %293 = vmatpush.bf16.msra.mxu0 %v230
    %294 = vmatpush.bf16.msra.mxu0 %v229
    %295 = vmatpush.bf16.msra.mxu0 %v228
    %296 = vmatpush.bf16.msra.mxu0 %v227
    %297 = vmatpush.bf16.msra.mxu0 %v226
    %298 = vmatmul.bf16.gmra.mxu0 %v26
    %v299 = vpop.f32.mrf.mxu0
    %v300 = vadd.f32 %v96, %v299
    %v301 = vpop.f32.mrf.mxu0
    %302 = vdwg.mxu0
    %303 = vmatpush.bf16.msra.mxu0 %v241
    %304 = vmatpush.bf16.msra.mxu0 %v240
    %305 = vmatpush.bf16.msra.mxu0 %v239
    %306 = vmatpush.bf16.msra.mxu0 %v238
    %307 = vmatpush.bf16.msra.mxu0 %v237
    %308 = vmatpush.bf16.msra.mxu0 %v236
    %309 = vmatpush.bf16.msra.mxu0 %v235
    %310 = vmatpush.bf16.msra.mxu0 %v234
    %311 = vmatmul.bf16.gmra.mxu0 %v27
    %v312 = vpop.f32.mrf.mxu0
    %v313 = vadd.f32 %v300, %v312
    %v314 = vpop.f32.mrf.mxu0
    %315 = vdwg.mxu0
    %316 = vmatpush.bf16.msra.mxu0 %v249
    %317 = vmatpush.bf16.msra.mxu0 %v248
    %318 = vmatpush.bf16.msra.mxu0 %v247
    %319 = vmatpush.bf16.msra.mxu0 %v246
    %320 = vmatpush.bf16.msra.mxu0 %v245
    %321 = vmatpush.bf16.msra.mxu0 %v244
    %322 = vmatpush.bf16.msra.mxu0 %v243
    %323 = vmatpush.bf16.msra.mxu0 %v242
    %324 = vmatmul.bf16.gmra.mxu0 %v28
    %v325 = vpop.f32.mrf.mxu0
    %v326 = vadd.f32 %v313, %v325
    %v327 = vpop.f32.mrf.mxu0
    %328 = vdwg.mxu0
    %329 = vmatpush.bf16.msra.mxu0 %v257
    %330 = vmatpush.bf16.msra.mxu0 %v256
    %331 = vmatpush.bf16.msra.mxu0 %v255
    %332 = vmatpush.bf16.msra.mxu0 %v254
    %333 = vmatpush.bf16.msra.mxu0 %v253
    %334 = vmatpush.bf16.msra.mxu0 %v252
    %335 = vmatpush.bf16.msra.mxu0 %v251
    %336 = vmatpush.bf16.msra.mxu0 %v250
    %337 = vmatmul.bf16.gmra.mxu0 %v29
    %v338 = vpop.f32.mrf.mxu0
    %v339 = vadd.f32 %v326, %v338
    %v340 = vpop.f32.mrf.mxu0
    %341 = vdwg.mxu0
    %342 = vst [vmem:[#allocation2] sm:$0x3] %v339
    // Predicated region
    $region14: #{conformer_forward.73} parent=1 // pred_check
      _
    $region15: #{conformer_forward.73} parent=1 // pred_check_branch
      %344 = sbr.rel (0) target = $region17
    $region16: #{conformer_forward.73} parent=1 // pred_region
      %346 = vsyncadd [#allocation3], 0
      %s348 = sshll.u32 [#allocation2], 4
      %s349 = int_to_ptr.vmem [resolvable:$true] %s348
      %s350 = sshll.u32 %s3, 4
      %s351 = int_to_ptr.hbm [resolvable:$true] %s350
      %353 = dma.vmem_to_hbm [thread:$0]  %s349, 32, %s351, [#allocation3]
    $region17: #{conformer_forward.73} parent=1 // pred_fallthru
      _
    // Predicated region
    $region18: #{conformer_forward.73} parent=1 // pred_check
      _
    $region19: #{conformer_forward.73} parent=1 // pred_check_branch
      %355 = sbr.rel (0) target = $region21
    $region20: #{conformer_forward.73} parent=1 // pred_region
      %357 = dma.done [#allocation3], 32
    $region21: #{conformer_forward.73} parent=1 // pred_fallthru
      _
    %358 = vsyncpa [#allocation3], 1

</llo_original>
